<compile_context>
chip_gen: v7x
topology: tpu7x:2x2x1
jax: 0.10.0
libtpu: 0.0.40
codegen_flags: <defaults>
</compile_context>

<pallas_src>
import jax
import jax.numpy as jnp
from jax import lax
from jax.experimental import pallas as pl
from jax.experimental.pallas import tpu as pltpu

EPS = 1e-5    # nn.BatchNorm2d default eps
LANES = 128


def make_attention_kernel(F_g, F_l, F_int, off, inv_m):
    """Build the fused kernel with static channel counts / param offsets."""

    def kernel(p_ref, g_ref, x_ref, out_ref):
        # g_ref: (F_g, Msub, 128); x_ref/out_ref: (F_l, Msub, 128). Lane-dense.
        g_ch = [g_ref[c].astype(jnp.float32) for c in range(F_g)]   # each (Msub, 128)
        x_ch = [x_ref[c].astype(jnp.float32) for c in range(F_l)]

        # ---- Stage 1: channel means + CxC second-moment (Gram) -- ONE data sweep.
        # Reduction count is C + C(C+1)/2 per input, independent of F_int.
        def stats(chans):
            C = len(chans)
            m = [jnp.sum(chans[c]) * inv_m for c in range(C)]
            G = {}
            for c in range(C):
                for c2 in range(c, C):
                    G[(c, c2)] = jnp.sum(chans[c] * chans[c2]) * inv_m
            return m, G

        m_g, G_g = stats(g_ch)
        m_x, G_x = stats(x_ch)

        def quad(w, G, C):
            # w' G w with G stored upper-triangular (scalar math only).
            acc = 0.0
            for c in range(C):
                acc = acc + w[c] * w[c] * G[(c, c)]
                for c2 in range(c + 1, C):
                    acc = acc + 2.0 * w[c] * w[c2] * G[(c, c2)]
            return acc

        # ---- Stage 2: per-k fused conv + BN + ReLU, psi accumulated in place.
        p = None
        for k in range(F_int):
            wg_k = [p_ref[off["wg"] + c * F_int + k] for c in range(F_g)]
            wx_k = [p_ref[off["wx"] + c * F_int + k] for c in range(F_l)]

            # Scalar BN stats from the factored moments.
            mu_g = sum(wg_k[c] * m_g[c] for c in range(F_g))
            var_g = jnp.maximum(quad(wg_k, G_g, F_g) - mu_g * mu_g, 0.0)
            scale_g = p_ref[off["gam_g"] + k] * lax.rsqrt(var_g + EPS)
            shift_g = p_ref[off["bet_g"] + k] - mu_g * scale_g

            mu_x = sum(wx_k[c] * m_x[c] for c in range(F_l))
            var_x = jnp.maximum(quad(wx_k, G_x, F_l) - mu_x * mu_x, 0.0)
            scale_x = p_ref[off["gam_x"] + k] * lax.rsqrt(var_x + EPS)
            shift_x = p_ref[off["bet_x"] + k] - mu_x * scale_x

            # Fold BN scale into the conv weights: pure broadcast-FMA chain (VPU).
            acc = g_ch[0] * (wg_k[0] * scale_g)
            for c in range(1, F_g):
                acc = acc + g_ch[c] * (wg_k[c] * scale_g)
            for c in range(F_l):
                acc = acc + x_ch[c] * (wx_k[c] * scale_x)
            s_k = jnp.maximum(acc + (shift_g + shift_x), 0.0)

            # Fused psi accumulation -- s_k is never kept live past this point.
            contrib = s_k * p_ref[off["wp"] + k]
            p = contrib if p is None else p + contrib

        # ---- Stage 3: psi BN (direct stats: post-ReLU, cannot be factored).
        mu_p = jnp.sum(p) * inv_m
        ex2_p = jnp.sum(p * p) * inv_m
        var_p = jnp.maximum(ex2_p - mu_p * mu_p, 0.0)
        scale_p = p_ref[off["gam_p"]] * lax.rsqrt(var_p + EPS)
        shift_p = p_ref[off["bet_p"]] - mu_p * scale_p
        psi = jax.nn.sigmoid(p * scale_p + shift_p)              # (Msub, 128)

        # Gating: same psi plane for every x channel; lane-dense stores.
        for c in range(F_l):
            out_ref[c] = (x_ch[c] * psi).astype(out_ref.dtype)

    return kernel


def attention_block(g, x, params):
    """g: (N, F_g, H, W), x: (N, F_l, H, W) in NCHW like PyTorch. Returns NCHW."""
    N, F_g, H, W = g.shape
    F_l = x.shape[1]
    F_int = params["wg"].shape[1]
    M = N * H * W
    assert M % LANES == 0, "N*H*W must be a multiple of 128 for this layout"
    Msub = M // LANES
    inv_m = 1.0 / float(M)

    # Channel-leading layout (layout plumbing in the wrapper, not compute):
    # each channel becomes a contiguous (Msub, 128) lane-dense plane.
    g3 = jnp.transpose(g, (1, 0, 2, 3)).reshape(F_g, Msub, LANES)
    x3 = jnp.transpose(x, (1, 0, 2, 3)).reshape(F_l, Msub, LANES)

    # Pack every (tiny) parameter into one flat f32 vector -> single SMEM input.
    # Conv biases bg/bx/bp intentionally NOT packed: training-mode BN's mean
    # subtraction cancels them exactly.
    n_wg, n_wx = F_g * F_int, F_l * F_int
    off = {}
    off["wg"] = 0
    off["wx"] = off["wg"] + n_wg
    off["wp"] = off["wx"] + n_wx
    off["gam_g"] = off["wp"] + F_int
    off["bet_g"] = off["gam_g"] + F_int
    off["gam_x"] = off["bet_g"] + F_int
    off["bet_x"] = off["gam_x"] + F_int
    off["gam_p"] = off["bet_x"] + F_int
    off["bet_p"] = off["gam_p"] + 1

    packed = jnp.concatenate([
        params["wg"].reshape(-1), params["wx"].reshape(-1), params["wp"].reshape(-1),
        params["gam_g"].reshape(-1), params["bet_g"].reshape(-1),
        params["gam_x"].reshape(-1), params["bet_x"].reshape(-1),
        params["gam_p"].reshape(-1), params["bet_p"].reshape(-1),
    ]).astype(jnp.float32)

    kernel = make_attention_kernel(F_g, F_l, F_int, off, inv_m)

    out3 = pl.pallas_call(
        kernel,
        out_shape=jax.ShapeDtypeStruct((F_l, Msub, LANES), x.dtype),
        grid=(1,),
        in_specs=[
            pl.BlockSpec(memory_space=pltpu.MemorySpace.SMEM),        # packed params
            pl.BlockSpec((F_g, Msub, LANES), lambda i: (0, 0, 0)),    # g (channel-leading)
            pl.BlockSpec((F_l, Msub, LANES), lambda i: (0, 0, 0)),    # x (channel-leading)
        ],
        out_specs=pl.BlockSpec((F_l, Msub, LANES), lambda i: (0, 0, 0)),
        compiler_params=pltpu.CompilerParams(
            dimension_semantics=("arbitrary",),
            # Tiny footprint here; for the tiled version re-derive per
            # generation (raise toward 64-100 MiB on v5e/v6e, keep headroom
            # under v7x's 64 MiB physical VMEM).
            vmem_limit_bytes=32 * 1024 * 1024,
        ),
    )(packed, g3, x3)

    return out3.reshape(F_l, N, H, W).transpose(1, 0, 2, 3)


def init_params(key, F_g, F_l, F_int):
    ks = jax.random.split(key, 10)
    f32 = jnp.float32
    return {
        # Conv2d(F_g, F_int, 1) weight (F_int, F_g, 1, 1) stored transposed (F_g, F_int)
        "wg": jax.random.normal(ks[0], (F_g, F_int), f32) * 0.2,
        "bg": jax.random.normal(ks[1], (1, F_int), f32) * 0.1,
        "gam_g": 1.0 + 0.1 * jax.random.normal(ks[2], (1, F_int), f32),
        "bet_g": 0.1 * jax.random.normal(ks[3], (1, F_int), f32),
        "wx": jax.random.normal(ks[4], (F_l, F_int), f32) * 0.2,
        "bx": jax.random.normal(ks[5], (1, F_int), f32) * 0.1,
        "gam_x": 1.0 + 0.1 * jax.random.normal(ks[6], (1, F_int), f32),
        "bet_x": 0.1 * jax.random.normal(ks[7], (1, F_int), f32),
        # Conv2d(F_int, 1, 1) weight (1, F_int, 1, 1) stored transposed (F_int, 1)
        "wp": jax.random.normal(ks[8], (F_int, 1), f32) * 0.2,
        "bp": jnp.zeros((1, 1), f32) + 0.05,
        "gam_p": jnp.ones((1, 1), f32) * 1.1,
        "bet_p": jnp.zeros((1, 1), f32) - 0.05,
    }


def _reference(g, x, p):
    """Pure-JAX reference of the PyTorch forward (training-mode BN, with biases)."""
    N, F_g, H, W = g.shape
    F_l = x.shape[1]
    M = N * H * W
    gf = jnp.transpose(g, (0, 2, 3, 1)).reshape(M, F_g)
    xf = jnp.transpose(x, (0, 2, 3, 1)).reshape(M, F_l)

    def bn(y, gam, bet):
        mu = jnp.mean(y, axis=0, keepdims=True)
        var = jnp.mean((y - mu) ** 2, axis=0, keepdims=True)
        return (y - mu) / jnp.sqrt(var + EPS) * gam + bet

    g1 = bn(gf @ p["wg"] + p["bg"], p["gam_g"], p["bet_g"])
    x1 = bn(xf @ p["wx"] + p["bx"], p["gam_x"], p["bet_x"])
    s = jnp.maximum(g1 + x1, 0.0)
    psi = jax.nn.sigmoid(bn(s @ p["wp"] + p["bp"], p["gam_p"], p["bet_p"]))
    out = xf * psi
    return jnp.transpose(out.reshape(N, H, W, F_l), (0, 3, 1, 2))


if __name__ == "__main__":
    N, F_g, F_l, F_int, H, W = 2, 4, 4, 8, 16, 16
    key = jax.random.PRNGKey(0)
    kg, kx, kp = jax.random.split(key, 3)
    g = jax.random.normal(kg, (N, F_g, H, W), jnp.float32)
    x = jax.random.normal(kx, (N, F_l, H, W), jnp.float32)
    params = init_params(kp, F_g, F_l, F_int)

    out = attention_block(g, x, params)
    out = jax.block_until_ready(out)

    ref = _reference(g, x, params)
    assert out.shape == (N, F_l, H, W)
    assert jnp.max(jnp.abs(out - ref)) < 1e-4, "mismatch vs reference"

    print("KERNEL_OK")
</pallas_src>

<mosaic_0001>
module attributes {stable_mosaic.version = 11 : i64} {
  func.func @kernel(%arg0: i32, %arg1: memref<106xf32, #tpu.memory_space<smem>>, %arg2: memref<4x4x128xf32, #tpu.memory_space<vmem>>, %arg3: memref<4x4x128xf32, #tpu.memory_space<vmem>>, %arg4: memref<4x4x128xf32, #tpu.memory_space<vmem>>) attributes {dimension_semantics = [#tpu.dimension_semantics<arbitrary>], iteration_bounds = array<i64: 1>, scalar_prefetch = 0 : i64, scratch_operands = 0 : i64, tpu.core_type = #tpu.core_type<tc>, window_params = [{transform_indices = @transform_0, window_bounds = array<i64: 106>}, {pipeline_mode = #tpu.pipeline_mode<synchronous>, transform_indices = @transform_1, window_bounds = array<i64: 4, 4, 128>}, {pipeline_mode = #tpu.pipeline_mode<synchronous>, transform_indices = @transform_2, window_bounds = array<i64: 4, 4, 128>}, {pipeline_mode = #tpu.pipeline_mode<synchronous>, transform_indices = @transform_3, window_bounds = array<i64: 4, 4, 128>}]} {
    %c0 = arith.constant 0 : index
    %c0_0 = arith.constant 0 : index
    %c0_1 = arith.constant 0 : index
    %0 = vector.load %arg2[%c0, %c0_0, %c0_1] : memref<4x4x128xf32, #tpu.memory_space<vmem>>, vector<1x4x128xf32>
    %1 = vector.shape_cast %0 : vector<1x4x128xf32> to vector<4x128xf32>
    %c1 = arith.constant 1 : index
    %c0_2 = arith.constant 0 : index
    %c0_3 = arith.constant 0 : index
    %2 = vector.load %arg2[%c1, %c0_2, %c0_3] : memref<4x4x128xf32, #tpu.memory_space<vmem>>, vector<1x4x128xf32>
    %3 = vector.shape_cast %2 : vector<1x4x128xf32> to vector<4x128xf32>
    %c2 = arith.constant 2 : index
    %c0_4 = arith.constant 0 : index
    %c0_5 = arith.constant 0 : index
    %4 = vector.load %arg2[%c2, %c0_4, %c0_5] : memref<4x4x128xf32, #tpu.memory_space<vmem>>, vector<1x4x128xf32>
    %5 = vector.shape_cast %4 : vector<1x4x128xf32> to vector<4x128xf32>
    %c3 = arith.constant 3 : index
    %c0_6 = arith.constant 0 : index
    %c0_7 = arith.constant 0 : index
    %6 = vector.load %arg2[%c3, %c0_6, %c0_7] : memref<4x4x128xf32, #tpu.memory_space<vmem>>, vector<1x4x128xf32>
    %7 = vector.shape_cast %6 : vector<1x4x128xf32> to vector<4x128xf32>
    %c0_8 = arith.constant 0 : index
    %c0_9 = arith.constant 0 : index
    %c0_10 = arith.constant 0 : index
    %8 = vector.load %arg3[%c0_8, %c0_9, %c0_10] : memref<4x4x128xf32, #tpu.memory_space<vmem>>, vector<1x4x128xf32>
    %9 = vector.shape_cast %8 : vector<1x4x128xf32> to vector<4x128xf32>
    %c1_11 = arith.constant 1 : index
    %c0_12 = arith.constant 0 : index
    %c0_13 = arith.constant 0 : index
    %10 = vector.load %arg3[%c1_11, %c0_12, %c0_13] : memref<4x4x128xf32, #tpu.memory_space<vmem>>, vector<1x4x128xf32>
    %11 = vector.shape_cast %10 : vector<1x4x128xf32> to vector<4x128xf32>
    %c2_14 = arith.constant 2 : index
    %c0_15 = arith.constant 0 : index
    %c0_16 = arith.constant 0 : index
    %12 = vector.load %arg3[%c2_14, %c0_15, %c0_16] : memref<4x4x128xf32, #tpu.memory_space<vmem>>, vector<1x4x128xf32>
    %13 = vector.shape_cast %12 : vector<1x4x128xf32> to vector<4x128xf32>
    %c3_17 = arith.constant 3 : index
    %c0_18 = arith.constant 0 : index
    %c0_19 = arith.constant 0 : index
    %14 = vector.load %arg3[%c3_17, %c0_18, %c0_19] : memref<4x4x128xf32, #tpu.memory_space<vmem>>, vector<1x4x128xf32>
    %15 = vector.shape_cast %14 : vector<1x4x128xf32> to vector<4x128xf32>
    %16 = vector.shape_cast %1 : vector<4x128xf32> to vector<1x4x128xf32>
    %cst = arith.constant dense<0.000000e+00> : vector<1xf32>
    %17 = vector.multi_reduction <add>, %16, %cst [1, 2] : vector<1x4x128xf32> to vector<1xf32>
    %18 = vector.shape_cast %17 : vector<1xf32> to vector<1x1x1xf32>
    %19 = vector.extract %18[0, 0, 0] : f32 from vector<1x1x1xf32>
    %cst_20 = arith.constant 0.001953125 : f32
    %20 = arith.mulf %19, %cst_20 : f32
    %21 = vector.shape_cast %3 : vector<4x128xf32> to vector<1x4x128xf32>
    %cst_21 = arith.constant dense<0.000000e+00> : vector<1xf32>
    %22 = vector.multi_reduction <add>, %21, %cst_21 [1, 2] : vector<1x4x128xf32> to vector<1xf32>
    %23 = vector.shape_cast %22 : vector<1xf32> to vector<1x1x1xf32>
    %24 = vector.extract %23[0, 0, 0] : f32 from vector<1x1x1xf32>
    %cst_22 = arith.constant 0.001953125 : f32
    %25 = arith.mulf %24, %cst_22 : f32
    %26 = vector.shape_cast %5 : vector<4x128xf32> to vector<1x4x128xf32>
    %cst_23 = arith.constant dense<0.000000e+00> : vector<1xf32>
    %27 = vector.multi_reduction <add>, %26, %cst_23 [1, 2] : vector<1x4x128xf32> to vector<1xf32>
    %28 = vector.shape_cast %27 : vector<1xf32> to vector<1x1x1xf32>
    %29 = vector.extract %28[0, 0, 0] : f32 from vector<1x1x1xf32>
    %cst_24 = arith.constant 0.001953125 : f32
    %30 = arith.mulf %29, %cst_24 : f32
    %31 = vector.shape_cast %7 : vector<4x128xf32> to vector<1x4x128xf32>
    %cst_25 = arith.constant dense<0.000000e+00> : vector<1xf32>
    %32 = vector.multi_reduction <add>, %31, %cst_25 [1, 2] : vector<1x4x128xf32> to vector<1xf32>
    %33 = vector.shape_cast %32 : vector<1xf32> to vector<1x1x1xf32>
    %34 = vector.extract %33[0, 0, 0] : f32 from vector<1x1x1xf32>
    %cst_26 = arith.constant 0.001953125 : f32
    %35 = arith.mulf %34, %cst_26 : f32
    %36 = arith.mulf %1, %1 : vector<4x128xf32>
    %37 = vector.shape_cast %36 : vector<4x128xf32> to vector<1x4x128xf32>
    %cst_27 = arith.constant dense<0.000000e+00> : vector<1xf32>
    %38 = vector.multi_reduction <add>, %37, %cst_27 [1, 2] : vector<1x4x128xf32> to vector<1xf32>
    %39 = vector.shape_cast %38 : vector<1xf32> to vector<1x1x1xf32>
    %40 = vector.extract %39[0, 0, 0] : f32 from vector<1x1x1xf32>
    %cst_28 = arith.constant 0.001953125 : f32
    %41 = arith.mulf %40, %cst_28 : f32
    %42 = arith.mulf %1, %3 : vector<4x128xf32>
    %43 = vector.shape_cast %42 : vector<4x128xf32> to vector<1x4x128xf32>
    %cst_29 = arith.constant dense<0.000000e+00> : vector<1xf32>
    %44 = vector.multi_reduction <add>, %43, %cst_29 [1, 2] : vector<1x4x128xf32> to vector<1xf32>
    %45 = vector.shape_cast %44 : vector<1xf32> to vector<1x1x1xf32>
    %46 = vector.extract %45[0, 0, 0] : f32 from vector<1x1x1xf32>
    %cst_30 = arith.constant 0.001953125 : f32
    %47 = arith.mulf %46, %cst_30 : f32
    %48 = arith.mulf %1, %5 : vector<4x128xf32>
    %49 = vector.shape_cast %48 : vector<4x128xf32> to vector<1x4x128xf32>
    %cst_31 = arith.constant dense<0.000000e+00> : vector<1xf32>
    %50 = vector.multi_reduction <add>, %49, %cst_31 [1, 2] : vector<1x4x128xf32> to vector<1xf32>
    %51 = vector.shape_cast %50 : vector<1xf32> to vector<1x1x1xf32>
    %52 = vector.extract %51[0, 0, 0] : f32 from vector<1x1x1xf32>
    %cst_32 = arith.constant 0.001953125 : f32
    %53 = arith.mulf %52, %cst_32 : f32
    %54 = arith.mulf %1, %7 : vector<4x128xf32>
    %55 = vector.shape_cast %54 : vector<4x128xf32> to vector<1x4x128xf32>
    %cst_33 = arith.constant dense<0.000000e+00> : vector<1xf32>
    %56 = vector.multi_reduction <add>, %55, %cst_33 [1, 2] : vector<1x4x128xf32> to vector<1xf32>
    %57 = vector.shape_cast %56 : vector<1xf32> to vector<1x1x1xf32>
    %58 = vector.extract %57[0, 0, 0] : f32 from vector<1x1x1xf32>
    %cst_34 = arith.constant 0.001953125 : f32
    %59 = arith.mulf %58, %cst_34 : f32
    %60 = arith.mulf %3, %3 : vector<4x128xf32>
    %61 = vector.shape_cast %60 : vector<4x128xf32> to vector<1x4x128xf32>
    %cst_35 = arith.constant dense<0.000000e+00> : vector<1xf32>
    %62 = vector.multi_reduction <add>, %61, %cst_35 [1, 2] : vector<1x4x128xf32> to vector<1xf32>
    %63 = vector.shape_cast %62 : vector<1xf32> to vector<1x1x1xf32>
    %64 = vector.extract %63[0, 0, 0] : f32 from vector<1x1x1xf32>
    %cst_36 = arith.constant 0.001953125 : f32
    %65 = arith.mulf %64, %cst_36 : f32
    %66 = arith.mulf %3, %5 : vector<4x128xf32>
    %67 = vector.shape_cast %66 : vector<4x128xf32> to vector<1x4x128xf32>
    %cst_37 = arith.constant dense<0.000000e+00> : vector<1xf32>
    %68 = vector.multi_reduction <add>, %67, %cst_37 [1, 2] : vector<1x4x128xf32> to vector<1xf32>
    %69 = vector.shape_cast %68 : vector<1xf32> to vector<1x1x1xf32>
    %70 = vector.extract %69[0, 0, 0] : f32 from vector<1x1x1xf32>
    %cst_38 = arith.constant 0.001953125 : f32
    %71 = arith.mulf %70, %cst_38 : f32
    %72 = arith.mulf %3, %7 : vector<4x128xf32>
    %73 = vector.shape_cast %72 : vector<4x128xf32> to vector<1x4x128xf32>
    %cst_39 = arith.constant dense<0.000000e+00> : vector<1xf32>
    %74 = vector.multi_reduction <add>, %73, %cst_39 [1, 2] : vector<1x4x128xf32> to vector<1xf32>
    %75 = vector.shape_cast %74 : vector<1xf32> to vector<1x1x1xf32>
    %76 = vector.extract %75[0, 0, 0] : f32 from vector<1x1x1xf32>
    %cst_40 = arith.constant 0.001953125 : f32
    %77 = arith.mulf %76, %cst_40 : f32
    %78 = arith.mulf %5, %5 : vector<4x128xf32>
    %79 = vector.shape_cast %78 : vector<4x128xf32> to vector<1x4x128xf32>
    %cst_41 = arith.constant dense<0.000000e+00> : vector<1xf32>
    %80 = vector.multi_reduction <add>, %79, %cst_41 [1, 2] : vector<1x4x128xf32> to vector<1xf32>
    %81 = vector.shape_cast %80 : vector<1xf32> to vector<1x1x1xf32>
    %82 = vector.extract %81[0, 0, 0] : f32 from vector<1x1x1xf32>
    %cst_42 = arith.constant 0.001953125 : f32
    %83 = arith.mulf %82, %cst_42 : f32
    %84 = arith.mulf %5, %7 : vector<4x128xf32>
    %85 = vector.shape_cast %84 : vector<4x128xf32> to vector<1x4x128xf32>
    %cst_43 = arith.constant dense<0.000000e+00> : vector<1xf32>
    %86 = vector.multi_reduction <add>, %85, %cst_43 [1, 2] : vector<1x4x128xf32> to vector<1xf32>
    %87 = vector.shape_cast %86 : vector<1xf32> to vector<1x1x1xf32>
    %88 = vector.extract %87[0, 0, 0] : f32 from vector<1x1x1xf32>
    %cst_44 = arith.constant 0.001953125 : f32
    %89 = arith.mulf %88, %cst_44 : f32
    %90 = arith.mulf %7, %7 : vector<4x128xf32>
    %91 = vector.shape_cast %90 : vector<4x128xf32> to vector<1x4x128xf32>
    %cst_45 = arith.constant dense<0.000000e+00> : vector<1xf32>
    %92 = vector.multi_reduction <add>, %91, %cst_45 [1, 2] : vector<1x4x128xf32> to vector<1xf32>
    %93 = vector.shape_cast %92 : vector<1xf32> to vector<1x1x1xf32>
    %94 = vector.extract %93[0, 0, 0] : f32 from vector<1x1x1xf32>
    %cst_46 = arith.constant 0.001953125 : f32
    %95 = arith.mulf %94, %cst_46 : f32
    %96 = vector.shape_cast %9 : vector<4x128xf32> to vector<1x4x128xf32>
    %cst_47 = arith.constant dense<0.000000e+00> : vector<1xf32>
    %97 = vector.multi_reduction <add>, %96, %cst_47 [1, 2] : vector<1x4x128xf32> to vector<1xf32>
    %98 = vector.shape_cast %97 : vector<1xf32> to vector<1x1x1xf32>
    %99 = vector.extract %98[0, 0, 0] : f32 from vector<1x1x1xf32>
    %cst_48 = arith.constant 0.001953125 : f32
    %100 = arith.mulf %99, %cst_48 : f32
    %101 = vector.shape_cast %11 : vector<4x128xf32> to vector<1x4x128xf32>
    %cst_49 = arith.constant dense<0.000000e+00> : vector<1xf32>
    %102 = vector.multi_reduction <add>, %101, %cst_49 [1, 2] : vector<1x4x128xf32> to vector<1xf32>
    %103 = vector.shape_cast %102 : vector<1xf32> to vector<1x1x1xf32>
    %104 = vector.extract %103[0, 0, 0] : f32 from vector<1x1x1xf32>
    %cst_50 = arith.constant 0.001953125 : f32
    %105 = arith.mulf %104, %cst_50 : f32
    %106 = vector.shape_cast %13 : vector<4x128xf32> to vector<1x4x128xf32>
    %cst_51 = arith.constant dense<0.000000e+00> : vector<1xf32>
    %107 = vector.multi_reduction <add>, %106, %cst_51 [1, 2] : vector<1x4x128xf32> to vector<1xf32>
    %108 = vector.shape_cast %107 : vector<1xf32> to vector<1x1x1xf32>
    %109 = vector.extract %108[0, 0, 0] : f32 from vector<1x1x1xf32>
    %cst_52 = arith.constant 0.001953125 : f32
    %110 = arith.mulf %109, %cst_52 : f32
    %111 = vector.shape_cast %15 : vector<4x128xf32> to vector<1x4x128xf32>
    %cst_53 = arith.constant dense<0.000000e+00> : vector<1xf32>
    %112 = vector.multi_reduction <add>, %111, %cst_53 [1, 2] : vector<1x4x128xf32> to vector<1xf32>
    %113 = vector.shape_cast %112 : vector<1xf32> to vector<1x1x1xf32>
    %114 = vector.extract %113[0, 0, 0] : f32 from vector<1x1x1xf32>
    %cst_54 = arith.constant 0.001953125 : f32
    %115 = arith.mulf %114, %cst_54 : f32
    %116 = arith.mulf %9, %9 : vector<4x128xf32>
    %117 = vector.shape_cast %116 : vector<4x128xf32> to vector<1x4x128xf32>
    %cst_55 = arith.constant dense<0.000000e+00> : vector<1xf32>
    %118 = vector.multi_reduction <add>, %117, %cst_55 [1, 2] : vector<1x4x128xf32> to vector<1xf32>
    %119 = vector.shape_cast %118 : vector<1xf32> to vector<1x1x1xf32>
    %120 = vector.extract %119[0, 0, 0] : f32 from vector<1x1x1xf32>
    %cst_56 = arith.constant 0.001953125 : f32
    %121 = arith.mulf %120, %cst_56 : f32
    %122 = arith.mulf %9, %11 : vector<4x128xf32>
    %123 = vector.shape_cast %122 : vector<4x128xf32> to vector<1x4x128xf32>
    %cst_57 = arith.constant dense<0.000000e+00> : vector<1xf32>
    %124 = vector.multi_reduction <add>, %123, %cst_57 [1, 2] : vector<1x4x128xf32> to vector<1xf32>
    %125 = vector.shape_cast %124 : vector<1xf32> to vector<1x1x1xf32>
    %126 = vector.extract %125[0, 0, 0] : f32 from vector<1x1x1xf32>
    %cst_58 = arith.constant 0.001953125 : f32
    %127 = arith.mulf %126, %cst_58 : f32
    %128 = arith.mulf %9, %13 : vector<4x128xf32>
    %129 = vector.shape_cast %128 : vector<4x128xf32> to vector<1x4x128xf32>
    %cst_59 = arith.constant dense<0.000000e+00> : vector<1xf32>
    %130 = vector.multi_reduction <add>, %129, %cst_59 [1, 2] : vector<1x4x128xf32> to vector<1xf32>
    %131 = vector.shape_cast %130 : vector<1xf32> to vector<1x1x1xf32>
    %132 = vector.extract %131[0, 0, 0] : f32 from vector<1x1x1xf32>
    %cst_60 = arith.constant 0.001953125 : f32
    %133 = arith.mulf %132, %cst_60 : f32
    %134 = arith.mulf %9, %15 : vector<4x128xf32>
    %135 = vector.shape_cast %134 : vector<4x128xf32> to vector<1x4x128xf32>
    %cst_61 = arith.constant dense<0.000000e+00> : vector<1xf32>
    %136 = vector.multi_reduction <add>, %135, %cst_61 [1, 2] : vector<1x4x128xf32> to vector<1xf32>
    %137 = vector.shape_cast %136 : vector<1xf32> to vector<1x1x1xf32>
    %138 = vector.extract %137[0, 0, 0] : f32 from vector<1x1x1xf32>
    %cst_62 = arith.constant 0.001953125 : f32
    %139 = arith.mulf %138, %cst_62 : f32
    %140 = arith.mulf %11, %11 : vector<4x128xf32>
    %141 = vector.shape_cast %140 : vector<4x128xf32> to vector<1x4x128xf32>
    %cst_63 = arith.constant dense<0.000000e+00> : vector<1xf32>
    %142 = vector.multi_reduction <add>, %141, %cst_63 [1, 2] : vector<1x4x128xf32> to vector<1xf32>
    %143 = vector.shape_cast %142 : vector<1xf32> to vector<1x1x1xf32>
    %144 = vector.extract %143[0, 0, 0] : f32 from vector<1x1x1xf32>
    %cst_64 = arith.constant 0.001953125 : f32
    %145 = arith.mulf %144, %cst_64 : f32
    %146 = arith.mulf %11, %13 : vector<4x128xf32>
    %147 = vector.shape_cast %146 : vector<4x128xf32> to vector<1x4x128xf32>
    %cst_65 = arith.constant dense<0.000000e+00> : vector<1xf32>
    %148 = vector.multi_reduction <add>, %147, %cst_65 [1, 2] : vector<1x4x128xf32> to vector<1xf32>
    %149 = vector.shape_cast %148 : vector<1xf32> to vector<1x1x1xf32>
    %150 = vector.extract %149[0, 0, 0] : f32 from vector<1x1x1xf32>
    %cst_66 = arith.constant 0.001953125 : f32
    %151 = arith.mulf %150, %cst_66 : f32
    %152 = arith.mulf %11, %15 : vector<4x128xf32>
    %153 = vector.shape_cast %152 : vector<4x128xf32> to vector<1x4x128xf32>
    %cst_67 = arith.constant dense<0.000000e+00> : vector<1xf32>
    %154 = vector.multi_reduction <add>, %153, %cst_67 [1, 2] : vector<1x4x128xf32> to vector<1xf32>
    %155 = vector.shape_cast %154 : vector<1xf32> to vector<1x1x1xf32>
    %156 = vector.extract %155[0, 0, 0] : f32 from vector<1x1x1xf32>
    %cst_68 = arith.constant 0.001953125 : f32
    %157 = arith.mulf %156, %cst_68 : f32
    %158 = arith.mulf %13, %13 : vector<4x128xf32>
    %159 = vector.shape_cast %158 : vector<4x128xf32> to vector<1x4x128xf32>
    %cst_69 = arith.constant dense<0.000000e+00> : vector<1xf32>
    %160 = vector.multi_reduction <add>, %159, %cst_69 [1, 2] : vector<1x4x128xf32> to vector<1xf32>
    %161 = vector.shape_cast %160 : vector<1xf32> to vector<1x1x1xf32>
    %162 = vector.extract %161[0, 0, 0] : f32 from vector<1x1x1xf32>
    %cst_70 = arith.constant 0.001953125 : f32
    %163 = arith.mulf %162, %cst_70 : f32
    %164 = arith.mulf %13, %15 : vector<4x128xf32>
    %165 = vector.shape_cast %164 : vector<4x128xf32> to vector<1x4x128xf32>
    %cst_71 = arith.constant dense<0.000000e+00> : vector<1xf32>
    %166 = vector.multi_reduction <add>, %165, %cst_71 [1, 2] : vector<1x4x128xf32> to vector<1xf32>
    %167 = vector.shape_cast %166 : vector<1xf32> to vector<1x1x1xf32>
    %168 = vector.extract %167[0, 0, 0] : f32 from vector<1x1x1xf32>
    %cst_72 = arith.constant 0.001953125 : f32
    %169 = arith.mulf %168, %cst_72 : f32
    %170 = arith.mulf %15, %15 : vector<4x128xf32>
    %171 = vector.shape_cast %170 : vector<4x128xf32> to vector<1x4x128xf32>
    %cst_73 = arith.constant dense<0.000000e+00> : vector<1xf32>
    %172 = vector.multi_reduction <add>, %171, %cst_73 [1, 2] : vector<1x4x128xf32> to vector<1xf32>
    %173 = vector.shape_cast %172 : vector<1xf32> to vector<1x1x1xf32>
    %174 = vector.extract %173[0, 0, 0] : f32 from vector<1x1x1xf32>
    %cst_74 = arith.constant 0.001953125 : f32
    %175 = arith.mulf %174, %cst_74 : f32
    %c0_75 = arith.constant 0 : index
    %176 = memref.load %arg1[%c0_75] : memref<106xf32, #tpu.memory_space<smem>>
    %c8 = arith.constant 8 : index
    %177 = memref.load %arg1[%c8] : memref<106xf32, #tpu.memory_space<smem>>
    %c16 = arith.constant 16 : index
    %178 = memref.load %arg1[%c16] : memref<106xf32, #tpu.memory_space<smem>>
    %c24 = arith.constant 24 : index
    %179 = memref.load %arg1[%c24] : memref<106xf32, #tpu.memory_space<smem>>
    %c32 = arith.constant 32 : index
    %180 = memref.load %arg1[%c32] : memref<106xf32, #tpu.memory_space<smem>>
    %c40 = arith.constant 40 : index
    %181 = memref.load %arg1[%c40] : memref<106xf32, #tpu.memory_space<smem>>
    %c48 = arith.constant 48 : index
    %182 = memref.load %arg1[%c48] : memref<106xf32, #tpu.memory_space<smem>>
    %c56 = arith.constant 56 : index
    %183 = memref.load %arg1[%c56] : memref<106xf32, #tpu.memory_space<smem>>
    %184 = arith.mulf %176, %20 : f32
    %cst_76 = arith.constant 0.000000e+00 : f32
    %185 = arith.addf %cst_76, %184 : f32
    %186 = arith.mulf %177, %25 : f32
    %187 = arith.addf %185, %186 : f32
    %188 = arith.mulf %178, %30 : f32
    %189 = arith.addf %187, %188 : f32
    %190 = arith.mulf %179, %35 : f32
    %191 = arith.addf %189, %190 : f32
    %192 = arith.mulf %176, %176 : f32
    %193 = arith.mulf %192, %41 : f32
    %cst_77 = arith.constant 0.000000e+00 : f32
    %194 = arith.addf %cst_77, %193 : f32
    %cst_78 = arith.constant 2.000000e+00 : f32
    %195 = arith.mulf %cst_78, %176 : f32
    %196 = arith.mulf %195, %177 : f32
    %197 = arith.mulf %196, %47 : f32
    %198 = arith.addf %194, %197 : f32
    %cst_79 = arith.constant 2.000000e+00 : f32
    %199 = arith.mulf %cst_79, %176 : f32
    %200 = arith.mulf %199, %178 : f32
    %201 = arith.mulf %200, %53 : f32
    %202 = arith.addf %198, %201 : f32
    %cst_80 = arith.constant 2.000000e+00 : f32
    %203 = arith.mulf %cst_80, %176 : f32
    %204 = arith.mulf %203, %179 : f32
    %205 = arith.mulf %204, %59 : f32
    %206 = arith.addf %202, %205 : f32
    %207 = arith.mulf %177, %177 : f32
    %208 = arith.mulf %207, %65 : f32
    %209 = arith.addf %206, %208 : f32
    %cst_81 = arith.constant 2.000000e+00 : f32
    %210 = arith.mulf %cst_81, %177 : f32
    %211 = arith.mulf %210, %178 : f32
    %212 = arith.mulf %211, %71 : f32
    %213 = arith.addf %209, %212 : f32
    %cst_82 = arith.constant 2.000000e+00 : f32
    %214 = arith.mulf %cst_82, %177 : f32
    %215 = arith.mulf %214, %179 : f32
    %216 = arith.mulf %215, %77 : f32
    %217 = arith.addf %213, %216 : f32
    %218 = arith.mulf %178, %178 : f32
    %219 = arith.mulf %218, %83 : f32
    %220 = arith.addf %217, %219 : f32
    %cst_83 = arith.constant 2.000000e+00 : f32
    %221 = arith.mulf %cst_83, %178 : f32
    %222 = arith.mulf %221, %179 : f32
    %223 = arith.mulf %222, %89 : f32
    %224 = arith.addf %220, %223 : f32
    %225 = arith.mulf %179, %179 : f32
    %226 = arith.mulf %225, %95 : f32
    %227 = arith.addf %224, %226 : f32
    %228 = arith.mulf %191, %191 : f32
    %229 = arith.subf %227, %228 : f32
    %cst_84 = arith.constant 0.000000e+00 : f32
    %230 = arith.maximumf %229, %cst_84 : f32
    %c72 = arith.constant 72 : index
    %231 = memref.load %arg1[%c72] : memref<106xf32, #tpu.memory_space<smem>>
    %cst_85 = arith.constant 9.99999974E-6 : f32
    %232 = arith.addf %230, %cst_85 : f32
    %233 = math.rsqrt %232 : f32
    %234 = arith.mulf %231, %233 : f32
    %c80 = arith.constant 80 : index
    %235 = memref.load %arg1[%c80] : memref<106xf32, #tpu.memory_space<smem>>
    %236 = arith.mulf %191, %234 : f32
    %237 = arith.subf %235, %236 : f32
    %238 = arith.mulf %180, %100 : f32
    %cst_86 = arith.constant 0.000000e+00 : f32
    %239 = arith.addf %cst_86, %238 : f32
    %240 = arith.mulf %181, %105 : f32
    %241 = arith.addf %239, %240 : f32
    %242 = arith.mulf %182, %110 : f32
    %243 = arith.addf %241, %242 : f32
    %244 = arith.mulf %183, %115 : f32
    %245 = arith.addf %243, %244 : f32
    %246 = arith.mulf %180, %180 : f32
    %247 = arith.mulf %246, %121 : f32
    %cst_87 = arith.constant 0.000000e+00 : f32
    %248 = arith.addf %cst_87, %247 : f32
    %cst_88 = arith.constant 2.000000e+00 : f32
    %249 = arith.mulf %cst_88, %180 : f32
    %250 = arith.mulf %249, %181 : f32
    %251 = arith.mulf %250, %127 : f32
    %252 = arith.addf %248, %251 : f32
    %cst_89 = arith.constant 2.000000e+00 : f32
    %253 = arith.mulf %cst_89, %180 : f32
    %254 = arith.mulf %253, %182 : f32
    %255 = arith.mulf %254, %133 : f32
    %256 = arith.addf %252, %255 : f32
    %cst_90 = arith.constant 2.000000e+00 : f32
    %257 = arith.mulf %cst_90, %180 : f32
    %258 = arith.mulf %257, %183 : f32
    %259 = arith.mulf %258, %139 : f32
    %260 = arith.addf %256, %259 : f32
    %261 = arith.mulf %181, %181 : f32
    %262 = arith.mulf %261, %145 : f32
    %263 = arith.addf %260, %262 : f32
    %cst_91 = arith.constant 2.000000e+00 : f32
    %264 = arith.mulf %cst_91, %181 : f32
    %265 = arith.mulf %264, %182 : f32
    %266 = arith.mulf %265, %151 : f32
    %267 = arith.addf %263, %266 : f32
    %cst_92 = arith.constant 2.000000e+00 : f32
    %268 = arith.mulf %cst_92, %181 : f32
    %269 = arith.mulf %268, %183 : f32
    %270 = arith.mulf %269, %157 : f32
    %271 = arith.addf %267, %270 : f32
    %272 = arith.mulf %182, %182 : f32
    %273 = arith.mulf %272, %163 : f32
    %274 = arith.addf %271, %273 : f32
    %cst_93 = arith.constant 2.000000e+00 : f32
    %275 = arith.mulf %cst_93, %182 : f32
    %276 = arith.mulf %275, %183 : f32
    %277 = arith.mulf %276, %169 : f32
    %278 = arith.addf %274, %277 : f32
    %279 = arith.mulf %183, %183 : f32
    %280 = arith.mulf %279, %175 : f32
    %281 = arith.addf %278, %280 : f32
    %282 = arith.mulf %245, %245 : f32
    %283 = arith.subf %281, %282 : f32
    %cst_94 = arith.constant 0.000000e+00 : f32
    %284 = arith.maximumf %283, %cst_94 : f32
    %c88 = arith.constant 88 : index
    %285 = memref.load %arg1[%c88] : memref<106xf32, #tpu.memory_space<smem>>
    %cst_95 = arith.constant 9.99999974E-6 : f32
    %286 = arith.addf %284, %cst_95 : f32
    %287 = math.rsqrt %286 : f32
    %288 = arith.mulf %285, %287 : f32
    %c96 = arith.constant 96 : index
    %289 = memref.load %arg1[%c96] : memref<106xf32, #tpu.memory_space<smem>>
    %290 = arith.mulf %245, %288 : f32
    %291 = arith.subf %289, %290 : f32
    %292 = arith.mulf %176, %234 : f32
    %293 = vector.broadcast %292 : f32 to vector<4x128xf32>
    %294 = arith.mulf %1, %293 : vector<4x128xf32>
    %295 = arith.mulf %177, %234 : f32
    %296 = vector.broadcast %295 : f32 to vector<4x128xf32>
    %297 = arith.mulf %3, %296 : vector<4x128xf32>
    %298 = arith.addf %294, %297 : vector<4x128xf32>
    %299 = arith.mulf %178, %234 : f32
    %300 = vector.broadcast %299 : f32 to vector<4x128xf32>
    %301 = arith.mulf %5, %300 : vector<4x128xf32>
    %302 = arith.addf %298, %301 : vector<4x128xf32>
    %303 = arith.mulf %179, %234 : f32
    %304 = vector.broadcast %303 : f32 to vector<4x128xf32>
    %305 = arith.mulf %7, %304 : vector<4x128xf32>
    %306 = arith.addf %302, %305 : vector<4x128xf32>
    %307 = arith.mulf %180, %288 : f32
    %308 = vector.broadcast %307 : f32 to vector<4x128xf32>
    %309 = arith.mulf %9, %308 : vector<4x128xf32>
    %310 = arith.addf %306, %309 : vector<4x128xf32>
    %311 = arith.mulf %181, %288 : f32
    %312 = vector.broadcast %311 : f32 to vector<4x128xf32>
    %313 = arith.mulf %11, %312 : vector<4x128xf32>
    %314 = arith.addf %310, %313 : vector<4x128xf32>
    %315 = arith.mulf %182, %288 : f32
    %316 = vector.broadcast %315 : f32 to vector<4x128xf32>
    %317 = arith.mulf %13, %316 : vector<4x128xf32>
    %318 = arith.addf %314, %317 : vector<4x128xf32>
    %319 = arith.mulf %183, %288 : f32
    %320 = vector.broadcast %319 : f32 to vector<4x128xf32>
    %321 = arith.mulf %15, %320 : vector<4x128xf32>
    %322 = arith.addf %318, %321 : vector<4x128xf32>
    %323 = arith.addf %237, %291 : f32
    %324 = vector.broadcast %323 : f32 to vector<4x128xf32>
    %325 = arith.addf %322, %324 : vector<4x128xf32>
    %cst_96 = arith.constant 0.000000e+00 : f32
    %326 = vector.broadcast %cst_96 : f32 to vector<4x128xf32>
    %327 = arith.maximumf %325, %326 : vector<4x128xf32>
    %c64 = arith.constant 64 : index
    %328 = memref.load %arg1[%c64] : memref<106xf32, #tpu.memory_space<smem>>
    %329 = vector.broadcast %328 : f32 to vector<4x128xf32>
    %330 = arith.mulf %327, %329 : vector<4x128xf32>
    %c1_97 = arith.constant 1 : index
    %331 = memref.load %arg1[%c1_97] : memref<106xf32, #tpu.memory_space<smem>>
    %c9 = arith.constant 9 : index
    %332 = memref.load %arg1[%c9] : memref<106xf32, #tpu.memory_space<smem>>
    %c17 = arith.constant 17 : index
    %333 = memref.load %arg1[%c17] : memref<106xf32, #tpu.memory_space<smem>>
    %c25 = arith.constant 25 : index
    %334 = memref.load %arg1[%c25] : memref<106xf32, #tpu.memory_space<smem>>
    %c33 = arith.constant 33 : index
    %335 = memref.load %arg1[%c33] : memref<106xf32, #tpu.memory_space<smem>>
    %c41 = arith.constant 41 : index
    %336 = memref.load %arg1[%c41] : memref<106xf32, #tpu.memory_space<smem>>
    %c49 = arith.constant 49 : index
    %337 = memref.load %arg1[%c49] : memref<106xf32, #tpu.memory_space<smem>>
    %c57 = arith.constant 57 : index
    %338 = memref.load %arg1[%c57] : memref<106xf32, #tpu.memory_space<smem>>
    %339 = arith.mulf %331, %20 : f32
    %cst_98 = arith.constant 0.000000e+00 : f32
    %340 = arith.addf %cst_98, %339 : f32
    %341 = arith.mulf %332, %25 : f32
    %342 = arith.addf %340, %341 : f32
    %343 = arith.mulf %333, %30 : f32
    %344 = arith.addf %342, %343 : f32
    %345 = arith.mulf %334, %35 : f32
    %346 = arith.addf %344, %345 : f32
    %347 = arith.mulf %331, %331 : f32
    %348 = arith.mulf %347, %41 : f32
    %cst_99 = arith.constant 0.000000e+00 : f32
    %349 = arith.addf %cst_99, %348 : f32
    %cst_100 = arith.constant 2.000000e+00 : f32
    %350 = arith.mulf %cst_100, %331 : f32
    %351 = arith.mulf %350, %332 : f32
    %352 = arith.mulf %351, %47 : f32
    %353 = arith.addf %349, %352 : f32
    %cst_101 = arith.constant 2.000000e+00 : f32
    %354 = arith.mulf %cst_101, %331 : f32
    %355 = arith.mulf %354, %333 : f32
    %356 = arith.mulf %355, %53 : f32
    %357 = arith.addf %353, %356 : f32
    %cst_102 = arith.constant 2.000000e+00 : f32
    %358 = arith.mulf %cst_102, %331 : f32
    %359 = arith.mulf %358, %334 : f32
    %360 = arith.mulf %359, %59 : f32
    %361 = arith.addf %357, %360 : f32
    %362 = arith.mulf %332, %332 : f32
    %363 = arith.mulf %362, %65 : f32
    %364 = arith.addf %361, %363 : f32
    %cst_103 = arith.constant 2.000000e+00 : f32
    %365 = arith.mulf %cst_103, %332 : f32
    %366 = arith.mulf %365, %333 : f32
    %367 = arith.mulf %366, %71 : f32
    %368 = arith.addf %364, %367 : f32
    %cst_104 = arith.constant 2.000000e+00 : f32
    %369 = arith.mulf %cst_104, %332 : f32
    %370 = arith.mulf %369, %334 : f32
    %371 = arith.mulf %370, %77 : f32
    %372 = arith.addf %368, %371 : f32
    %373 = arith.mulf %333, %333 : f32
    %374 = arith.mulf %373, %83 : f32
    %375 = arith.addf %372, %374 : f32
    %cst_105 = arith.constant 2.000000e+00 : f32
    %376 = arith.mulf %cst_105, %333 : f32
    %377 = arith.mulf %376, %334 : f32
    %378 = arith.mulf %377, %89 : f32
    %379 = arith.addf %375, %378 : f32
    %380 = arith.mulf %334, %334 : f32
    %381 = arith.mulf %380, %95 : f32
    %382 = arith.addf %379, %381 : f32
    %383 = arith.mulf %346, %346 : f32
    %384 = arith.subf %382, %383 : f32
    %cst_106 = arith.constant 0.000000e+00 : f32
    %385 = arith.maximumf %384, %cst_106 : f32
    %c73 = arith.constant 73 : index
    %386 = memref.load %arg1[%c73] : memref<106xf32, #tpu.memory_space<smem>>
    %cst_107 = arith.constant 9.99999974E-6 : f32
    %387 = arith.addf %385, %cst_107 : f32
    %388 = math.rsqrt %387 : f32
    %389 = arith.mulf %386, %388 : f32
    %c81 = arith.constant 81 : index
    %390 = memref.load %arg1[%c81] : memref<106xf32, #tpu.memory_space<smem>>
    %391 = arith.mulf %346, %389 : f32
    %392 = arith.subf %390, %391 : f32
    %393 = arith.mulf %335, %100 : f32
    %cst_108 = arith.constant 0.000000e+00 : f32
    %394 = arith.addf %cst_108, %393 : f32
    %395 = arith.mulf %336, %105 : f32
    %396 = arith.addf %394, %395 : f32
    %397 = arith.mulf %337, %110 : f32
    %398 = arith.addf %396, %397 : f32
    %399 = arith.mulf %338, %115 : f32
    %400 = arith.addf %398, %399 : f32
    %401 = arith.mulf %335, %335 : f32
    %402 = arith.mulf %401, %121 : f32
    %cst_109 = arith.constant 0.000000e+00 : f32
    %403 = arith.addf %cst_109, %402 : f32
    %cst_110 = arith.constant 2.000000e+00 : f32
    %404 = arith.mulf %cst_110, %335 : f32
    %405 = arith.mulf %404, %336 : f32
    %406 = arith.mulf %405, %127 : f32
    %407 = arith.addf %403, %406 : f32
    %cst_111 = arith.constant 2.000000e+00 : f32
    %408 = arith.mulf %cst_111, %335 : f32
    %409 = arith.mulf %408, %337 : f32
    %410 = arith.mulf %409, %133 : f32
    %411 = arith.addf %407, %410 : f32
    %cst_112 = arith.constant 2.000000e+00 : f32
    %412 = arith.mulf %cst_112, %335 : f32
    %413 = arith.mulf %412, %338 : f32
    %414 = arith.mulf %413, %139 : f32
    %415 = arith.addf %411, %414 : f32
    %416 = arith.mulf %336, %336 : f32
    %417 = arith.mulf %416, %145 : f32
    %418 = arith.addf %415, %417 : f32
    %cst_113 = arith.constant 2.000000e+00 : f32
    %419 = arith.mulf %cst_113, %336 : f32
    %420 = arith.mulf %419, %337 : f32
    %421 = arith.mulf %420, %151 : f32
    %422 = arith.addf %418, %421 : f32
    %cst_114 = arith.constant 2.000000e+00 : f32
    %423 = arith.mulf %cst_114, %336 : f32
    %424 = arith.mulf %423, %338 : f32
    %425 = arith.mulf %424, %157 : f32
    %426 = arith.addf %422, %425 : f32
    %427 = arith.mulf %337, %337 : f32
    %428 = arith.mulf %427, %163 : f32
    %429 = arith.addf %426, %428 : f32
    %cst_115 = arith.constant 2.000000e+00 : f32
    %430 = arith.mulf %cst_115, %337 : f32
    %431 = arith.mulf %430, %338 : f32
    %432 = arith.mulf %431, %169 : f32
    %433 = arith.addf %429, %432 : f32
    %434 = arith.mulf %338, %338 : f32
    %435 = arith.mulf %434, %175 : f32
    %436 = arith.addf %433, %435 : f32
    %437 = arith.mulf %400, %400 : f32
    %438 = arith.subf %436, %437 : f32
    %cst_116 = arith.constant 0.000000e+00 : f32
    %439 = arith.maximumf %438, %cst_116 : f32
    %c89 = arith.constant 89 : index
    %440 = memref.load %arg1[%c89] : memref<106xf32, #tpu.memory_space<smem>>
    %cst_117 = arith.constant 9.99999974E-6 : f32
    %441 = arith.addf %439, %cst_117 : f32
    %442 = math.rsqrt %441 : f32
    %443 = arith.mulf %440, %442 : f32
    %c97 = arith.constant 97 : index
    %444 = memref.load %arg1[%c97] : memref<106xf32, #tpu.memory_space<smem>>
    %445 = arith.mulf %400, %443 : f32
    %446 = arith.subf %444, %445 : f32
    %447 = arith.mulf %331, %389 : f32
    %448 = vector.broadcast %447 : f32 to vector<4x128xf32>
    %449 = arith.mulf %1, %448 : vector<4x128xf32>
    %450 = arith.mulf %332, %389 : f32
    %451 = vector.broadcast %450 : f32 to vector<4x128xf32>
    %452 = arith.mulf %3, %451 : vector<4x128xf32>
    %453 = arith.addf %449, %452 : vector<4x128xf32>
    %454 = arith.mulf %333, %389 : f32
    %455 = vector.broadcast %454 : f32 to vector<4x128xf32>
    %456 = arith.mulf %5, %455 : vector<4x128xf32>
    %457 = arith.addf %453, %456 : vector<4x128xf32>
    %458 = arith.mulf %334, %389 : f32
    %459 = vector.broadcast %458 : f32 to vector<4x128xf32>
    %460 = arith.mulf %7, %459 : vector<4x128xf32>
    %461 = arith.addf %457, %460 : vector<4x128xf32>
    %462 = arith.mulf %335, %443 : f32
    %463 = vector.broadcast %462 : f32 to vector<4x128xf32>
    %464 = arith.mulf %9, %463 : vector<4x128xf32>
    %465 = arith.addf %461, %464 : vector<4x128xf32>
    %466 = arith.mulf %336, %443 : f32
    %467 = vector.broadcast %466 : f32 to vector<4x128xf32>
    %468 = arith.mulf %11, %467 : vector<4x128xf32>
    %469 = arith.addf %465, %468 : vector<4x128xf32>
    %470 = arith.mulf %337, %443 : f32
    %471 = vector.broadcast %470 : f32 to vector<4x128xf32>
    %472 = arith.mulf %13, %471 : vector<4x128xf32>
    %473 = arith.addf %469, %472 : vector<4x128xf32>
    %474 = arith.mulf %338, %443 : f32
    %475 = vector.broadcast %474 : f32 to vector<4x128xf32>
    %476 = arith.mulf %15, %475 : vector<4x128xf32>
    %477 = arith.addf %473, %476 : vector<4x128xf32>
    %478 = arith.addf %392, %446 : f32
    %479 = vector.broadcast %478 : f32 to vector<4x128xf32>
    %480 = arith.addf %477, %479 : vector<4x128xf32>
    %cst_118 = arith.constant 0.000000e+00 : f32
    %481 = vector.broadcast %cst_118 : f32 to vector<4x128xf32>
    %482 = arith.maximumf %480, %481 : vector<4x128xf32>
    %c65 = arith.constant 65 : index
    %483 = memref.load %arg1[%c65] : memref<106xf32, #tpu.memory_space<smem>>
    %484 = vector.broadcast %483 : f32 to vector<4x128xf32>
    %485 = arith.mulf %482, %484 : vector<4x128xf32>
    %486 = arith.addf %330, %485 : vector<4x128xf32>
    %c2_119 = arith.constant 2 : index
    %487 = memref.load %arg1[%c2_119] : memref<106xf32, #tpu.memory_space<smem>>
    %c10 = arith.constant 10 : index
    %488 = memref.load %arg1[%c10] : memref<106xf32, #tpu.memory_space<smem>>
    %c18 = arith.constant 18 : index
    %489 = memref.load %arg1[%c18] : memref<106xf32, #tpu.memory_space<smem>>
    %c26 = arith.constant 26 : index
    %490 = memref.load %arg1[%c26] : memref<106xf32, #tpu.memory_space<smem>>
    %c34 = arith.constant 34 : index
    %491 = memref.load %arg1[%c34] : memref<106xf32, #tpu.memory_space<smem>>
    %c42 = arith.constant 42 : index
    %492 = memref.load %arg1[%c42] : memref<106xf32, #tpu.memory_space<smem>>
    %c50 = arith.constant 50 : index
    %493 = memref.load %arg1[%c50] : memref<106xf32, #tpu.memory_space<smem>>
    %c58 = arith.constant 58 : index
    %494 = memref.load %arg1[%c58] : memref<106xf32, #tpu.memory_space<smem>>
    %495 = arith.mulf %487, %20 : f32
    %cst_120 = arith.constant 0.000000e+00 : f32
    %496 = arith.addf %cst_120, %495 : f32
    %497 = arith.mulf %488, %25 : f32
    %498 = arith.addf %496, %497 : f32
    %499 = arith.mulf %489, %30 : f32
    %500 = arith.addf %498, %499 : f32
    %501 = arith.mulf %490, %35 : f32
    %502 = arith.addf %500, %501 : f32
    %503 = arith.mulf %487, %487 : f32
    %504 = arith.mulf %503, %41 : f32
    %cst_121 = arith.constant 0.000000e+00 : f32
    %505 = arith.addf %cst_121, %504 : f32
    %cst_122 = arith.constant 2.000000e+00 : f32
    %506 = arith.mulf %cst_122, %487 : f32
    %507 = arith.mulf %506, %488 : f32
    %508 = arith.mulf %507, %47 : f32
    %509 = arith.addf %505, %508 : f32
    %cst_123 = arith.constant 2.000000e+00 : f32
    %510 = arith.mulf %cst_123, %487 : f32
    %511 = arith.mulf %510, %489 : f32
    %512 = arith.mulf %511, %53 : f32
    %513 = arith.addf %509, %512 : f32
    %cst_124 = arith.constant 2.000000e+00 : f32
    %514 = arith.mulf %cst_124, %487 : f32
    %515 = arith.mulf %514, %490 : f32
    %516 = arith.mulf %515, %59 : f32
    %517 = arith.addf %513, %516 : f32
    %518 = arith.mulf %488, %488 : f32
    %519 = arith.mulf %518, %65 : f32
    %520 = arith.addf %517, %519 : f32
    %cst_125 = arith.constant 2.000000e+00 : f32
    %521 = arith.mulf %cst_125, %488 : f32
    %522 = arith.mulf %521, %489 : f32
    %523 = arith.mulf %522, %71 : f32
    %524 = arith.addf %520, %523 : f32
    %cst_126 = arith.constant 2.000000e+00 : f32
    %525 = arith.mulf %cst_126, %488 : f32
    %526 = arith.mulf %525, %490 : f32
    %527 = arith.mulf %526, %77 : f32
    %528 = arith.addf %524, %527 : f32
    %529 = arith.mulf %489, %489 : f32
    %530 = arith.mulf %529, %83 : f32
    %531 = arith.addf %528, %530 : f32
    %cst_127 = arith.constant 2.000000e+00 : f32
    %532 = arith.mulf %cst_127, %489 : f32
    %533 = arith.mulf %532, %490 : f32
    %534 = arith.mulf %533, %89 : f32
    %535 = arith.addf %531, %534 : f32
    %536 = arith.mulf %490, %490 : f32
    %537 = arith.mulf %536, %95 : f32
    %538 = arith.addf %535, %537 : f32
    %539 = arith.mulf %502, %502 : f32
    %540 = arith.subf %538, %539 : f32
    %cst_128 = arith.constant 0.000000e+00 : f32
    %541 = arith.maximumf %540, %cst_128 : f32
    %c74 = arith.constant 74 : index
    %542 = memref.load %arg1[%c74] : memref<106xf32, #tpu.memory_space<smem>>
    %cst_129 = arith.constant 9.99999974E-6 : f32
    %543 = arith.addf %541, %cst_129 : f32
    %544 = math.rsqrt %543 : f32
    %545 = arith.mulf %542, %544 : f32
    %c82 = arith.constant 82 : index
    %546 = memref.load %arg1[%c82] : memref<106xf32, #tpu.memory_space<smem>>
    %547 = arith.mulf %502, %545 : f32
    %548 = arith.subf %546, %547 : f32
    %549 = arith.mulf %491, %100 : f32
    %cst_130 = arith.constant 0.000000e+00 : f32
    %550 = arith.addf %cst_130, %549 : f32
    %551 = arith.mulf %492, %105 : f32
    %552 = arith.addf %550, %551 : f32
    %553 = arith.mulf %493, %110 : f32
    %554 = arith.addf %552, %553 : f32
    %555 = arith.mulf %494, %115 : f32
    %556 = arith.addf %554, %555 : f32
    %557 = arith.mulf %491, %491 : f32
    %558 = arith.mulf %557, %121 : f32
    %cst_131 = arith.constant 0.000000e+00 : f32
    %559 = arith.addf %cst_131, %558 : f32
    %cst_132 = arith.constant 2.000000e+00 : f32
    %560 = arith.mulf %cst_132, %491 : f32
    %561 = arith.mulf %560, %492 : f32
    %562 = arith.mulf %561, %127 : f32
    %563 = arith.addf %559, %562 : f32
    %cst_133 = arith.constant 2.000000e+00 : f32
    %564 = arith.mulf %cst_133, %491 : f32
    %565 = arith.mulf %564, %493 : f32
    %566 = arith.mulf %565, %133 : f32
    %567 = arith.addf %563, %566 : f32
    %cst_134 = arith.constant 2.000000e+00 : f32
    %568 = arith.mulf %cst_134, %491 : f32
    %569 = arith.mulf %568, %494 : f32
    %570 = arith.mulf %569, %139 : f32
    %571 = arith.addf %567, %570 : f32
    %572 = arith.mulf %492, %492 : f32
    %573 = arith.mulf %572, %145 : f32
    %574 = arith.addf %571, %573 : f32
    %cst_135 = arith.constant 2.000000e+00 : f32
    %575 = arith.mulf %cst_135, %492 : f32
    %576 = arith.mulf %575, %493 : f32
    %577 = arith.mulf %576, %151 : f32
    %578 = arith.addf %574, %577 : f32
    %cst_136 = arith.constant 2.000000e+00 : f32
    %579 = arith.mulf %cst_136, %492 : f32
    %580 = arith.mulf %579, %494 : f32
    %581 = arith.mulf %580, %157 : f32
    %582 = arith.addf %578, %581 : f32
    %583 = arith.mulf %493, %493 : f32
    %584 = arith.mulf %583, %163 : f32
    %585 = arith.addf %582, %584 : f32
    %cst_137 = arith.constant 2.000000e+00 : f32
    %586 = arith.mulf %cst_137, %493 : f32
    %587 = arith.mulf %586, %494 : f32
    %588 = arith.mulf %587, %169 : f32
    %589 = arith.addf %585, %588 : f32
    %590 = arith.mulf %494, %494 : f32
    %591 = arith.mulf %590, %175 : f32
    %592 = arith.addf %589, %591 : f32
    %593 = arith.mulf %556, %556 : f32
    %594 = arith.subf %592, %593 : f32
    %cst_138 = arith.constant 0.000000e+00 : f32
    %595 = arith.maximumf %594, %cst_138 : f32
    %c90 = arith.constant 90 : index
    %596 = memref.load %arg1[%c90] : memref<106xf32, #tpu.memory_space<smem>>
    %cst_139 = arith.constant 9.99999974E-6 : f32
    %597 = arith.addf %595, %cst_139 : f32
    %598 = math.rsqrt %597 : f32
    %599 = arith.mulf %596, %598 : f32
    %c98 = arith.constant 98 : index
    %600 = memref.load %arg1[%c98] : memref<106xf32, #tpu.memory_space<smem>>
    %601 = arith.mulf %556, %599 : f32
    %602 = arith.subf %600, %601 : f32
    %603 = arith.mulf %487, %545 : f32
    %604 = vector.broadcast %603 : f32 to vector<4x128xf32>
    %605 = arith.mulf %1, %604 : vector<4x128xf32>
    %606 = arith.mulf %488, %545 : f32
    %607 = vector.broadcast %606 : f32 to vector<4x128xf32>
    %608 = arith.mulf %3, %607 : vector<4x128xf32>
    %609 = arith.addf %605, %608 : vector<4x128xf32>
    %610 = arith.mulf %489, %545 : f32
    %611 = vector.broadcast %610 : f32 to vector<4x128xf32>
    %612 = arith.mulf %5, %611 : vector<4x128xf32>
    %613 = arith.addf %609, %612 : vector<4x128xf32>
    %614 = arith.mulf %490, %545 : f32
    %615 = vector.broadcast %614 : f32 to vector<4x128xf32>
    %616 = arith.mulf %7, %615 : vector<4x128xf32>
    %617 = arith.addf %613, %616 : vector<4x128xf32>
    %618 = arith.mulf %491, %599 : f32
    %619 = vector.broadcast %618 : f32 to vector<4x128xf32>
    %620 = arith.mulf %9, %619 : vector<4x128xf32>
    %621 = arith.addf %617, %620 : vector<4x128xf32>
    %622 = arith.mulf %492, %599 : f32
    %623 = vector.broadcast %622 : f32 to vector<4x128xf32>
    %624 = arith.mulf %11, %623 : vector<4x128xf32>
    %625 = arith.addf %621, %624 : vector<4x128xf32>
    %626 = arith.mulf %493, %599 : f32
    %627 = vector.broadcast %626 : f32 to vector<4x128xf32>
    %628 = arith.mulf %13, %627 : vector<4x128xf32>
    %629 = arith.addf %625, %628 : vector<4x128xf32>
    %630 = arith.mulf %494, %599 : f32
    %631 = vector.broadcast %630 : f32 to vector<4x128xf32>
    %632 = arith.mulf %15, %631 : vector<4x128xf32>
    %633 = arith.addf %629, %632 : vector<4x128xf32>
    %634 = arith.addf %548, %602 : f32
    %635 = vector.broadcast %634 : f32 to vector<4x128xf32>
    %636 = arith.addf %633, %635 : vector<4x128xf32>
    %cst_140 = arith.constant 0.000000e+00 : f32
    %637 = vector.broadcast %cst_140 : f32 to vector<4x128xf32>
    %638 = arith.maximumf %636, %637 : vector<4x128xf32>
    %c66 = arith.constant 66 : index
    %639 = memref.load %arg1[%c66] : memref<106xf32, #tpu.memory_space<smem>>
    %640 = vector.broadcast %639 : f32 to vector<4x128xf32>
    %641 = arith.mulf %638, %640 : vector<4x128xf32>
    %642 = arith.addf %486, %641 : vector<4x128xf32>
    %c3_141 = arith.constant 3 : index
    %643 = memref.load %arg1[%c3_141] : memref<106xf32, #tpu.memory_space<smem>>
    %c11 = arith.constant 11 : index
    %644 = memref.load %arg1[%c11] : memref<106xf32, #tpu.memory_space<smem>>
    %c19 = arith.constant 19 : index
    %645 = memref.load %arg1[%c19] : memref<106xf32, #tpu.memory_space<smem>>
    %c27 = arith.constant 27 : index
    %646 = memref.load %arg1[%c27] : memref<106xf32, #tpu.memory_space<smem>>
    %c35 = arith.constant 35 : index
    %647 = memref.load %arg1[%c35] : memref<106xf32, #tpu.memory_space<smem>>
    %c43 = arith.constant 43 : index
    %648 = memref.load %arg1[%c43] : memref<106xf32, #tpu.memory_space<smem>>
    %c51 = arith.constant 51 : index
    %649 = memref.load %arg1[%c51] : memref<106xf32, #tpu.memory_space<smem>>
    %c59 = arith.constant 59 : index
    %650 = memref.load %arg1[%c59] : memref<106xf32, #tpu.memory_space<smem>>
    %651 = arith.mulf %643, %20 : f32
    %cst_142 = arith.constant 0.000000e+00 : f32
    %652 = arith.addf %cst_142, %651 : f32
    %653 = arith.mulf %644, %25 : f32
    %654 = arith.addf %652, %653 : f32
    %655 = arith.mulf %645, %30 : f32
    %656 = arith.addf %654, %655 : f32
    %657 = arith.mulf %646, %35 : f32
    %658 = arith.addf %656, %657 : f32
    %659 = arith.mulf %643, %643 : f32
    %660 = arith.mulf %659, %41 : f32
    %cst_143 = arith.constant 0.000000e+00 : f32
    %661 = arith.addf %cst_143, %660 : f32
    %cst_144 = arith.constant 2.000000e+00 : f32
    %662 = arith.mulf %cst_144, %643 : f32
    %663 = arith.mulf %662, %644 : f32
    %664 = arith.mulf %663, %47 : f32
    %665 = arith.addf %661, %664 : f32
    %cst_145 = arith.constant 2.000000e+00 : f32
    %666 = arith.mulf %cst_145, %643 : f32
    %667 = arith.mulf %666, %645 : f32
    %668 = arith.mulf %667, %53 : f32
    %669 = arith.addf %665, %668 : f32
    %cst_146 = arith.constant 2.000000e+00 : f32
    %670 = arith.mulf %cst_146, %643 : f32
    %671 = arith.mulf %670, %646 : f32
    %672 = arith.mulf %671, %59 : f32
    %673 = arith.addf %669, %672 : f32
    %674 = arith.mulf %644, %644 : f32
    %675 = arith.mulf %674, %65 : f32
    %676 = arith.addf %673, %675 : f32
    %cst_147 = arith.constant 2.000000e+00 : f32
    %677 = arith.mulf %cst_147, %644 : f32
    %678 = arith.mulf %677, %645 : f32
    %679 = arith.mulf %678, %71 : f32
    %680 = arith.addf %676, %679 : f32
    %cst_148 = arith.constant 2.000000e+00 : f32
    %681 = arith.mulf %cst_148, %644 : f32
    %682 = arith.mulf %681, %646 : f32
    %683 = arith.mulf %682, %77 : f32
    %684 = arith.addf %680, %683 : f32
    %685 = arith.mulf %645, %645 : f32
    %686 = arith.mulf %685, %83 : f32
    %687 = arith.addf %684, %686 : f32
    %cst_149 = arith.constant 2.000000e+00 : f32
    %688 = arith.mulf %cst_149, %645 : f32
    %689 = arith.mulf %688, %646 : f32
    %690 = arith.mulf %689, %89 : f32
    %691 = arith.addf %687, %690 : f32
    %692 = arith.mulf %646, %646 : f32
    %693 = arith.mulf %692, %95 : f32
    %694 = arith.addf %691, %693 : f32
    %695 = arith.mulf %658, %658 : f32
    %696 = arith.subf %694, %695 : f32
    %cst_150 = arith.constant 0.000000e+00 : f32
    %697 = arith.maximumf %696, %cst_150 : f32
    %c75 = arith.constant 75 : index
    %698 = memref.load %arg1[%c75] : memref<106xf32, #tpu.memory_space<smem>>
    %cst_151 = arith.constant 9.99999974E-6 : f32
    %699 = arith.addf %697, %cst_151 : f32
    %700 = math.rsqrt %699 : f32
    %701 = arith.mulf %698, %700 : f32
    %c83 = arith.constant 83 : index
    %702 = memref.load %arg1[%c83] : memref<106xf32, #tpu.memory_space<smem>>
    %703 = arith.mulf %658, %701 : f32
    %704 = arith.subf %702, %703 : f32
    %705 = arith.mulf %647, %100 : f32
    %cst_152 = arith.constant 0.000000e+00 : f32
    %706 = arith.addf %cst_152, %705 : f32
    %707 = arith.mulf %648, %105 : f32
    %708 = arith.addf %706, %707 : f32
    %709 = arith.mulf %649, %110 : f32
    %710 = arith.addf %708, %709 : f32
    %711 = arith.mulf %650, %115 : f32
    %712 = arith.addf %710, %711 : f32
    %713 = arith.mulf %647, %647 : f32
    %714 = arith.mulf %713, %121 : f32
    %cst_153 = arith.constant 0.000000e+00 : f32
    %715 = arith.addf %cst_153, %714 : f32
    %cst_154 = arith.constant 2.000000e+00 : f32
    %716 = arith.mulf %cst_154, %647 : f32
    %717 = arith.mulf %716, %648 : f32
    %718 = arith.mulf %717, %127 : f32
    %719 = arith.addf %715, %718 : f32
    %cst_155 = arith.constant 2.000000e+00 : f32
    %720 = arith.mulf %cst_155, %647 : f32
    %721 = arith.mulf %720, %649 : f32
    %722 = arith.mulf %721, %133 : f32
    %723 = arith.addf %719, %722 : f32
    %cst_156 = arith.constant 2.000000e+00 : f32
    %724 = arith.mulf %cst_156, %647 : f32
    %725 = arith.mulf %724, %650 : f32
    %726 = arith.mulf %725, %139 : f32
    %727 = arith.addf %723, %726 : f32
    %728 = arith.mulf %648, %648 : f32
    %729 = arith.mulf %728, %145 : f32
    %730 = arith.addf %727, %729 : f32
    %cst_157 = arith.constant 2.000000e+00 : f32
    %731 = arith.mulf %cst_157, %648 : f32
    %732 = arith.mulf %731, %649 : f32
    %733 = arith.mulf %732, %151 : f32
    %734 = arith.addf %730, %733 : f32
    %cst_158 = arith.constant 2.000000e+00 : f32
    %735 = arith.mulf %cst_158, %648 : f32
    %736 = arith.mulf %735, %650 : f32
    %737 = arith.mulf %736, %157 : f32
    %738 = arith.addf %734, %737 : f32
    %739 = arith.mulf %649, %649 : f32
    %740 = arith.mulf %739, %163 : f32
    %741 = arith.addf %738, %740 : f32
    %cst_159 = arith.constant 2.000000e+00 : f32
    %742 = arith.mulf %cst_159, %649 : f32
    %743 = arith.mulf %742, %650 : f32
    %744 = arith.mulf %743, %169 : f32
    %745 = arith.addf %741, %744 : f32
    %746 = arith.mulf %650, %650 : f32
    %747 = arith.mulf %746, %175 : f32
    %748 = arith.addf %745, %747 : f32
    %749 = arith.mulf %712, %712 : f32
    %750 = arith.subf %748, %749 : f32
    %cst_160 = arith.constant 0.000000e+00 : f32
    %751 = arith.maximumf %750, %cst_160 : f32
    %c91 = arith.constant 91 : index
    %752 = memref.load %arg1[%c91] : memref<106xf32, #tpu.memory_space<smem>>
    %cst_161 = arith.constant 9.99999974E-6 : f32
    %753 = arith.addf %751, %cst_161 : f32
    %754 = math.rsqrt %753 : f32
    %755 = arith.mulf %752, %754 : f32
    %c99 = arith.constant 99 : index
    %756 = memref.load %arg1[%c99] : memref<106xf32, #tpu.memory_space<smem>>
    %757 = arith.mulf %712, %755 : f32
    %758 = arith.subf %756, %757 : f32
    %759 = arith.mulf %643, %701 : f32
    %760 = vector.broadcast %759 : f32 to vector<4x128xf32>
    %761 = arith.mulf %1, %760 : vector<4x128xf32>
    %762 = arith.mulf %644, %701 : f32
    %763 = vector.broadcast %762 : f32 to vector<4x128xf32>
    %764 = arith.mulf %3, %763 : vector<4x128xf32>
    %765 = arith.addf %761, %764 : vector<4x128xf32>
    %766 = arith.mulf %645, %701 : f32
    %767 = vector.broadcast %766 : f32 to vector<4x128xf32>
    %768 = arith.mulf %5, %767 : vector<4x128xf32>
    %769 = arith.addf %765, %768 : vector<4x128xf32>
    %770 = arith.mulf %646, %701 : f32
    %771 = vector.broadcast %770 : f32 to vector<4x128xf32>
    %772 = arith.mulf %7, %771 : vector<4x128xf32>
    %773 = arith.addf %769, %772 : vector<4x128xf32>
    %774 = arith.mulf %647, %755 : f32
    %775 = vector.broadcast %774 : f32 to vector<4x128xf32>
    %776 = arith.mulf %9, %775 : vector<4x128xf32>
    %777 = arith.addf %773, %776 : vector<4x128xf32>
    %778 = arith.mulf %648, %755 : f32
    %779 = vector.broadcast %778 : f32 to vector<4x128xf32>
    %780 = arith.mulf %11, %779 : vector<4x128xf32>
    %781 = arith.addf %777, %780 : vector<4x128xf32>
    %782 = arith.mulf %649, %755 : f32
    %783 = vector.broadcast %782 : f32 to vector<4x128xf32>
    %784 = arith.mulf %13, %783 : vector<4x128xf32>
    %785 = arith.addf %781, %784 : vector<4x128xf32>
    %786 = arith.mulf %650, %755 : f32
    %787 = vector.broadcast %786 : f32 to vector<4x128xf32>
    %788 = arith.mulf %15, %787 : vector<4x128xf32>
    %789 = arith.addf %785, %788 : vector<4x128xf32>
    %790 = arith.addf %704, %758 : f32
    %791 = vector.broadcast %790 : f32 to vector<4x128xf32>
    %792 = arith.addf %789, %791 : vector<4x128xf32>
    %cst_162 = arith.constant 0.000000e+00 : f32
    %793 = vector.broadcast %cst_162 : f32 to vector<4x128xf32>
    %794 = arith.maximumf %792, %793 : vector<4x128xf32>
    %c67 = arith.constant 67 : index
    %795 = memref.load %arg1[%c67] : memref<106xf32, #tpu.memory_space<smem>>
    %796 = vector.broadcast %795 : f32 to vector<4x128xf32>
    %797 = arith.mulf %794, %796 : vector<4x128xf32>
    %798 = arith.addf %642, %797 : vector<4x128xf32>
    %c4 = arith.constant 4 : index
    %799 = memref.load %arg1[%c4] : memref<106xf32, #tpu.memory_space<smem>>
    %c12 = arith.constant 12 : index
    %800 = memref.load %arg1[%c12] : memref<106xf32, #tpu.memory_space<smem>>
    %c20 = arith.constant 20 : index
    %801 = memref.load %arg1[%c20] : memref<106xf32, #tpu.memory_space<smem>>
    %c28 = arith.constant 28 : index
    %802 = memref.load %arg1[%c28] : memref<106xf32, #tpu.memory_space<smem>>
    %c36 = arith.constant 36 : index
    %803 = memref.load %arg1[%c36] : memref<106xf32, #tpu.memory_space<smem>>
    %c44 = arith.constant 44 : index
    %804 = memref.load %arg1[%c44] : memref<106xf32, #tpu.memory_space<smem>>
    %c52 = arith.constant 52 : index
    %805 = memref.load %arg1[%c52] : memref<106xf32, #tpu.memory_space<smem>>
    %c60 = arith.constant 60 : index
    %806 = memref.load %arg1[%c60] : memref<106xf32, #tpu.memory_space<smem>>
    %807 = arith.mulf %799, %20 : f32
    %cst_163 = arith.constant 0.000000e+00 : f32
    %808 = arith.addf %cst_163, %807 : f32
    %809 = arith.mulf %800, %25 : f32
    %810 = arith.addf %808, %809 : f32
    %811 = arith.mulf %801, %30 : f32
    %812 = arith.addf %810, %811 : f32
    %813 = arith.mulf %802, %35 : f32
    %814 = arith.addf %812, %813 : f32
    %815 = arith.mulf %799, %799 : f32
    %816 = arith.mulf %815, %41 : f32
    %cst_164 = arith.constant 0.000000e+00 : f32
    %817 = arith.addf %cst_164, %816 : f32
    %cst_165 = arith.constant 2.000000e+00 : f32
    %818 = arith.mulf %cst_165, %799 : f32
    %819 = arith.mulf %818, %800 : f32
    %820 = arith.mulf %819, %47 : f32
    %821 = arith.addf %817, %820 : f32
    %cst_166 = arith.constant 2.000000e+00 : f32
    %822 = arith.mulf %cst_166, %799 : f32
    %823 = arith.mulf %822, %801 : f32
    %824 = arith.mulf %823, %53 : f32
    %825 = arith.addf %821, %824 : f32
    %cst_167 = arith.constant 2.000000e+00 : f32
    %826 = arith.mulf %cst_167, %799 : f32
    %827 = arith.mulf %826, %802 : f32
    %828 = arith.mulf %827, %59 : f32
    %829 = arith.addf %825, %828 : f32
    %830 = arith.mulf %800, %800 : f32
    %831 = arith.mulf %830, %65 : f32
    %832 = arith.addf %829, %831 : f32
    %cst_168 = arith.constant 2.000000e+00 : f32
    %833 = arith.mulf %cst_168, %800 : f32
    %834 = arith.mulf %833, %801 : f32
    %835 = arith.mulf %834, %71 : f32
    %836 = arith.addf %832, %835 : f32
    %cst_169 = arith.constant 2.000000e+00 : f32
    %837 = arith.mulf %cst_169, %800 : f32
    %838 = arith.mulf %837, %802 : f32
    %839 = arith.mulf %838, %77 : f32
    %840 = arith.addf %836, %839 : f32
    %841 = arith.mulf %801, %801 : f32
    %842 = arith.mulf %841, %83 : f32
    %843 = arith.addf %840, %842 : f32
    %cst_170 = arith.constant 2.000000e+00 : f32
    %844 = arith.mulf %cst_170, %801 : f32
    %845 = arith.mulf %844, %802 : f32
    %846 = arith.mulf %845, %89 : f32
    %847 = arith.addf %843, %846 : f32
    %848 = arith.mulf %802, %802 : f32
    %849 = arith.mulf %848, %95 : f32
    %850 = arith.addf %847, %849 : f32
    %851 = arith.mulf %814, %814 : f32
    %852 = arith.subf %850, %851 : f32
    %cst_171 = arith.constant 0.000000e+00 : f32
    %853 = arith.maximumf %852, %cst_171 : f32
    %c76 = arith.constant 76 : index
    %854 = memref.load %arg1[%c76] : memref<106xf32, #tpu.memory_space<smem>>
    %cst_172 = arith.constant 9.99999974E-6 : f32
    %855 = arith.addf %853, %cst_172 : f32
    %856 = math.rsqrt %855 : f32
    %857 = arith.mulf %854, %856 : f32
    %c84 = arith.constant 84 : index
    %858 = memref.load %arg1[%c84] : memref<106xf32, #tpu.memory_space<smem>>
    %859 = arith.mulf %814, %857 : f32
    %860 = arith.subf %858, %859 : f32
    %861 = arith.mulf %803, %100 : f32
    %cst_173 = arith.constant 0.000000e+00 : f32
    %862 = arith.addf %cst_173, %861 : f32
    %863 = arith.mulf %804, %105 : f32
    %864 = arith.addf %862, %863 : f32
    %865 = arith.mulf %805, %110 : f32
    %866 = arith.addf %864, %865 : f32
    %867 = arith.mulf %806, %115 : f32
    %868 = arith.addf %866, %867 : f32
    %869 = arith.mulf %803, %803 : f32
    %870 = arith.mulf %869, %121 : f32
    %cst_174 = arith.constant 0.000000e+00 : f32
    %871 = arith.addf %cst_174, %870 : f32
    %cst_175 = arith.constant 2.000000e+00 : f32
    %872 = arith.mulf %cst_175, %803 : f32
    %873 = arith.mulf %872, %804 : f32
    %874 = arith.mulf %873, %127 : f32
    %875 = arith.addf %871, %874 : f32
    %cst_176 = arith.constant 2.000000e+00 : f32
    %876 = arith.mulf %cst_176, %803 : f32
    %877 = arith.mulf %876, %805 : f32
    %878 = arith.mulf %877, %133 : f32
    %879 = arith.addf %875, %878 : f32
    %cst_177 = arith.constant 2.000000e+00 : f32
    %880 = arith.mulf %cst_177, %803 : f32
    %881 = arith.mulf %880, %806 : f32
    %882 = arith.mulf %881, %139 : f32
    %883 = arith.addf %879, %882 : f32
    %884 = arith.mulf %804, %804 : f32
    %885 = arith.mulf %884, %145 : f32
    %886 = arith.addf %883, %885 : f32
    %cst_178 = arith.constant 2.000000e+00 : f32
    %887 = arith.mulf %cst_178, %804 : f32
    %888 = arith.mulf %887, %805 : f32
    %889 = arith.mulf %888, %151 : f32
    %890 = arith.addf %886, %889 : f32
    %cst_179 = arith.constant 2.000000e+00 : f32
    %891 = arith.mulf %cst_179, %804 : f32
    %892 = arith.mulf %891, %806 : f32
    %893 = arith.mulf %892, %157 : f32
    %894 = arith.addf %890, %893 : f32
    %895 = arith.mulf %805, %805 : f32
    %896 = arith.mulf %895, %163 : f32
    %897 = arith.addf %894, %896 : f32
    %cst_180 = arith.constant 2.000000e+00 : f32
    %898 = arith.mulf %cst_180, %805 : f32
    %899 = arith.mulf %898, %806 : f32
    %900 = arith.mulf %899, %169 : f32
    %901 = arith.addf %897, %900 : f32
    %902 = arith.mulf %806, %806 : f32
    %903 = arith.mulf %902, %175 : f32
    %904 = arith.addf %901, %903 : f32
    %905 = arith.mulf %868, %868 : f32
    %906 = arith.subf %904, %905 : f32
    %cst_181 = arith.constant 0.000000e+00 : f32
    %907 = arith.maximumf %906, %cst_181 : f32
    %c92 = arith.constant 92 : index
    %908 = memref.load %arg1[%c92] : memref<106xf32, #tpu.memory_space<smem>>
    %cst_182 = arith.constant 9.99999974E-6 : f32
    %909 = arith.addf %907, %cst_182 : f32
    %910 = math.rsqrt %909 : f32
    %911 = arith.mulf %908, %910 : f32
    %c100 = arith.constant 100 : index
    %912 = memref.load %arg1[%c100] : memref<106xf32, #tpu.memory_space<smem>>
    %913 = arith.mulf %868, %911 : f32
    %914 = arith.subf %912, %913 : f32
    %915 = arith.mulf %799, %857 : f32
    %916 = vector.broadcast %915 : f32 to vector<4x128xf32>
    %917 = arith.mulf %1, %916 : vector<4x128xf32>
    %918 = arith.mulf %800, %857 : f32
    %919 = vector.broadcast %918 : f32 to vector<4x128xf32>
    %920 = arith.mulf %3, %919 : vector<4x128xf32>
    %921 = arith.addf %917, %920 : vector<4x128xf32>
    %922 = arith.mulf %801, %857 : f32
    %923 = vector.broadcast %922 : f32 to vector<4x128xf32>
    %924 = arith.mulf %5, %923 : vector<4x128xf32>
    %925 = arith.addf %921, %924 : vector<4x128xf32>
    %926 = arith.mulf %802, %857 : f32
    %927 = vector.broadcast %926 : f32 to vector<4x128xf32>
    %928 = arith.mulf %7, %927 : vector<4x128xf32>
    %929 = arith.addf %925, %928 : vector<4x128xf32>
    %930 = arith.mulf %803, %911 : f32
    %931 = vector.broadcast %930 : f32 to vector<4x128xf32>
    %932 = arith.mulf %9, %931 : vector<4x128xf32>
    %933 = arith.addf %929, %932 : vector<4x128xf32>
    %934 = arith.mulf %804, %911 : f32
    %935 = vector.broadcast %934 : f32 to vector<4x128xf32>
    %936 = arith.mulf %11, %935 : vector<4x128xf32>
    %937 = arith.addf %933, %936 : vector<4x128xf32>
    %938 = arith.mulf %805, %911 : f32
    %939 = vector.broadcast %938 : f32 to vector<4x128xf32>
    %940 = arith.mulf %13, %939 : vector<4x128xf32>
    %941 = arith.addf %937, %940 : vector<4x128xf32>
    %942 = arith.mulf %806, %911 : f32
    %943 = vector.broadcast %942 : f32 to vector<4x128xf32>
    %944 = arith.mulf %15, %943 : vector<4x128xf32>
    %945 = arith.addf %941, %944 : vector<4x128xf32>
    %946 = arith.addf %860, %914 : f32
    %947 = vector.broadcast %946 : f32 to vector<4x128xf32>
    %948 = arith.addf %945, %947 : vector<4x128xf32>
    %cst_183 = arith.constant 0.000000e+00 : f32
    %949 = vector.broadcast %cst_183 : f32 to vector<4x128xf32>
    %950 = arith.maximumf %948, %949 : vector<4x128xf32>
    %c68 = arith.constant 68 : index
    %951 = memref.load %arg1[%c68] : memref<106xf32, #tpu.memory_space<smem>>
    %952 = vector.broadcast %951 : f32 to vector<4x128xf32>
    %953 = arith.mulf %950, %952 : vector<4x128xf32>
    %954 = arith.addf %798, %953 : vector<4x128xf32>
    %c5 = arith.constant 5 : index
    %955 = memref.load %arg1[%c5] : memref<106xf32, #tpu.memory_space<smem>>
    %c13 = arith.constant 13 : index
    %956 = memref.load %arg1[%c13] : memref<106xf32, #tpu.memory_space<smem>>
    %c21 = arith.constant 21 : index
    %957 = memref.load %arg1[%c21] : memref<106xf32, #tpu.memory_space<smem>>
    %c29 = arith.constant 29 : index
    %958 = memref.load %arg1[%c29] : memref<106xf32, #tpu.memory_space<smem>>
    %c37 = arith.constant 37 : index
    %959 = memref.load %arg1[%c37] : memref<106xf32, #tpu.memory_space<smem>>
    %c45 = arith.constant 45 : index
    %960 = memref.load %arg1[%c45] : memref<106xf32, #tpu.memory_space<smem>>
    %c53 = arith.constant 53 : index
    %961 = memref.load %arg1[%c53] : memref<106xf32, #tpu.memory_space<smem>>
    %c61 = arith.constant 61 : index
    %962 = memref.load %arg1[%c61] : memref<106xf32, #tpu.memory_space<smem>>
    %963 = arith.mulf %955, %20 : f32
    %cst_184 = arith.constant 0.000000e+00 : f32
    %964 = arith.addf %cst_184, %963 : f32
    %965 = arith.mulf %956, %25 : f32
    %966 = arith.addf %964, %965 : f32
    %967 = arith.mulf %957, %30 : f32
    %968 = arith.addf %966, %967 : f32
    %969 = arith.mulf %958, %35 : f32
    %970 = arith.addf %968, %969 : f32
    %971 = arith.mulf %955, %955 : f32
    %972 = arith.mulf %971, %41 : f32
    %cst_185 = arith.constant 0.000000e+00 : f32
    %973 = arith.addf %cst_185, %972 : f32
    %cst_186 = arith.constant 2.000000e+00 : f32
    %974 = arith.mulf %cst_186, %955 : f32
    %975 = arith.mulf %974, %956 : f32
    %976 = arith.mulf %975, %47 : f32
    %977 = arith.addf %973, %976 : f32
    %cst_187 = arith.constant 2.000000e+00 : f32
    %978 = arith.mulf %cst_187, %955 : f32
    %979 = arith.mulf %978, %957 : f32
    %980 = arith.mulf %979, %53 : f32
    %981 = arith.addf %977, %980 : f32
    %cst_188 = arith.constant 2.000000e+00 : f32
    %982 = arith.mulf %cst_188, %955 : f32
    %983 = arith.mulf %982, %958 : f32
    %984 = arith.mulf %983, %59 : f32
    %985 = arith.addf %981, %984 : f32
    %986 = arith.mulf %956, %956 : f32
    %987 = arith.mulf %986, %65 : f32
    %988 = arith.addf %985, %987 : f32
    %cst_189 = arith.constant 2.000000e+00 : f32
    %989 = arith.mulf %cst_189, %956 : f32
    %990 = arith.mulf %989, %957 : f32
    %991 = arith.mulf %990, %71 : f32
    %992 = arith.addf %988, %991 : f32
    %cst_190 = arith.constant 2.000000e+00 : f32
    %993 = arith.mulf %cst_190, %956 : f32
    %994 = arith.mulf %993, %958 : f32
    %995 = arith.mulf %994, %77 : f32
    %996 = arith.addf %992, %995 : f32
    %997 = arith.mulf %957, %957 : f32
    %998 = arith.mulf %997, %83 : f32
    %999 = arith.addf %996, %998 : f32
    %cst_191 = arith.constant 2.000000e+00 : f32
    %1000 = arith.mulf %cst_191, %957 : f32
    %1001 = arith.mulf %1000, %958 : f32
    %1002 = arith.mulf %1001, %89 : f32
    %1003 = arith.addf %999, %1002 : f32
    %1004 = arith.mulf %958, %958 : f32
    %1005 = arith.mulf %1004, %95 : f32
    %1006 = arith.addf %1003, %1005 : f32
    %1007 = arith.mulf %970, %970 : f32
    %1008 = arith.subf %1006, %1007 : f32
    %cst_192 = arith.constant 0.000000e+00 : f32
    %1009 = arith.maximumf %1008, %cst_192 : f32
    %c77 = arith.constant 77 : index
    %1010 = memref.load %arg1[%c77] : memref<106xf32, #tpu.memory_space<smem>>
    %cst_193 = arith.constant 9.99999974E-6 : f32
    %1011 = arith.addf %1009, %cst_193 : f32
    %1012 = math.rsqrt %1011 : f32
    %1013 = arith.mulf %1010, %1012 : f32
    %c85 = arith.constant 85 : index
    %1014 = memref.load %arg1[%c85] : memref<106xf32, #tpu.memory_space<smem>>
    %1015 = arith.mulf %970, %1013 : f32
    %1016 = arith.subf %1014, %1015 : f32
    %1017 = arith.mulf %959, %100 : f32
    %cst_194 = arith.constant 0.000000e+00 : f32
    %1018 = arith.addf %cst_194, %1017 : f32
    %1019 = arith.mulf %960, %105 : f32
    %1020 = arith.addf %1018, %1019 : f32
    %1021 = arith.mulf %961, %110 : f32
    %1022 = arith.addf %1020, %1021 : f32
    %1023 = arith.mulf %962, %115 : f32
    %1024 = arith.addf %1022, %1023 : f32
    %1025 = arith.mulf %959, %959 : f32
    %1026 = arith.mulf %1025, %121 : f32
    %cst_195 = arith.constant 0.000000e+00 : f32
    %1027 = arith.addf %cst_195, %1026 : f32
    %cst_196 = arith.constant 2.000000e+00 : f32
    %1028 = arith.mulf %cst_196, %959 : f32
    %1029 = arith.mulf %1028, %960 : f32
    %1030 = arith.mulf %1029, %127 : f32
    %1031 = arith.addf %1027, %1030 : f32
    %cst_197 = arith.constant 2.000000e+00 : f32
    %1032 = arith.mulf %cst_197, %959 : f32
    %1033 = arith.mulf %1032, %961 : f32
    %1034 = arith.mulf %1033, %133 : f32
    %1035 = arith.addf %1031, %1034 : f32
    %cst_198 = arith.constant 2.000000e+00 : f32
    %1036 = arith.mulf %cst_198, %959 : f32
    %1037 = arith.mulf %1036, %962 : f32
    %1038 = arith.mulf %1037, %139 : f32
    %1039 = arith.addf %1035, %1038 : f32
    %1040 = arith.mulf %960, %960 : f32
    %1041 = arith.mulf %1040, %145 : f32
    %1042 = arith.addf %1039, %1041 : f32
    %cst_199 = arith.constant 2.000000e+00 : f32
    %1043 = arith.mulf %cst_199, %960 : f32
    %1044 = arith.mulf %1043, %961 : f32
    %1045 = arith.mulf %1044, %151 : f32
    %1046 = arith.addf %1042, %1045 : f32
    %cst_200 = arith.constant 2.000000e+00 : f32
    %1047 = arith.mulf %cst_200, %960 : f32
    %1048 = arith.mulf %1047, %962 : f32
    %1049 = arith.mulf %1048, %157 : f32
    %1050 = arith.addf %1046, %1049 : f32
    %1051 = arith.mulf %961, %961 : f32
    %1052 = arith.mulf %1051, %163 : f32
    %1053 = arith.addf %1050, %1052 : f32
    %cst_201 = arith.constant 2.000000e+00 : f32
    %1054 = arith.mulf %cst_201, %961 : f32
    %1055 = arith.mulf %1054, %962 : f32
    %1056 = arith.mulf %1055, %169 : f32
    %1057 = arith.addf %1053, %1056 : f32
    %1058 = arith.mulf %962, %962 : f32
    %1059 = arith.mulf %1058, %175 : f32
    %1060 = arith.addf %1057, %1059 : f32
    %1061 = arith.mulf %1024, %1024 : f32
    %1062 = arith.subf %1060, %1061 : f32
    %cst_202 = arith.constant 0.000000e+00 : f32
    %1063 = arith.maximumf %1062, %cst_202 : f32
    %c93 = arith.constant 93 : index
    %1064 = memref.load %arg1[%c93] : memref<106xf32, #tpu.memory_space<smem>>
    %cst_203 = arith.constant 9.99999974E-6 : f32
    %1065 = arith.addf %1063, %cst_203 : f32
    %1066 = math.rsqrt %1065 : f32
    %1067 = arith.mulf %1064, %1066 : f32
    %c101 = arith.constant 101 : index
    %1068 = memref.load %arg1[%c101] : memref<106xf32, #tpu.memory_space<smem>>
    %1069 = arith.mulf %1024, %1067 : f32
    %1070 = arith.subf %1068, %1069 : f32
    %1071 = arith.mulf %955, %1013 : f32
    %1072 = vector.broadcast %1071 : f32 to vector<4x128xf32>
    %1073 = arith.mulf %1, %1072 : vector<4x128xf32>
    %1074 = arith.mulf %956, %1013 : f32
    %1075 = vector.broadcast %1074 : f32 to vector<4x128xf32>
    %1076 = arith.mulf %3, %1075 : vector<4x128xf32>
    %1077 = arith.addf %1073, %1076 : vector<4x128xf32>
    %1078 = arith.mulf %957, %1013 : f32
    %1079 = vector.broadcast %1078 : f32 to vector<4x128xf32>
    %1080 = arith.mulf %5, %1079 : vector<4x128xf32>
    %1081 = arith.addf %1077, %1080 : vector<4x128xf32>
    %1082 = arith.mulf %958, %1013 : f32
    %1083 = vector.broadcast %1082 : f32 to vector<4x128xf32>
    %1084 = arith.mulf %7, %1083 : vector<4x128xf32>
    %1085 = arith.addf %1081, %1084 : vector<4x128xf32>
    %1086 = arith.mulf %959, %1067 : f32
    %1087 = vector.broadcast %1086 : f32 to vector<4x128xf32>
    %1088 = arith.mulf %9, %1087 : vector<4x128xf32>
    %1089 = arith.addf %1085, %1088 : vector<4x128xf32>
    %1090 = arith.mulf %960, %1067 : f32
    %1091 = vector.broadcast %1090 : f32 to vector<4x128xf32>
    %1092 = arith.mulf %11, %1091 : vector<4x128xf32>
    %1093 = arith.addf %1089, %1092 : vector<4x128xf32>
    %1094 = arith.mulf %961, %1067 : f32
    %1095 = vector.broadcast %1094 : f32 to vector<4x128xf32>
    %1096 = arith.mulf %13, %1095 : vector<4x128xf32>
    %1097 = arith.addf %1093, %1096 : vector<4x128xf32>
    %1098 = arith.mulf %962, %1067 : f32
    %1099 = vector.broadcast %1098 : f32 to vector<4x128xf32>
    %1100 = arith.mulf %15, %1099 : vector<4x128xf32>
    %1101 = arith.addf %1097, %1100 : vector<4x128xf32>
    %1102 = arith.addf %1016, %1070 : f32
    %1103 = vector.broadcast %1102 : f32 to vector<4x128xf32>
    %1104 = arith.addf %1101, %1103 : vector<4x128xf32>
    %cst_204 = arith.constant 0.000000e+00 : f32
    %1105 = vector.broadcast %cst_204 : f32 to vector<4x128xf32>
    %1106 = arith.maximumf %1104, %1105 : vector<4x128xf32>
    %c69 = arith.constant 69 : index
    %1107 = memref.load %arg1[%c69] : memref<106xf32, #tpu.memory_space<smem>>
    %1108 = vector.broadcast %1107 : f32 to vector<4x128xf32>
    %1109 = arith.mulf %1106, %1108 : vector<4x128xf32>
    %1110 = arith.addf %954, %1109 : vector<4x128xf32>
    %c6 = arith.constant 6 : index
    %1111 = memref.load %arg1[%c6] : memref<106xf32, #tpu.memory_space<smem>>
    %c14 = arith.constant 14 : index
    %1112 = memref.load %arg1[%c14] : memref<106xf32, #tpu.memory_space<smem>>
    %c22 = arith.constant 22 : index
    %1113 = memref.load %arg1[%c22] : memref<106xf32, #tpu.memory_space<smem>>
    %c30 = arith.constant 30 : index
    %1114 = memref.load %arg1[%c30] : memref<106xf32, #tpu.memory_space<smem>>
    %c38 = arith.constant 38 : index
    %1115 = memref.load %arg1[%c38] : memref<106xf32, #tpu.memory_space<smem>>
    %c46 = arith.constant 46 : index
    %1116 = memref.load %arg1[%c46] : memref<106xf32, #tpu.memory_space<smem>>
    %c54 = arith.constant 54 : index
    %1117 = memref.load %arg1[%c54] : memref<106xf32, #tpu.memory_space<smem>>
    %c62 = arith.constant 62 : index
    %1118 = memref.load %arg1[%c62] : memref<106xf32, #tpu.memory_space<smem>>
    %1119 = arith.mulf %1111, %20 : f32
    %cst_205 = arith.constant 0.000000e+00 : f32
    %1120 = arith.addf %cst_205, %1119 : f32
    %1121 = arith.mulf %1112, %25 : f32
    %1122 = arith.addf %1120, %1121 : f32
    %1123 = arith.mulf %1113, %30 : f32
    %1124 = arith.addf %1122, %1123 : f32
    %1125 = arith.mulf %1114, %35 : f32
    %1126 = arith.addf %1124, %1125 : f32
    %1127 = arith.mulf %1111, %1111 : f32
    %1128 = arith.mulf %1127, %41 : f32
    %cst_206 = arith.constant 0.000000e+00 : f32
    %1129 = arith.addf %cst_206, %1128 : f32
    %cst_207 = arith.constant 2.000000e+00 : f32
    %1130 = arith.mulf %cst_207, %1111 : f32
    %1131 = arith.mulf %1130, %1112 : f32
    %1132 = arith.mulf %1131, %47 : f32
    %1133 = arith.addf %1129, %1132 : f32
    %cst_208 = arith.constant 2.000000e+00 : f32
    %1134 = arith.mulf %cst_208, %1111 : f32
    %1135 = arith.mulf %1134, %1113 : f32
    %1136 = arith.mulf %1135, %53 : f32
    %1137 = arith.addf %1133, %1136 : f32
    %cst_209 = arith.constant 2.000000e+00 : f32
    %1138 = arith.mulf %cst_209, %1111 : f32
    %1139 = arith.mulf %1138, %1114 : f32
    %1140 = arith.mulf %1139, %59 : f32
    %1141 = arith.addf %1137, %1140 : f32
    %1142 = arith.mulf %1112, %1112 : f32
    %1143 = arith.mulf %1142, %65 : f32
    %1144 = arith.addf %1141, %1143 : f32
    %cst_210 = arith.constant 2.000000e+00 : f32
    %1145 = arith.mulf %cst_210, %1112 : f32
    %1146 = arith.mulf %1145, %1113 : f32
    %1147 = arith.mulf %1146, %71 : f32
    %1148 = arith.addf %1144, %1147 : f32
    %cst_211 = arith.constant 2.000000e+00 : f32
    %1149 = arith.mulf %cst_211, %1112 : f32
    %1150 = arith.mulf %1149, %1114 : f32
    %1151 = arith.mulf %1150, %77 : f32
    %1152 = arith.addf %1148, %1151 : f32
    %1153 = arith.mulf %1113, %1113 : f32
    %1154 = arith.mulf %1153, %83 : f32
    %1155 = arith.addf %1152, %1154 : f32
    %cst_212 = arith.constant 2.000000e+00 : f32
    %1156 = arith.mulf %cst_212, %1113 : f32
    %1157 = arith.mulf %1156, %1114 : f32
    %1158 = arith.mulf %1157, %89 : f32
    %1159 = arith.addf %1155, %1158 : f32
    %1160 = arith.mulf %1114, %1114 : f32
    %1161 = arith.mulf %1160, %95 : f32
    %1162 = arith.addf %1159, %1161 : f32
    %1163 = arith.mulf %1126, %1126 : f32
    %1164 = arith.subf %1162, %1163 : f32
    %cst_213 = arith.constant 0.000000e+00 : f32
    %1165 = arith.maximumf %1164, %cst_213 : f32
    %c78 = arith.constant 78 : index
    %1166 = memref.load %arg1[%c78] : memref<106xf32, #tpu.memory_space<smem>>
    %cst_214 = arith.constant 9.99999974E-6 : f32
    %1167 = arith.addf %1165, %cst_214 : f32
    %1168 = math.rsqrt %1167 : f32
    %1169 = arith.mulf %1166, %1168 : f32
    %c86 = arith.constant 86 : index
    %1170 = memref.load %arg1[%c86] : memref<106xf32, #tpu.memory_space<smem>>
    %1171 = arith.mulf %1126, %1169 : f32
    %1172 = arith.subf %1170, %1171 : f32
    %1173 = arith.mulf %1115, %100 : f32
    %cst_215 = arith.constant 0.000000e+00 : f32
    %1174 = arith.addf %cst_215, %1173 : f32
    %1175 = arith.mulf %1116, %105 : f32
    %1176 = arith.addf %1174, %1175 : f32
    %1177 = arith.mulf %1117, %110 : f32
    %1178 = arith.addf %1176, %1177 : f32
    %1179 = arith.mulf %1118, %115 : f32
    %1180 = arith.addf %1178, %1179 : f32
    %1181 = arith.mulf %1115, %1115 : f32
    %1182 = arith.mulf %1181, %121 : f32
    %cst_216 = arith.constant 0.000000e+00 : f32
    %1183 = arith.addf %cst_216, %1182 : f32
    %cst_217 = arith.constant 2.000000e+00 : f32
    %1184 = arith.mulf %cst_217, %1115 : f32
    %1185 = arith.mulf %1184, %1116 : f32
    %1186 = arith.mulf %1185, %127 : f32
    %1187 = arith.addf %1183, %1186 : f32
    %cst_218 = arith.constant 2.000000e+00 : f32
    %1188 = arith.mulf %cst_218, %1115 : f32
    %1189 = arith.mulf %1188, %1117 : f32
    %1190 = arith.mulf %1189, %133 : f32
    %1191 = arith.addf %1187, %1190 : f32
    %cst_219 = arith.constant 2.000000e+00 : f32
    %1192 = arith.mulf %cst_219, %1115 : f32
    %1193 = arith.mulf %1192, %1118 : f32
    %1194 = arith.mulf %1193, %139 : f32
    %1195 = arith.addf %1191, %1194 : f32
    %1196 = arith.mulf %1116, %1116 : f32
    %1197 = arith.mulf %1196, %145 : f32
    %1198 = arith.addf %1195, %1197 : f32
    %cst_220 = arith.constant 2.000000e+00 : f32
    %1199 = arith.mulf %cst_220, %1116 : f32
    %1200 = arith.mulf %1199, %1117 : f32
    %1201 = arith.mulf %1200, %151 : f32
    %1202 = arith.addf %1198, %1201 : f32
    %cst_221 = arith.constant 2.000000e+00 : f32
    %1203 = arith.mulf %cst_221, %1116 : f32
    %1204 = arith.mulf %1203, %1118 : f32
    %1205 = arith.mulf %1204, %157 : f32
    %1206 = arith.addf %1202, %1205 : f32
    %1207 = arith.mulf %1117, %1117 : f32
    %1208 = arith.mulf %1207, %163 : f32
    %1209 = arith.addf %1206, %1208 : f32
    %cst_222 = arith.constant 2.000000e+00 : f32
    %1210 = arith.mulf %cst_222, %1117 : f32
    %1211 = arith.mulf %1210, %1118 : f32
    %1212 = arith.mulf %1211, %169 : f32
    %1213 = arith.addf %1209, %1212 : f32
    %1214 = arith.mulf %1118, %1118 : f32
    %1215 = arith.mulf %1214, %175 : f32
    %1216 = arith.addf %1213, %1215 : f32
    %1217 = arith.mulf %1180, %1180 : f32
    %1218 = arith.subf %1216, %1217 : f32
    %cst_223 = arith.constant 0.000000e+00 : f32
    %1219 = arith.maximumf %1218, %cst_223 : f32
    %c94 = arith.constant 94 : index
    %1220 = memref.load %arg1[%c94] : memref<106xf32, #tpu.memory_space<smem>>
    %cst_224 = arith.constant 9.99999974E-6 : f32
    %1221 = arith.addf %1219, %cst_224 : f32
    %1222 = math.rsqrt %1221 : f32
    %1223 = arith.mulf %1220, %1222 : f32
    %c102 = arith.constant 102 : index
    %1224 = memref.load %arg1[%c102] : memref<106xf32, #tpu.memory_space<smem>>
    %1225 = arith.mulf %1180, %1223 : f32
    %1226 = arith.subf %1224, %1225 : f32
    %1227 = arith.mulf %1111, %1169 : f32
    %1228 = vector.broadcast %1227 : f32 to vector<4x128xf32>
    %1229 = arith.mulf %1, %1228 : vector<4x128xf32>
    %1230 = arith.mulf %1112, %1169 : f32
    %1231 = vector.broadcast %1230 : f32 to vector<4x128xf32>
    %1232 = arith.mulf %3, %1231 : vector<4x128xf32>
    %1233 = arith.addf %1229, %1232 : vector<4x128xf32>
    %1234 = arith.mulf %1113, %1169 : f32
    %1235 = vector.broadcast %1234 : f32 to vector<4x128xf32>
    %1236 = arith.mulf %5, %1235 : vector<4x128xf32>
    %1237 = arith.addf %1233, %1236 : vector<4x128xf32>
    %1238 = arith.mulf %1114, %1169 : f32
    %1239 = vector.broadcast %1238 : f32 to vector<4x128xf32>
    %1240 = arith.mulf %7, %1239 : vector<4x128xf32>
    %1241 = arith.addf %1237, %1240 : vector<4x128xf32>
    %1242 = arith.mulf %1115, %1223 : f32
    %1243 = vector.broadcast %1242 : f32 to vector<4x128xf32>
    %1244 = arith.mulf %9, %1243 : vector<4x128xf32>
    %1245 = arith.addf %1241, %1244 : vector<4x128xf32>
    %1246 = arith.mulf %1116, %1223 : f32
    %1247 = vector.broadcast %1246 : f32 to vector<4x128xf32>
    %1248 = arith.mulf %11, %1247 : vector<4x128xf32>
    %1249 = arith.addf %1245, %1248 : vector<4x128xf32>
    %1250 = arith.mulf %1117, %1223 : f32
    %1251 = vector.broadcast %1250 : f32 to vector<4x128xf32>
    %1252 = arith.mulf %13, %1251 : vector<4x128xf32>
    %1253 = arith.addf %1249, %1252 : vector<4x128xf32>
    %1254 = arith.mulf %1118, %1223 : f32
    %1255 = vector.broadcast %1254 : f32 to vector<4x128xf32>
    %1256 = arith.mulf %15, %1255 : vector<4x128xf32>
    %1257 = arith.addf %1253, %1256 : vector<4x128xf32>
    %1258 = arith.addf %1172, %1226 : f32
    %1259 = vector.broadcast %1258 : f32 to vector<4x128xf32>
    %1260 = arith.addf %1257, %1259 : vector<4x128xf32>
    %cst_225 = arith.constant 0.000000e+00 : f32
    %1261 = vector.broadcast %cst_225 : f32 to vector<4x128xf32>
    %1262 = arith.maximumf %1260, %1261 : vector<4x128xf32>
    %c70 = arith.constant 70 : index
    %1263 = memref.load %arg1[%c70] : memref<106xf32, #tpu.memory_space<smem>>
    %1264 = vector.broadcast %1263 : f32 to vector<4x128xf32>
    %1265 = arith.mulf %1262, %1264 : vector<4x128xf32>
    %1266 = arith.addf %1110, %1265 : vector<4x128xf32>
    %c7 = arith.constant 7 : index
    %1267 = memref.load %arg1[%c7] : memref<106xf32, #tpu.memory_space<smem>>
    %c15 = arith.constant 15 : index
    %1268 = memref.load %arg1[%c15] : memref<106xf32, #tpu.memory_space<smem>>
    %c23 = arith.constant 23 : index
    %1269 = memref.load %arg1[%c23] : memref<106xf32, #tpu.memory_space<smem>>
    %c31 = arith.constant 31 : index
    %1270 = memref.load %arg1[%c31] : memref<106xf32, #tpu.memory_space<smem>>
    %c39 = arith.constant 39 : index
    %1271 = memref.load %arg1[%c39] : memref<106xf32, #tpu.memory_space<smem>>
    %c47 = arith.constant 47 : index
    %1272 = memref.load %arg1[%c47] : memref<106xf32, #tpu.memory_space<smem>>
    %c55 = arith.constant 55 : index
    %1273 = memref.load %arg1[%c55] : memref<106xf32, #tpu.memory_space<smem>>
    %c63 = arith.constant 63 : index
    %1274 = memref.load %arg1[%c63] : memref<106xf32, #tpu.memory_space<smem>>
    %1275 = arith.mulf %1267, %20 : f32
    %cst_226 = arith.constant 0.000000e+00 : f32
    %1276 = arith.addf %cst_226, %1275 : f32
    %1277 = arith.mulf %1268, %25 : f32
    %1278 = arith.addf %1276, %1277 : f32
    %1279 = arith.mulf %1269, %30 : f32
    %1280 = arith.addf %1278, %1279 : f32
    %1281 = arith.mulf %1270, %35 : f32
    %1282 = arith.addf %1280, %1281 : f32
    %1283 = arith.mulf %1267, %1267 : f32
    %1284 = arith.mulf %1283, %41 : f32
    %cst_227 = arith.constant 0.000000e+00 : f32
    %1285 = arith.addf %cst_227, %1284 : f32
    %cst_228 = arith.constant 2.000000e+00 : f32
    %1286 = arith.mulf %cst_228, %1267 : f32
    %1287 = arith.mulf %1286, %1268 : f32
    %1288 = arith.mulf %1287, %47 : f32
    %1289 = arith.addf %1285, %1288 : f32
    %cst_229 = arith.constant 2.000000e+00 : f32
    %1290 = arith.mulf %cst_229, %1267 : f32
    %1291 = arith.mulf %1290, %1269 : f32
    %1292 = arith.mulf %1291, %53 : f32
    %1293 = arith.addf %1289, %1292 : f32
    %cst_230 = arith.constant 2.000000e+00 : f32
    %1294 = arith.mulf %cst_230, %1267 : f32
    %1295 = arith.mulf %1294, %1270 : f32
    %1296 = arith.mulf %1295, %59 : f32
    %1297 = arith.addf %1293, %1296 : f32
    %1298 = arith.mulf %1268, %1268 : f32
    %1299 = arith.mulf %1298, %65 : f32
    %1300 = arith.addf %1297, %1299 : f32
    %cst_231 = arith.constant 2.000000e+00 : f32
    %1301 = arith.mulf %cst_231, %1268 : f32
    %1302 = arith.mulf %1301, %1269 : f32
    %1303 = arith.mulf %1302, %71 : f32
    %1304 = arith.addf %1300, %1303 : f32
    %cst_232 = arith.constant 2.000000e+00 : f32
    %1305 = arith.mulf %cst_232, %1268 : f32
    %1306 = arith.mulf %1305, %1270 : f32
    %1307 = arith.mulf %1306, %77 : f32
    %1308 = arith.addf %1304, %1307 : f32
    %1309 = arith.mulf %1269, %1269 : f32
    %1310 = arith.mulf %1309, %83 : f32
    %1311 = arith.addf %1308, %1310 : f32
    %cst_233 = arith.constant 2.000000e+00 : f32
    %1312 = arith.mulf %cst_233, %1269 : f32
    %1313 = arith.mulf %1312, %1270 : f32
    %1314 = arith.mulf %1313, %89 : f32
    %1315 = arith.addf %1311, %1314 : f32
    %1316 = arith.mulf %1270, %1270 : f32
    %1317 = arith.mulf %1316, %95 : f32
    %1318 = arith.addf %1315, %1317 : f32
    %1319 = arith.mulf %1282, %1282 : f32
    %1320 = arith.subf %1318, %1319 : f32
    %cst_234 = arith.constant 0.000000e+00 : f32
    %1321 = arith.maximumf %1320, %cst_234 : f32
    %c79 = arith.constant 79 : index
    %1322 = memref.load %arg1[%c79] : memref<106xf32, #tpu.memory_space<smem>>
    %cst_235 = arith.constant 9.99999974E-6 : f32
    %1323 = arith.addf %1321, %cst_235 : f32
    %1324 = math.rsqrt %1323 : f32
    %1325 = arith.mulf %1322, %1324 : f32
    %c87 = arith.constant 87 : index
    %1326 = memref.load %arg1[%c87] : memref<106xf32, #tpu.memory_space<smem>>
    %1327 = arith.mulf %1282, %1325 : f32
    %1328 = arith.subf %1326, %1327 : f32
    %1329 = arith.mulf %1271, %100 : f32
    %cst_236 = arith.constant 0.000000e+00 : f32
    %1330 = arith.addf %cst_236, %1329 : f32
    %1331 = arith.mulf %1272, %105 : f32
    %1332 = arith.addf %1330, %1331 : f32
    %1333 = arith.mulf %1273, %110 : f32
    %1334 = arith.addf %1332, %1333 : f32
    %1335 = arith.mulf %1274, %115 : f32
    %1336 = arith.addf %1334, %1335 : f32
    %1337 = arith.mulf %1271, %1271 : f32
    %1338 = arith.mulf %1337, %121 : f32
    %cst_237 = arith.constant 0.000000e+00 : f32
    %1339 = arith.addf %cst_237, %1338 : f32
    %cst_238 = arith.constant 2.000000e+00 : f32
    %1340 = arith.mulf %cst_238, %1271 : f32
    %1341 = arith.mulf %1340, %1272 : f32
    %1342 = arith.mulf %1341, %127 : f32
    %1343 = arith.addf %1339, %1342 : f32
    %cst_239 = arith.constant 2.000000e+00 : f32
    %1344 = arith.mulf %cst_239, %1271 : f32
    %1345 = arith.mulf %1344, %1273 : f32
    %1346 = arith.mulf %1345, %133 : f32
    %1347 = arith.addf %1343, %1346 : f32
    %cst_240 = arith.constant 2.000000e+00 : f32
    %1348 = arith.mulf %cst_240, %1271 : f32
    %1349 = arith.mulf %1348, %1274 : f32
    %1350 = arith.mulf %1349, %139 : f32
    %1351 = arith.addf %1347, %1350 : f32
    %1352 = arith.mulf %1272, %1272 : f32
    %1353 = arith.mulf %1352, %145 : f32
    %1354 = arith.addf %1351, %1353 : f32
    %cst_241 = arith.constant 2.000000e+00 : f32
    %1355 = arith.mulf %cst_241, %1272 : f32
    %1356 = arith.mulf %1355, %1273 : f32
    %1357 = arith.mulf %1356, %151 : f32
    %1358 = arith.addf %1354, %1357 : f32
    %cst_242 = arith.constant 2.000000e+00 : f32
    %1359 = arith.mulf %cst_242, %1272 : f32
    %1360 = arith.mulf %1359, %1274 : f32
    %1361 = arith.mulf %1360, %157 : f32
    %1362 = arith.addf %1358, %1361 : f32
    %1363 = arith.mulf %1273, %1273 : f32
    %1364 = arith.mulf %1363, %163 : f32
    %1365 = arith.addf %1362, %1364 : f32
    %cst_243 = arith.constant 2.000000e+00 : f32
    %1366 = arith.mulf %cst_243, %1273 : f32
    %1367 = arith.mulf %1366, %1274 : f32
    %1368 = arith.mulf %1367, %169 : f32
    %1369 = arith.addf %1365, %1368 : f32
    %1370 = arith.mulf %1274, %1274 : f32
    %1371 = arith.mulf %1370, %175 : f32
    %1372 = arith.addf %1369, %1371 : f32
    %1373 = arith.mulf %1336, %1336 : f32
    %1374 = arith.subf %1372, %1373 : f32
    %cst_244 = arith.constant 0.000000e+00 : f32
    %1375 = arith.maximumf %1374, %cst_244 : f32
    %c95 = arith.constant 95 : index
    %1376 = memref.load %arg1[%c95] : memref<106xf32, #tpu.memory_space<smem>>
    %cst_245 = arith.constant 9.99999974E-6 : f32
    %1377 = arith.addf %1375, %cst_245 : f32
    %1378 = math.rsqrt %1377 : f32
    %1379 = arith.mulf %1376, %1378 : f32
    %c103 = arith.constant 103 : index
    %1380 = memref.load %arg1[%c103] : memref<106xf32, #tpu.memory_space<smem>>
    %1381 = arith.mulf %1336, %1379 : f32
    %1382 = arith.subf %1380, %1381 : f32
    %1383 = arith.mulf %1267, %1325 : f32
    %1384 = vector.broadcast %1383 : f32 to vector<4x128xf32>
    %1385 = arith.mulf %1, %1384 : vector<4x128xf32>
    %1386 = arith.mulf %1268, %1325 : f32
    %1387 = vector.broadcast %1386 : f32 to vector<4x128xf32>
    %1388 = arith.mulf %3, %1387 : vector<4x128xf32>
    %1389 = arith.addf %1385, %1388 : vector<4x128xf32>
    %1390 = arith.mulf %1269, %1325 : f32
    %1391 = vector.broadcast %1390 : f32 to vector<4x128xf32>
    %1392 = arith.mulf %5, %1391 : vector<4x128xf32>
    %1393 = arith.addf %1389, %1392 : vector<4x128xf32>
    %1394 = arith.mulf %1270, %1325 : f32
    %1395 = vector.broadcast %1394 : f32 to vector<4x128xf32>
    %1396 = arith.mulf %7, %1395 : vector<4x128xf32>
    %1397 = arith.addf %1393, %1396 : vector<4x128xf32>
    %1398 = arith.mulf %1271, %1379 : f32
    %1399 = vector.broadcast %1398 : f32 to vector<4x128xf32>
    %1400 = arith.mulf %9, %1399 : vector<4x128xf32>
    %1401 = arith.addf %1397, %1400 : vector<4x128xf32>
    %1402 = arith.mulf %1272, %1379 : f32
    %1403 = vector.broadcast %1402 : f32 to vector<4x128xf32>
    %1404 = arith.mulf %11, %1403 : vector<4x128xf32>
    %1405 = arith.addf %1401, %1404 : vector<4x128xf32>
    %1406 = arith.mulf %1273, %1379 : f32
    %1407 = vector.broadcast %1406 : f32 to vector<4x128xf32>
    %1408 = arith.mulf %13, %1407 : vector<4x128xf32>
    %1409 = arith.addf %1405, %1408 : vector<4x128xf32>
    %1410 = arith.mulf %1274, %1379 : f32
    %1411 = vector.broadcast %1410 : f32 to vector<4x128xf32>
    %1412 = arith.mulf %15, %1411 : vector<4x128xf32>
    %1413 = arith.addf %1409, %1412 : vector<4x128xf32>
    %1414 = arith.addf %1328, %1382 : f32
    %1415 = vector.broadcast %1414 : f32 to vector<4x128xf32>
    %1416 = arith.addf %1413, %1415 : vector<4x128xf32>
    %cst_246 = arith.constant 0.000000e+00 : f32
    %1417 = vector.broadcast %cst_246 : f32 to vector<4x128xf32>
    %1418 = arith.maximumf %1416, %1417 : vector<4x128xf32>
    %c71 = arith.constant 71 : index
    %1419 = memref.load %arg1[%c71] : memref<106xf32, #tpu.memory_space<smem>>
    %1420 = vector.broadcast %1419 : f32 to vector<4x128xf32>
    %1421 = arith.mulf %1418, %1420 : vector<4x128xf32>
    %1422 = arith.addf %1266, %1421 : vector<4x128xf32>
    %1423 = vector.shape_cast %1422 : vector<4x128xf32> to vector<1x4x128xf32>
    %cst_247 = arith.constant dense<0.000000e+00> : vector<1xf32>
    %1424 = vector.multi_reduction <add>, %1423, %cst_247 [1, 2] : vector<1x4x128xf32> to vector<1xf32>
    %1425 = vector.shape_cast %1424 : vector<1xf32> to vector<1x1x1xf32>
    %1426 = vector.extract %1425[0, 0, 0] : f32 from vector<1x1x1xf32>
    %cst_248 = arith.constant 0.001953125 : f32
    %1427 = arith.mulf %1426, %cst_248 : f32
    %1428 = arith.mulf %1422, %1422 : vector<4x128xf32>
    %1429 = vector.shape_cast %1428 : vector<4x128xf32> to vector<1x4x128xf32>
    %cst_249 = arith.constant dense<0.000000e+00> : vector<1xf32>
    %1430 = vector.multi_reduction <add>, %1429, %cst_249 [1, 2] : vector<1x4x128xf32> to vector<1xf32>
    %1431 = vector.shape_cast %1430 : vector<1xf32> to vector<1x1x1xf32>
    %1432 = vector.extract %1431[0, 0, 0] : f32 from vector<1x1x1xf32>
    %cst_250 = arith.constant 0.001953125 : f32
    %1433 = arith.mulf %1432, %cst_250 : f32
    %1434 = arith.mulf %1427, %1427 : f32
    %1435 = arith.subf %1433, %1434 : f32
    %cst_251 = arith.constant 0.000000e+00 : f32
    %1436 = arith.maximumf %1435, %cst_251 : f32
    %c104 = arith.constant 104 : index
    %1437 = memref.load %arg1[%c104] : memref<106xf32, #tpu.memory_space<smem>>
    %cst_252 = arith.constant 9.99999974E-6 : f32
    %1438 = arith.addf %1436, %cst_252 : f32
    %1439 = math.rsqrt %1438 : f32
    %1440 = arith.mulf %1437, %1439 : f32
    %c105 = arith.constant 105 : index
    %1441 = memref.load %arg1[%c105] : memref<106xf32, #tpu.memory_space<smem>>
    %1442 = arith.mulf %1427, %1440 : f32
    %1443 = arith.subf %1441, %1442 : f32
    %1444 = vector.broadcast %1440 : f32 to vector<4x128xf32>
    %1445 = arith.mulf %1422, %1444 : vector<4x128xf32>
    %1446 = vector.broadcast %1443 : f32 to vector<4x128xf32>
    %1447 = arith.addf %1445, %1446 : vector<4x128xf32>
    %1448 = arith.negf %1447 : vector<4x128xf32>
    %1449 = math.exp %1448 : vector<4x128xf32>
    %cst_253 = arith.constant 1.000000e+00 : f32
    %1450 = vector.broadcast %cst_253 : f32 to vector<4x128xf32>
    %1451 = arith.addf %1450, %1449 : vector<4x128xf32>
    %1452 = arith.divf %1450, %1451 : vector<4x128xf32>
    %1453 = arith.mulf %9, %1452 : vector<4x128xf32>
    %c0_254 = arith.constant 0 : index
    %c0_255 = arith.constant 0 : index
    %c0_256 = arith.constant 0 : index
    %1454 = vector.load %arg4[%c0_254, %c0_255, %c0_256] : memref<4x4x128xf32, #tpu.memory_space<vmem>>, vector<1x4x128xf32>
    %1455 = vector.shape_cast %1454 : vector<1x4x128xf32> to vector<4x128xf32>
    %1456 = vector.shape_cast %1453 : vector<4x128xf32> to vector<1x4x128xf32>
    tpu.vector_store %arg4[%c0_254, %c0_255, %c0_256], %1456 {strides = array<i32>} : memref<4x4x128xf32, #tpu.memory_space<vmem>>, vector<1x4x128xf32>,
    %1457 = arith.mulf %11, %1452 : vector<4x128xf32>
    %c1_257 = arith.constant 1 : index
    %c0_258 = arith.constant 0 : index
    %c0_259 = arith.constant 0 : index
    %1458 = vector.load %arg4[%c1_257, %c0_258, %c0_259] : memref<4x4x128xf32, #tpu.memory_space<vmem>>, vector<1x4x128xf32>
    %1459 = vector.shape_cast %1458 : vector<1x4x128xf32> to vector<4x128xf32>
    %1460 = vector.shape_cast %1457 : vector<4x128xf32> to vector<1x4x128xf32>
    tpu.vector_store %arg4[%c1_257, %c0_258, %c0_259], %1460 {strides = array<i32>} : memref<4x4x128xf32, #tpu.memory_space<vmem>>, vector<1x4x128xf32>,
    %1461 = arith.mulf %13, %1452 : vector<4x128xf32>
    %c2_260 = arith.constant 2 : index
    %c0_261 = arith.constant 0 : index
    %c0_262 = arith.constant 0 : index
    %1462 = vector.load %arg4[%c2_260, %c0_261, %c0_262] : memref<4x4x128xf32, #tpu.memory_space<vmem>>, vector<1x4x128xf32>
    %1463 = vector.shape_cast %1462 : vector<1x4x128xf32> to vector<4x128xf32>
    %1464 = vector.shape_cast %1461 : vector<4x128xf32> to vector<1x4x128xf32>
    tpu.vector_store %arg4[%c2_260, %c0_261, %c0_262], %1464 {strides = array<i32>} : memref<4x4x128xf32, #tpu.memory_space<vmem>>, vector<1x4x128xf32>,
    %1465 = arith.mulf %15, %1452 : vector<4x128xf32>
    %c3_263 = arith.constant 3 : index
    %c0_264 = arith.constant 0 : index
    %c0_265 = arith.constant 0 : index
    %1466 = vector.load %arg4[%c3_263, %c0_264, %c0_265] : memref<4x4x128xf32, #tpu.memory_space<vmem>>, vector<1x4x128xf32>
    %1467 = vector.shape_cast %1466 : vector<1x4x128xf32> to vector<4x128xf32>
    %1468 = vector.shape_cast %1465 : vector<4x128xf32> to vector<1x4x128xf32>
    tpu.vector_store %arg4[%c3_263, %c0_264, %c0_265], %1468 {strides = array<i32>} : memref<4x4x128xf32, #tpu.memory_space<vmem>>, vector<1x4x128xf32>,
    return
  }
  func.func @transform_0(%arg0: i32) -> i32 {
    %c0_i32 = arith.constant 0 : i32
    %c0_i32_0 = arith.constant 0 : i32
    return %c0_i32 : i32
  }
  func.func @transform_1(%arg0: i32) -> (i32, i32, i32) {
    %c0_i32 = arith.constant 0 : i32
    %c0_i32_0 = arith.constant 0 : i32
    %c0_i32_1 = arith.constant 0 : i32
    %c0_i32_2 = arith.constant 0 : i32
    return %c0_i32, %c0_i32_0, %c0_i32_1 : i32, i32, i32
  }
  func.func @transform_2(%arg0: i32) -> (i32, i32, i32) {
    %c0_i32 = arith.constant 0 : i32
    %c0_i32_0 = arith.constant 0 : i32
    %c0_i32_1 = arith.constant 0 : i32
    %c0_i32_2 = arith.constant 0 : i32
    return %c0_i32, %c0_i32_0, %c0_i32_1 : i32, i32, i32
  }
  func.func @transform_3(%arg0: i32) -> (i32, i32, i32) {
    %c0_i32 = arith.constant 0 : i32
    %c0_i32_0 = arith.constant 0 : i32
    %c0_i32_1 = arith.constant 0 : i32
    %c0_i32_2 = arith.constant 0 : i32
    return %c0_i32, %c0_i32_0, %c0_i32_1 : i32, i32, i32
  }
}

</mosaic_0001>

<llo_original>
// kernel: tpu_custom_call.1
$region0: #{tpu_custom_call.1}
  #allocation0 [shape = 'u32[]', space=smem, size = 0x4, offset = 0x4, fixed_abs, tag = 'smem constant byte address 0x4 - core index']
  #allocation1 [shape = 'u32[144,128]{1,0:T(1,128)}', space=vmem, size = 0x12000, scoped, tag = 'internal scratch']
  %s0 = inlined_call_operand.hbm [shape: f32[106], index: 0, kind: input, shape index: {}]
  %s1 = inlined_call_operand.hbm [shape: f32[4,4,128], index: 1, kind: input, shape index: {}]
  %s2 = inlined_call_operand.hbm [shape: f32[4,4,128], index: 2, kind: input, shape index: {}]
  %s3 = inlined_call_operand.hbm [shape: f32[4,4,128], index: 3, kind: output, shape index: {}]
  %s4 = sld [smem:[#allocation0]]
  $region34: #{tpu_custom_call.1} parent=0
    _
  %s6 = ssub.s32 1, %s4
  %s7 = scalar_select 0, %s6, %s4
  $region1: #{tpu_custom_call.1} parent=0
    #allocation2 [shape = 'u8[512]{0}', space=smem, size = 0x200, scoped, tag = 'input window, operand 0, single buffered']
    #allocation3 [shape = 's32[1]{0}', space=sflag, size = 0x4, scoped, tag = 'scoped memory for tpu_custom_call.1']
    #allocation4 [shape = 's32[1]{0}', space=sflag, size = 0x4, scoped, tag = 'scoped memory for tpu_custom_call.1']
    #allocation5 [shape = 's32[1]{0}', space=sflag, size = 0x4, scoped, tag = 'scoped memory for tpu_custom_call.1']
    #allocation6 [shape = 'u8[8192]{0}', space=vmem, size = 0x2000, scoped, tag = 'input window, operand 1, single buffered']
    #allocation7 [shape = 'u8[8192]{0}', space=vmem, size = 0x2000, scoped, tag = 'input window, operand 2, single buffered']
    #allocation8 [shape = 's32[1]{0}', space=sflag, size = 0x4, scoped, tag = 'scoped memory for tpu_custom_call.1']
    #allocation9 [shape = 'u8[8192]{0}', space=vmem, size = 0x2000, scoped, tag = 'output window, operand 0, single buffered']
    %8 = vsyncpa [#allocation5], 0
    %9 = vsyncpa [#allocation3], 0
    %10 = vsyncpa [#allocation8], 0
    %11 = vsyncpa [#allocation4], 0
    // Predicated region
    $region2: #{tpu_custom_call.1} parent=1 // pred_check
      _
    $region3: #{tpu_custom_call.1} parent=1 // pred_check_branch
      %13 = sbr.rel (0) target = $region5
    $region4: #{tpu_custom_call.1} parent=1 // pred_region
      %s15 = ssub.s32 16, 16
      %16 = vsyncadd [#allocation5], %s15
      %19 = dma.hbm_to_smem %s0, 16, [#allocation2], [#allocation5]
    $region5: #{tpu_custom_call.1} parent=1 // pred_fallthru
      _
    // Predicated region
    $region6: #{tpu_custom_call.1} parent=1 // pred_check
      _
    $region7: #{tpu_custom_call.1} parent=1 // pred_check_branch
      %21 = sbr.rel (0) target = $region9
    $region8: #{tpu_custom_call.1} parent=1 // pred_region
      %s23 = ssub.s32 256, 256
      %24 = vsyncadd [#allocation3], %s23
      %s25 = sshll.u32 [#allocation6], 4
      %s26 = int_to_ptr.vmem [resolvable:$true] %s25
      %31 = dma.hbm_to_vmem [thread:$0]  %s1, 256, %s26, [#allocation3], 64, 64, 4
    $region9: #{tpu_custom_call.1} parent=1 // pred_fallthru
      _
    // Predicated region
    $region10: #{tpu_custom_call.1} parent=1 // pred_check
      _
    $region11: #{tpu_custom_call.1} parent=1 // pred_check_branch
      %33 = sbr.rel (0) target = $region13
    $region12: #{tpu_custom_call.1} parent=1 // pred_region
      %s35 = ssub.s32 256, 256
      %36 = vsyncadd [#allocation8], %s35
      %s37 = sshll.u32 [#allocation7], 4
      %s38 = int_to_ptr.vmem [resolvable:$true] %s37
      %43 = dma.hbm_to_vmem [thread:$0]  %s2, 256, %s38, [#allocation8], 64, 64, 4
    $region13: #{tpu_custom_call.1} parent=1 // pred_fallthru
      _
    // Predicated region
    $region14: #{tpu_custom_call.1} parent=1 // pred_check
      _
    $region15: #{tpu_custom_call.1} parent=1 // pred_check_branch
      %45 = sbr.rel (0) target = $region17
    $region16: #{tpu_custom_call.1} parent=1 // pred_region
      %46 = dma.done [#allocation5], 16
    $region17: #{tpu_custom_call.1} parent=1 // pred_fallthru
      _
    // Predicated region
    $region18: #{tpu_custom_call.1} parent=1 // pred_check
      _
    $region19: #{tpu_custom_call.1} parent=1 // pred_check_branch
      %48 = sbr.rel (0) target = $region21
    $region20: #{tpu_custom_call.1} parent=1 // pred_region
      %49 = dma.done [#allocation3], 256
    $region21: #{tpu_custom_call.1} parent=1 // pred_fallthru
      _
    // Predicated region
    $region22: #{tpu_custom_call.1} parent=1 // pred_check
      _
    $region23: #{tpu_custom_call.1} parent=1 // pred_check_branch
      %51 = sbr.rel (0) target = $region25
    $region24: #{tpu_custom_call.1} parent=1 // pred_region
      %52 = dma.done [#allocation8], 256
    $region25: #{tpu_custom_call.1} parent=1 // pred_fallthru
      _
    %53 = sfence
    %v54 = vld [vmem:[#allocation6] sm:$0xf]
    %s55 = scalar_lea.vmem [#allocation6], 4
    %v56 = vld [vmem:[%s55] sm:$0xf]
    %s57 = scalar_lea.vmem [#allocation6], 8
    %v58 = vld [vmem:[%s57] sm:$0xf]
    %s59 = scalar_lea.vmem [#allocation6], 12
    %v60 = vld [vmem:[%s59] sm:$0xf]
    %v61 = vld [vmem:[#allocation7] sm:$0xf]
    %s62 = scalar_lea.vmem [#allocation7], 4
    %v63 = vld [vmem:[%s62] sm:$0xf]
    %s64 = scalar_lea.vmem [#allocation7], 8
    %v65 = vld [vmem:[%s64] sm:$0xf]
    %s66 = scalar_lea.vmem [#allocation7], 12
    %v67 = vld [vmem:[%s66] sm:$0xf]
    %vm68 = vcmask 1043456
    %v69 = vsel %vm68, %v54, 0.0
    %70 = vadd.xlane.f32.xlu0 %v69
    %v71 = vpop.xlane.xlu0 %70
    %v72 = vrot.slane %v71, 4
    %v73 = vadd.f32 %v71, %v72
    %v74 = vrot.slane %v73, 2
    %v75 = vadd.f32 %v73, %v74
    %v76 = vrot.slane %v75, 1
    %v77 = vadd.f32 %v75, %v76
    %s78 = vtos %v77
    %s79 = smul.f32 %s78, 0.001953125
    %v80 = vsel %vm68, %v56, 0.0
    %81 = vadd.xlane.f32.xlu0 %v80
    %v82 = vpop.xlane.xlu0 %81
    %v83 = vrot.slane %v82, 4
    %v84 = vadd.f32 %v82, %v83
    %v85 = vrot.slane %v84, 2
    %v86 = vadd.f32 %v84, %v85
    %v87 = vrot.slane %v86, 1
    %v88 = vadd.f32 %v86, %v87
    %s89 = vtos %v88
    %s90 = smul.f32 %s89, 0.001953125
    %v91 = vsel %vm68, %v58, 0.0
    %92 = vadd.xlane.f32.xlu0 %v91
    %v93 = vpop.xlane.xlu0 %92
    %v94 = vrot.slane %v93, 4
    %v95 = vadd.f32 %v93, %v94
    %v96 = vrot.slane %v95, 2
    %v97 = vadd.f32 %v95, %v96
    %v98 = vrot.slane %v97, 1
    %v99 = vadd.f32 %v97, %v98
    %s100 = vtos %v99
    %s101 = smul.f32 %s100, 0.001953125
    %v102 = vsel %vm68, %v60, 0.0
    %103 = vadd.xlane.f32.xlu0 %v102
    %v104 = vpop.xlane.xlu0 %103
    %v105 = vrot.slane %v104, 4
    %v106 = vadd.f32 %v104, %v105
    %v107 = vrot.slane %v106, 2
    %v108 = vadd.f32 %v106, %v107
    %v109 = vrot.slane %v108, 1
    %v110 = vadd.f32 %v108, %v109
    %s111 = vtos %v110
    %s112 = smul.f32 %s111, 0.001953125
    %v113 = vmul.f32 %v54, %v54
    %v114 = vsel %vm68, %v113, 0.0
    %115 = vadd.xlane.f32.xlu0 %v114
    %v116 = vpop.xlane.xlu0 %115
    %v117 = vrot.slane %v116, 4
    %v118 = vadd.f32 %v116, %v117
    %v119 = vrot.slane %v118, 2
    %v120 = vadd.f32 %v118, %v119
    %v121 = vrot.slane %v120, 1
    %v122 = vadd.f32 %v120, %v121
    %s123 = vtos %v122
    %s124 = smul.f32 %s123, 0.001953125
    %v125 = vmul.f32 %v54, %v56
    %v126 = vsel %vm68, %v125, 0.0
    %127 = vadd.xlane.f32.xlu0 %v126
    %v128 = vpop.xlane.xlu0 %127
    %v129 = vrot.slane %v128, 4
    %v130 = vadd.f32 %v128, %v129
    %v131 = vrot.slane %v130, 2
    %v132 = vadd.f32 %v130, %v131
    %v133 = vrot.slane %v132, 1
    %v134 = vadd.f32 %v132, %v133
    %s135 = vtos %v134
    %s136 = smul.f32 %s135, 0.001953125
    %v137 = vmul.f32 %v54, %v58
    %v138 = vsel %vm68, %v137, 0.0
    %139 = vadd.xlane.f32.xlu0 %v138
    %v140 = vpop.xlane.xlu0 %139
    %v141 = vrot.slane %v140, 4
    %v142 = vadd.f32 %v140, %v141
    %v143 = vrot.slane %v142, 2
    %v144 = vadd.f32 %v142, %v143
    %v145 = vrot.slane %v144, 1
    %v146 = vadd.f32 %v144, %v145
    %s147 = vtos %v146
    %s148 = smul.f32 %s147, 0.001953125
    %v149 = vmul.f32 %v54, %v60
    %v150 = vsel %vm68, %v149, 0.0
    %151 = vadd.xlane.f32.xlu0 %v150
    %v152 = vpop.xlane.xlu0 %151
    %v153 = vrot.slane %v152, 4
    %v154 = vadd.f32 %v152, %v153
    %v155 = vrot.slane %v154, 2
    %v156 = vadd.f32 %v154, %v155
    %v157 = vrot.slane %v156, 1
    %v158 = vadd.f32 %v156, %v157
    %s159 = vtos %v158
    %s160 = smul.f32 %s159, 0.001953125
    %v161 = vmul.f32 %v56, %v56
    %v162 = vsel %vm68, %v161, 0.0
    %163 = vadd.xlane.f32.xlu0 %v162
    %v164 = vpop.xlane.xlu0 %163
    %v165 = vrot.slane %v164, 4
    %v166 = vadd.f32 %v164, %v165
    %v167 = vrot.slane %v166, 2
    %v168 = vadd.f32 %v166, %v167
    %v169 = vrot.slane %v168, 1
    %v170 = vadd.f32 %v168, %v169
    %s171 = vtos %v170
    %s172 = smul.f32 %s171, 0.001953125
    %v173 = vmul.f32 %v56, %v58
    %v174 = vsel %vm68, %v173, 0.0
    %175 = vadd.xlane.f32.xlu0 %v174
    %v176 = vpop.xlane.xlu0 %175
    %v177 = vrot.slane %v176, 4
    %v178 = vadd.f32 %v176, %v177
    %v179 = vrot.slane %v178, 2
    %v180 = vadd.f32 %v178, %v179
    %v181 = vrot.slane %v180, 1
    %v182 = vadd.f32 %v180, %v181
    %s183 = vtos %v182
    %s184 = smul.f32 %s183, 0.001953125
    %v185 = vmul.f32 %v56, %v60
    %v186 = vsel %vm68, %v185, 0.0
    %187 = vadd.xlane.f32.xlu0 %v186
    %v188 = vpop.xlane.xlu0 %187
    %v189 = vrot.slane %v188, 4
    %v190 = vadd.f32 %v188, %v189
    %v191 = vrot.slane %v190, 2
    %v192 = vadd.f32 %v190, %v191
    %v193 = vrot.slane %v192, 1
    %v194 = vadd.f32 %v192, %v193
    %s195 = vtos %v194
    %s196 = smul.f32 %s195, 0.001953125
    %v197 = vmul.f32 %v58, %v58
    %v198 = vsel %vm68, %v197, 0.0
    %199 = vadd.xlane.f32.xlu0 %v198
    %v200 = vpop.xlane.xlu0 %199
    %v201 = vrot.slane %v200, 4
    %v202 = vadd.f32 %v200, %v201
    %v203 = vrot.slane %v202, 2
    %v204 = vadd.f32 %v202, %v203
    %v205 = vrot.slane %v204, 1
    %v206 = vadd.f32 %v204, %v205
    %s207 = vtos %v206
    %s208 = smul.f32 %s207, 0.001953125
    %v209 = vmul.f32 %v58, %v60
    %v210 = vsel %vm68, %v209, 0.0
    %211 = vadd.xlane.f32.xlu0 %v210
    %v212 = vpop.xlane.xlu0 %211
    %v213 = vrot.slane %v212, 4
    %v214 = vadd.f32 %v212, %v213
    %v215 = vrot.slane %v214, 2
    %v216 = vadd.f32 %v214, %v215
    %v217 = vrot.slane %v216, 1
    %v218 = vadd.f32 %v216, %v217
    %s219 = vtos %v218
    %s220 = smul.f32 %s219, 0.001953125
    %v221 = vmul.f32 %v60, %v60
    %v222 = vsel %vm68, %v221, 0.0
    %223 = vadd.xlane.f32.xlu0 %v222
    %v224 = vpop.xlane.xlu0 %223
    %v225 = vrot.slane %v224, 4
    %v226 = vadd.f32 %v224, %v225
    %v227 = vrot.slane %v226, 2
    %v228 = vadd.f32 %v226, %v227
    %v229 = vrot.slane %v228, 1
    %v230 = vadd.f32 %v228, %v229
    %s231 = vtos %v230
    %s232 = smul.f32 %s231, 0.001953125
    %v233 = vsel %vm68, %v61, 0.0
    %234 = vadd.xlane.f32.xlu0 %v233
    %v235 = vpop.xlane.xlu0 %234
    %v236 = vrot.slane %v235, 4
    %v237 = vadd.f32 %v235, %v236
    %v238 = vrot.slane %v237, 2
    %v239 = vadd.f32 %v237, %v238
    %v240 = vrot.slane %v239, 1
    %v241 = vadd.f32 %v239, %v240
    %s242 = vtos %v241
    %s243 = smul.f32 %s242, 0.001953125
    %v244 = vsel %vm68, %v63, 0.0
    %245 = vadd.xlane.f32.xlu0 %v244
    %v246 = vpop.xlane.xlu0 %245
    %v247 = vrot.slane %v246, 4
    %v248 = vadd.f32 %v246, %v247
    %v249 = vrot.slane %v248, 2
    %v250 = vadd.f32 %v248, %v249
    %v251 = vrot.slane %v250, 1
    %v252 = vadd.f32 %v250, %v251
    %s253 = vtos %v252
    %s254 = smul.f32 %s253, 0.001953125
    %v255 = vsel %vm68, %v65, 0.0
    %256 = vadd.xlane.f32.xlu0 %v255
    %v257 = vpop.xlane.xlu0 %256
    %v258 = vrot.slane %v257, 4
    %v259 = vadd.f32 %v257, %v258
    %v260 = vrot.slane %v259, 2
    %v261 = vadd.f32 %v259, %v260
    %v262 = vrot.slane %v261, 1
    %v263 = vadd.f32 %v261, %v262
    %s264 = vtos %v263
    %s265 = smul.f32 %s264, 0.001953125
    %v266 = vsel %vm68, %v67, 0.0
    %267 = vadd.xlane.f32.xlu0 %v266
    %v268 = vpop.xlane.xlu0 %267
    %v269 = vrot.slane %v268, 4
    %v270 = vadd.f32 %v268, %v269
    %v271 = vrot.slane %v270, 2
    %v272 = vadd.f32 %v270, %v271
    %v273 = vrot.slane %v272, 1
    %v274 = vadd.f32 %v272, %v273
    %s275 = vtos %v274
    %s276 = smul.f32 %s275, 0.001953125
    %v277 = vmul.f32 %v61, %v61
    %v278 = vsel %vm68, %v277, 0.0
    %279 = vadd.xlane.f32.xlu0 %v278
    %v280 = vpop.xlane.xlu0 %279
    %v281 = vrot.slane %v280, 4
    %v282 = vadd.f32 %v280, %v281
    %v283 = vrot.slane %v282, 2
    %v284 = vadd.f32 %v282, %v283
    %v285 = vrot.slane %v284, 1
    %v286 = vadd.f32 %v284, %v285
    %s287 = vtos %v286
    %s288 = smul.f32 %s287, 0.001953125
    %v289 = vmul.f32 %v61, %v63
    %v290 = vsel %vm68, %v289, 0.0
    %291 = vadd.xlane.f32.xlu0 %v290
    %v292 = vpop.xlane.xlu0 %291
    %v293 = vrot.slane %v292, 4
    %v294 = vadd.f32 %v292, %v293
    %v295 = vrot.slane %v294, 2
    %v296 = vadd.f32 %v294, %v295
    %v297 = vrot.slane %v296, 1
    %v298 = vadd.f32 %v296, %v297
    %s299 = vtos %v298
    %s300 = smul.f32 %s299, 0.001953125
    %v301 = vmul.f32 %v61, %v65
    %v302 = vsel %vm68, %v301, 0.0
    %303 = vadd.xlane.f32.xlu0 %v302
    %v304 = vpop.xlane.xlu0 %303
    %v305 = vrot.slane %v304, 4
    %v306 = vadd.f32 %v304, %v305
    %v307 = vrot.slane %v306, 2
    %v308 = vadd.f32 %v306, %v307
    %v309 = vrot.slane %v308, 1
    %v310 = vadd.f32 %v308, %v309
    %s311 = vtos %v310
    %s312 = smul.f32 %s311, 0.001953125
    %v313 = vmul.f32 %v61, %v67
    %v314 = vsel %vm68, %v313, 0.0
    %315 = vadd.xlane.f32.xlu0 %v314
    %v316 = vpop.xlane.xlu0 %315
    %v317 = vrot.slane %v316, 4
    %v318 = vadd.f32 %v316, %v317
    %v319 = vrot.slane %v318, 2
    %v320 = vadd.f32 %v318, %v319
    %v321 = vrot.slane %v320, 1
    %v322 = vadd.f32 %v320, %v321
    %s323 = vtos %v322
    %s324 = smul.f32 %s323, 0.001953125
    %v325 = vmul.f32 %v63, %v63
    %v326 = vsel %vm68, %v325, 0.0
    %327 = vadd.xlane.f32.xlu0 %v326
    %v328 = vpop.xlane.xlu0 %327
    %v329 = vrot.slane %v328, 4
    %v330 = vadd.f32 %v328, %v329
    %v331 = vrot.slane %v330, 2
    %v332 = vadd.f32 %v330, %v331
    %v333 = vrot.slane %v332, 1
    %v334 = vadd.f32 %v332, %v333
    %s335 = vtos %v334
    %s336 = smul.f32 %s335, 0.001953125
    %v337 = vmul.f32 %v63, %v65
    %v338 = vsel %vm68, %v337, 0.0
    %339 = vadd.xlane.f32.xlu0 %v338
    %v340 = vpop.xlane.xlu0 %339
    %v341 = vrot.slane %v340, 4
    %v342 = vadd.f32 %v340, %v341
    %v343 = vrot.slane %v342, 2
    %v344 = vadd.f32 %v342, %v343
    %v345 = vrot.slane %v344, 1
    %v346 = vadd.f32 %v344, %v345
    %s347 = vtos %v346
    %s348 = smul.f32 %s347, 0.001953125
    %v349 = vmul.f32 %v63, %v67
    %v350 = vsel %vm68, %v349, 0.0
    %351 = vadd.xlane.f32.xlu0 %v350
    %v352 = vpop.xlane.xlu0 %351
    %v353 = vrot.slane %v352, 4
    %v354 = vadd.f32 %v352, %v353
    %v355 = vrot.slane %v354, 2
    %v356 = vadd.f32 %v354, %v355
    %v357 = vrot.slane %v356, 1
    %v358 = vadd.f32 %v356, %v357
    %s359 = vtos %v358
    %s360 = smul.f32 %s359, 0.001953125
    %v361 = vmul.f32 %v65, %v65
    %v362 = vsel %vm68, %v361, 0.0
    %363 = vadd.xlane.f32.xlu0 %v362
    %v364 = vpop.xlane.xlu0 %363
    %v365 = vrot.slane %v364, 4
    %v366 = vadd.f32 %v364, %v365
    %v367 = vrot.slane %v366, 2
    %v368 = vadd.f32 %v366, %v367
    %v369 = vrot.slane %v368, 1
    %v370 = vadd.f32 %v368, %v369
    %s371 = vtos %v370
    %s372 = smul.f32 %s371, 0.001953125
    %v373 = vmul.f32 %v65, %v67
    %v374 = vsel %vm68, %v373, 0.0
    %375 = vadd.xlane.f32.xlu0 %v374
    %v376 = vpop.xlane.xlu0 %375
    %v377 = vrot.slane %v376, 4
    %v378 = vadd.f32 %v376, %v377
    %v379 = vrot.slane %v378, 2
    %v380 = vadd.f32 %v378, %v379
    %v381 = vrot.slane %v380, 1
    %v382 = vadd.f32 %v380, %v381
    %s383 = vtos %v382
    %s384 = smul.f32 %s383, 0.001953125
    %v385 = vmul.f32 %v67, %v67
    %v386 = vsel %vm68, %v385, 0.0
    %387 = vadd.xlane.f32.xlu0 %v386
    %v388 = vpop.xlane.xlu0 %387
    %v389 = vrot.slane %v388, 4
    %v390 = vadd.f32 %v388, %v389
    %v391 = vrot.slane %v390, 2
    %v392 = vadd.f32 %v390, %v391
    %v393 = vrot.slane %v392, 1
    %v394 = vadd.f32 %v392, %v393
    %s395 = vtos %v394
    %s396 = smul.f32 %s395, 0.001953125
    %s397 = sld [smem:[#allocation2]]
    %s398 = sld [smem:[#allocation2 + $0x8]]
    %s399 = sld [smem:[#allocation2 + $0x10]]
    %s400 = sld [smem:[#allocation2 + $0x18]]
    %s401 = sld [smem:[#allocation2 + $0x20]]
    %s402 = sld [smem:[#allocation2 + $0x28]]
    %s403 = sld [smem:[#allocation2 + $0x30]]
    %s404 = sld [smem:[#allocation2 + $0x38]]
    %s405 = smul.f32 %s397, %s79
    %s406 = sadd.f32 %s405, 0.0
    %s407 = smul.f32 %s398, %s90
    %s408 = sadd.f32 %s406, %s407
    %s409 = smul.f32 %s399, %s101
    %s410 = sadd.f32 %s408, %s409
    %s411 = smul.f32 %s400, %s112
    %s412 = sadd.f32 %s410, %s411
    %s413 = smul.f32 %s397, %s397
    %s414 = smul.f32 %s413, %s124
    %s415 = sadd.f32 %s414, 0.0
    %s416 = smul.f32 %s397, 2.0
    %s417 = smul.f32 %s416, %s398
    %s418 = smul.f32 %s417, %s136
    %s419 = sadd.f32 %s415, %s418
    %s420 = smul.f32 %s416, %s399
    %s421 = smul.f32 %s420, %s148
    %s422 = sadd.f32 %s419, %s421
    %s423 = smul.f32 %s416, %s400
    %s424 = smul.f32 %s423, %s160
    %s425 = sadd.f32 %s422, %s424
    %s426 = smul.f32 %s398, %s398
    %s427 = smul.f32 %s426, %s172
    %s428 = sadd.f32 %s425, %s427
    %s429 = smul.f32 %s398, 2.0
    %s430 = smul.f32 %s429, %s399
    %s431 = smul.f32 %s430, %s184
    %s432 = sadd.f32 %s428, %s431
    %s433 = smul.f32 %s429, %s400
    %s434 = smul.f32 %s433, %s196
    %s435 = sadd.f32 %s432, %s434
    %s436 = smul.f32 %s399, %s399
    %s437 = smul.f32 %s436, %s208
    %s438 = sadd.f32 %s435, %s437
    %s439 = smul.f32 %s399, 2.0
    %s440 = smul.f32 %s439, %s400
    %s441 = smul.f32 %s440, %s220
    %s442 = sadd.f32 %s438, %s441
    %s443 = smul.f32 %s400, %s400
    %s444 = smul.f32 %s443, %s232
    %s445 = sadd.f32 %s442, %s444
    %s446 = smul.f32 %s412, %s412
    %s447 = ssub.f32 %s445, %s446
    %s448 = smax.f32 %s447, 0.0
    %s449 = sld [smem:[#allocation2 + $0x48]]
    %s450 = sadd.f32 %s448, 1e-05
    %v451 = vstv %s450
    %v452 = vrsqrt.pop %v451
    %s453 = vtos %v452
    %s454 = smul.f32 %s449, %s453
    %s455 = sld [smem:[#allocation2 + $0x50]]
    %s456 = smul.f32 %s412, %s454
    %s457 = ssub.f32 %s455, %s456
    %s458 = smul.f32 %s401, %s243
    %s459 = sadd.f32 %s458, 0.0
    %s460 = smul.f32 %s402, %s254
    %s461 = sadd.f32 %s459, %s460
    %s462 = smul.f32 %s403, %s265
    %s463 = sadd.f32 %s461, %s462
    %s464 = smul.f32 %s404, %s276
    %s465 = sadd.f32 %s463, %s464
    %s466 = smul.f32 %s401, %s401
    %s467 = smul.f32 %s466, %s288
    %s468 = sadd.f32 %s467, 0.0
    %s469 = smul.f32 %s401, 2.0
    %s470 = smul.f32 %s469, %s402
    %s471 = smul.f32 %s470, %s300
    %s472 = sadd.f32 %s468, %s471
    %s473 = smul.f32 %s469, %s403
    %s474 = smul.f32 %s473, %s312
    %s475 = sadd.f32 %s472, %s474
    %s476 = smul.f32 %s469, %s404
    %s477 = smul.f32 %s476, %s324
    %s478 = sadd.f32 %s475, %s477
    %s479 = smul.f32 %s402, %s402
    %s480 = smul.f32 %s479, %s336
    %s481 = sadd.f32 %s478, %s480
    %s482 = smul.f32 %s402, 2.0
    %s483 = smul.f32 %s482, %s403
    %s484 = smul.f32 %s483, %s348
    %s485 = sadd.f32 %s481, %s484
    %s486 = smul.f32 %s482, %s404
    %s487 = smul.f32 %s486, %s360
    %s488 = sadd.f32 %s485, %s487
    %s489 = smul.f32 %s403, %s403
    %s490 = smul.f32 %s489, %s372
    %s491 = sadd.f32 %s488, %s490
    %s492 = smul.f32 %s403, 2.0
    %s493 = smul.f32 %s492, %s404
    %s494 = smul.f32 %s493, %s384
    %s495 = sadd.f32 %s491, %s494
    %s496 = smul.f32 %s404, %s404
    %s497 = smul.f32 %s496, %s396
    %s498 = sadd.f32 %s495, %s497
    %s499 = smul.f32 %s465, %s465
    %s500 = ssub.f32 %s498, %s499
    %s501 = smax.f32 %s500, 0.0
    %s502 = sld [smem:[#allocation2 + $0x58]]
    %s503 = sadd.f32 %s501, 1e-05
    %v504 = vstv %s503
    %v505 = vrsqrt.pop %v504
    %s506 = vtos %v505
    %s507 = smul.f32 %s502, %s506
    %s508 = sld [smem:[#allocation2 + $0x60]]
    %s509 = smul.f32 %s465, %s507
    %s510 = ssub.f32 %s508, %s509
    %s511 = smul.f32 %s397, %s454
    %v512 = vstv %s511
    %v513 = vmul.f32 %v54, %v512
    %s514 = smul.f32 %s398, %s454
    %v515 = vstv %s514
    %v516 = vmul.f32 %v56, %v515
    %v517 = vadd.f32 %v513, %v516
    %s518 = smul.f32 %s399, %s454
    %v519 = vstv %s518
    %v520 = vmul.f32 %v58, %v519
    %v521 = vadd.f32 %v517, %v520
    %s522 = smul.f32 %s400, %s454
    %v523 = vstv %s522
    %v524 = vmul.f32 %v60, %v523
    %v525 = vadd.f32 %v521, %v524
    %s526 = smul.f32 %s401, %s507
    %v527 = vstv %s526
    %v528 = vmul.f32 %v61, %v527
    %v529 = vadd.f32 %v525, %v528
    %s530 = smul.f32 %s402, %s507
    %v531 = vstv %s530
    %v532 = vmul.f32 %v63, %v531
    %v533 = vadd.f32 %v529, %v532
    %s534 = smul.f32 %s403, %s507
    %v535 = vstv %s534
    %v536 = vmul.f32 %v65, %v535
    %v537 = vadd.f32 %v533, %v536
    %s538 = smul.f32 %s404, %s507
    %v539 = vstv %s538
    %v540 = vmul.f32 %v67, %v539
    %v541 = vadd.f32 %v537, %v540
    %s542 = sadd.f32 %s457, %s510
    %v543 = vstv %s542
    %v544 = vadd.f32 %v541, %v543
    %v545 = vmax.f32 %v544, 0.0
    %s546 = sld [smem:[#allocation2 + $0x40]]
    %v547 = vstv %s546
    %v548 = vmul.f32 %v545, %v547
    %s549 = sld [smem:[#allocation2 + $0x1]]
    %s550 = sld [smem:[#allocation2 + $0x9]]
    %s551 = sld [smem:[#allocation2 + $0x11]]
    %s552 = sld [smem:[#allocation2 + $0x19]]
    %s553 = sld [smem:[#allocation2 + $0x21]]
    %s554 = sld [smem:[#allocation2 + $0x29]]
    %s555 = sld [smem:[#allocation2 + $0x31]]
    %s556 = sld [smem:[#allocation2 + $0x39]]
    %s557 = smul.f32 %s549, %s79
    %s558 = sadd.f32 %s557, 0.0
    %s559 = smul.f32 %s550, %s90
    %s560 = sadd.f32 %s558, %s559
    %s561 = smul.f32 %s551, %s101
    %s562 = sadd.f32 %s560, %s561
    %s563 = smul.f32 %s552, %s112
    %s564 = sadd.f32 %s562, %s563
    %s565 = smul.f32 %s549, %s549
    %s566 = smul.f32 %s565, %s124
    %s567 = sadd.f32 %s566, 0.0
    %s568 = smul.f32 %s549, 2.0
    %s569 = smul.f32 %s568, %s550
    %s570 = smul.f32 %s569, %s136
    %s571 = sadd.f32 %s567, %s570
    %s572 = smul.f32 %s568, %s551
    %s573 = smul.f32 %s572, %s148
    %s574 = sadd.f32 %s571, %s573
    %s575 = smul.f32 %s568, %s552
    %s576 = smul.f32 %s575, %s160
    %s577 = sadd.f32 %s574, %s576
    %s578 = smul.f32 %s550, %s550
    %s579 = smul.f32 %s578, %s172
    %s580 = sadd.f32 %s577, %s579
    %s581 = smul.f32 %s550, 2.0
    %s582 = smul.f32 %s581, %s551
    %s583 = smul.f32 %s582, %s184
    %s584 = sadd.f32 %s580, %s583
    %s585 = smul.f32 %s581, %s552
    %s586 = smul.f32 %s585, %s196
    %s587 = sadd.f32 %s584, %s586
    %s588 = smul.f32 %s551, %s551
    %s589 = smul.f32 %s588, %s208
    %s590 = sadd.f32 %s587, %s589
    %s591 = smul.f32 %s551, 2.0
    %s592 = smul.f32 %s591, %s552
    %s593 = smul.f32 %s592, %s220
    %s594 = sadd.f32 %s590, %s593
    %s595 = smul.f32 %s552, %s552
    %s596 = smul.f32 %s595, %s232
    %s597 = sadd.f32 %s594, %s596
    %s598 = smul.f32 %s564, %s564
    %s599 = ssub.f32 %s597, %s598
    %s600 = smax.f32 %s599, 0.0
    %s601 = sld [smem:[#allocation2 + $0x49]]
    %s602 = sadd.f32 %s600, 1e-05
    %v603 = vstv %s602
    %v604 = vrsqrt.pop %v603
    %s605 = vtos %v604
    %s606 = smul.f32 %s601, %s605
    %s607 = sld [smem:[#allocation2 + $0x51]]
    %s608 = smul.f32 %s564, %s606
    %s609 = ssub.f32 %s607, %s608
    %s610 = smul.f32 %s553, %s243
    %s611 = sadd.f32 %s610, 0.0
    %s612 = smul.f32 %s554, %s254
    %s613 = sadd.f32 %s611, %s612
    %s614 = smul.f32 %s555, %s265
    %s615 = sadd.f32 %s613, %s614
    %s616 = smul.f32 %s556, %s276
    %s617 = sadd.f32 %s615, %s616
    %s618 = smul.f32 %s553, %s553
    %s619 = smul.f32 %s618, %s288
    %s620 = sadd.f32 %s619, 0.0
    %s621 = smul.f32 %s553, 2.0
    %s622 = smul.f32 %s621, %s554
    %s623 = smul.f32 %s622, %s300
    %s624 = sadd.f32 %s620, %s623
    %s625 = smul.f32 %s621, %s555
    %s626 = smul.f32 %s625, %s312
    %s627 = sadd.f32 %s624, %s626
    %s628 = smul.f32 %s621, %s556
    %s629 = smul.f32 %s628, %s324
    %s630 = sadd.f32 %s627, %s629
    %s631 = smul.f32 %s554, %s554
    %s632 = smul.f32 %s631, %s336
    %s633 = sadd.f32 %s630, %s632
    %s634 = smul.f32 %s554, 2.0
    %s635 = smul.f32 %s634, %s555
    %s636 = smul.f32 %s635, %s348
    %s637 = sadd.f32 %s633, %s636
    %s638 = smul.f32 %s634, %s556
    %s639 = smul.f32 %s638, %s360
    %s640 = sadd.f32 %s637, %s639
    %s641 = smul.f32 %s555, %s555
    %s642 = smul.f32 %s641, %s372
    %s643 = sadd.f32 %s640, %s642
    %s644 = smul.f32 %s555, 2.0
    %s645 = smul.f32 %s644, %s556
    %s646 = smul.f32 %s645, %s384
    %s647 = sadd.f32 %s643, %s646
    %s648 = smul.f32 %s556, %s556
    %s649 = smul.f32 %s648, %s396
    %s650 = sadd.f32 %s647, %s649
    %s651 = smul.f32 %s617, %s617
    %s652 = ssub.f32 %s650, %s651
    %s653 = smax.f32 %s652, 0.0
    %s654 = sld [smem:[#allocation2 + $0x59]]
    %s655 = sadd.f32 %s653, 1e-05
    %v656 = vstv %s655
    %v657 = vrsqrt.pop %v656
    %s658 = vtos %v657
    %s659 = smul.f32 %s654, %s658
    %s660 = sld [smem:[#allocation2 + $0x61]]
    %s661 = smul.f32 %s617, %s659
    %s662 = ssub.f32 %s660, %s661
    %s663 = smul.f32 %s549, %s606
    %v664 = vstv %s663
    %v665 = vmul.f32 %v54, %v664
    %s666 = smul.f32 %s550, %s606
    %v667 = vstv %s666
    %v668 = vmul.f32 %v56, %v667
    %v669 = vadd.f32 %v665, %v668
    %s670 = smul.f32 %s551, %s606
    %v671 = vstv %s670
    %v672 = vmul.f32 %v58, %v671
    %v673 = vadd.f32 %v669, %v672
    %s674 = smul.f32 %s552, %s606
    %v675 = vstv %s674
    %v676 = vmul.f32 %v60, %v675
    %v677 = vadd.f32 %v673, %v676
    %s678 = smul.f32 %s553, %s659
    %v679 = vstv %s678
    %v680 = vmul.f32 %v61, %v679
    %v681 = vadd.f32 %v677, %v680
    %s682 = smul.f32 %s554, %s659
    %v683 = vstv %s682
    %v684 = vmul.f32 %v63, %v683
    %v685 = vadd.f32 %v681, %v684
    %s686 = smul.f32 %s555, %s659
    %v687 = vstv %s686
    %v688 = vmul.f32 %v65, %v687
    %v689 = vadd.f32 %v685, %v688
    %s690 = smul.f32 %s556, %s659
    %v691 = vstv %s690
    %v692 = vmul.f32 %v67, %v691
    %v693 = vadd.f32 %v689, %v692
    %s694 = sadd.f32 %s609, %s662
    %v695 = vstv %s694
    %v696 = vadd.f32 %v693, %v695
    %v697 = vmax.f32 %v696, 0.0
    %s698 = sld [smem:[#allocation2 + $0x41]]
    %v699 = vstv %s698
    %v700 = vmul.f32 %v697, %v699
    %v701 = vadd.f32 %v548, %v700
    %s702 = sld [smem:[#allocation2 + $0x2]]
    %s703 = sld [smem:[#allocation2 + $0xa]]
    %s704 = sld [smem:[#allocation2 + $0x12]]
    %s705 = sld [smem:[#allocation2 + $0x1a]]
    %s706 = sld [smem:[#allocation2 + $0x22]]
    %s707 = sld [smem:[#allocation2 + $0x2a]]
    %s708 = sld [smem:[#allocation2 + $0x32]]
    %s709 = sld [smem:[#allocation2 + $0x3a]]
    %s710 = smul.f32 %s702, %s79
    %s711 = sadd.f32 %s710, 0.0
    %s712 = smul.f32 %s703, %s90
    %s713 = sadd.f32 %s711, %s712
    %s714 = smul.f32 %s704, %s101
    %s715 = sadd.f32 %s713, %s714
    %s716 = smul.f32 %s705, %s112
    %s717 = sadd.f32 %s715, %s716
    %s718 = smul.f32 %s702, %s702
    %s719 = smul.f32 %s718, %s124
    %s720 = sadd.f32 %s719, 0.0
    %s721 = smul.f32 %s702, 2.0
    %s722 = smul.f32 %s721, %s703
    %s723 = smul.f32 %s722, %s136
    %s724 = sadd.f32 %s720, %s723
    %s725 = smul.f32 %s721, %s704
    %s726 = smul.f32 %s725, %s148
    %s727 = sadd.f32 %s724, %s726
    %s728 = smul.f32 %s721, %s705
    %s729 = smul.f32 %s728, %s160
    %s730 = sadd.f32 %s727, %s729
    %s731 = smul.f32 %s703, %s703
    %s732 = smul.f32 %s731, %s172
    %s733 = sadd.f32 %s730, %s732
    %s734 = smul.f32 %s703, 2.0
    %s735 = smul.f32 %s734, %s704
    %s736 = smul.f32 %s735, %s184
    %s737 = sadd.f32 %s733, %s736
    %s738 = smul.f32 %s734, %s705
    %s739 = smul.f32 %s738, %s196
    %s740 = sadd.f32 %s737, %s739
    %s741 = smul.f32 %s704, %s704
    %s742 = smul.f32 %s741, %s208
    %s743 = sadd.f32 %s740, %s742
    %s744 = smul.f32 %s704, 2.0
    %s745 = smul.f32 %s744, %s705
    %s746 = smul.f32 %s745, %s220
    %s747 = sadd.f32 %s743, %s746
    %s748 = smul.f32 %s705, %s705
    %s749 = smul.f32 %s748, %s232
    %s750 = sadd.f32 %s747, %s749
    %s751 = smul.f32 %s717, %s717
    %s752 = ssub.f32 %s750, %s751
    %s753 = smax.f32 %s752, 0.0
    %s754 = sld [smem:[#allocation2 + $0x4a]]
    %s755 = sadd.f32 %s753, 1e-05
    %v756 = vstv %s755
    %v757 = vrsqrt.pop %v756
    %s758 = vtos %v757
    %s759 = smul.f32 %s754, %s758
    %s760 = sld [smem:[#allocation2 + $0x52]]
    %s761 = smul.f32 %s717, %s759
    %s762 = ssub.f32 %s760, %s761
    %s763 = smul.f32 %s706, %s243
    %s764 = sadd.f32 %s763, 0.0
    %s765 = smul.f32 %s707, %s254
    %s766 = sadd.f32 %s764, %s765
    %s767 = smul.f32 %s708, %s265
    %s768 = sadd.f32 %s766, %s767
    %s769 = smul.f32 %s709, %s276
    %s770 = sadd.f32 %s768, %s769
    %s771 = smul.f32 %s706, %s706
    %s772 = smul.f32 %s771, %s288
    %s773 = sadd.f32 %s772, 0.0
    %s774 = smul.f32 %s706, 2.0
    %s775 = smul.f32 %s774, %s707
    %s776 = smul.f32 %s775, %s300
    %s777 = sadd.f32 %s773, %s776
    %s778 = smul.f32 %s774, %s708
    %s779 = smul.f32 %s778, %s312
    %s780 = sadd.f32 %s777, %s779
    %s781 = smul.f32 %s774, %s709
    %s782 = smul.f32 %s781, %s324
    %s783 = sadd.f32 %s780, %s782
    %s784 = smul.f32 %s707, %s707
    %s785 = smul.f32 %s784, %s336
    %s786 = sadd.f32 %s783, %s785
    %s787 = smul.f32 %s707, 2.0
    %s788 = smul.f32 %s787, %s708
    %s789 = smul.f32 %s788, %s348
    %s790 = sadd.f32 %s786, %s789
    %s791 = smul.f32 %s787, %s709
    %s792 = smul.f32 %s791, %s360
    %s793 = sadd.f32 %s790, %s792
    %s794 = smul.f32 %s708, %s708
    %s795 = smul.f32 %s794, %s372
    %s796 = sadd.f32 %s793, %s795
    %s797 = smul.f32 %s708, 2.0
    %s798 = smul.f32 %s797, %s709
    %s799 = smul.f32 %s798, %s384
    %s800 = sadd.f32 %s796, %s799
    %s801 = smul.f32 %s709, %s709
    %s802 = smul.f32 %s801, %s396
    %s803 = sadd.f32 %s800, %s802
    %s804 = smul.f32 %s770, %s770
    %s805 = ssub.f32 %s803, %s804
    %s806 = smax.f32 %s805, 0.0
    %s807 = sld [smem:[#allocation2 + $0x5a]]
    %s808 = sadd.f32 %s806, 1e-05
    %v809 = vstv %s808
    %v810 = vrsqrt.pop %v809
    %s811 = vtos %v810
    %s812 = smul.f32 %s807, %s811
    %s813 = sld [smem:[#allocation2 + $0x62]]
    %s814 = smul.f32 %s770, %s812
    %s815 = ssub.f32 %s813, %s814
    %s816 = smul.f32 %s702, %s759
    %v817 = vstv %s816
    %v818 = vmul.f32 %v54, %v817
    %s819 = smul.f32 %s703, %s759
    %v820 = vstv %s819
    %v821 = vmul.f32 %v56, %v820
    %v822 = vadd.f32 %v818, %v821
    %s823 = smul.f32 %s704, %s759
    %v824 = vstv %s823
    %v825 = vmul.f32 %v58, %v824
    %v826 = vadd.f32 %v822, %v825
    %s827 = smul.f32 %s705, %s759
    %v828 = vstv %s827
    %v829 = vmul.f32 %v60, %v828
    %v830 = vadd.f32 %v826, %v829
    %s831 = smul.f32 %s706, %s812
    %v832 = vstv %s831
    %v833 = vmul.f32 %v61, %v832
    %v834 = vadd.f32 %v830, %v833
    %s835 = smul.f32 %s707, %s812
    %v836 = vstv %s835
    %v837 = vmul.f32 %v63, %v836
    %v838 = vadd.f32 %v834, %v837
    %s839 = smul.f32 %s708, %s812
    %v840 = vstv %s839
    %v841 = vmul.f32 %v65, %v840
    %v842 = vadd.f32 %v838, %v841
    %s843 = smul.f32 %s709, %s812
    %v844 = vstv %s843
    %v845 = vmul.f32 %v67, %v844
    %v846 = vadd.f32 %v842, %v845
    %s847 = sadd.f32 %s762, %s815
    %v848 = vstv %s847
    %v849 = vadd.f32 %v846, %v848
    %v850 = vmax.f32 %v849, 0.0
    %s851 = sld [smem:[#allocation2 + $0x42]]
    %v852 = vstv %s851
    %v853 = vmul.f32 %v850, %v852
    %v854 = vadd.f32 %v701, %v853
    %s855 = sld [smem:[#allocation2 + $0x3]]
    %s856 = sld [smem:[#allocation2 + $0xb]]
    %s857 = sld [smem:[#allocation2 + $0x13]]
    %s858 = sld [smem:[#allocation2 + $0x1b]]
    %s859 = sld [smem:[#allocation2 + $0x23]]
    %s860 = sld [smem:[#allocation2 + $0x2b]]
    %s861 = sld [smem:[#allocation2 + $0x33]]
    %s862 = sld [smem:[#allocation2 + $0x3b]]
    %s863 = smul.f32 %s855, %s79
    %s864 = sadd.f32 %s863, 0.0
    %s865 = smul.f32 %s856, %s90
    %s866 = sadd.f32 %s864, %s865
    %s867 = smul.f32 %s857, %s101
    %s868 = sadd.f32 %s866, %s867
    %s869 = smul.f32 %s858, %s112
    %s870 = sadd.f32 %s868, %s869
    %s871 = smul.f32 %s855, %s855
    %s872 = smul.f32 %s871, %s124
    %s873 = sadd.f32 %s872, 0.0
    %s874 = smul.f32 %s855, 2.0
    %s875 = smul.f32 %s874, %s856
    %s876 = smul.f32 %s875, %s136
    %s877 = sadd.f32 %s873, %s876
    %s878 = smul.f32 %s874, %s857
    %s879 = smul.f32 %s878, %s148
    %s880 = sadd.f32 %s877, %s879
    %s881 = smul.f32 %s874, %s858
    %s882 = smul.f32 %s881, %s160
    %s883 = sadd.f32 %s880, %s882
    %s884 = smul.f32 %s856, %s856
    %s885 = smul.f32 %s884, %s172
    %s886 = sadd.f32 %s883, %s885
    %s887 = smul.f32 %s856, 2.0
    %s888 = smul.f32 %s887, %s857
    %s889 = smul.f32 %s888, %s184
    %s890 = sadd.f32 %s886, %s889
    %s891 = smul.f32 %s887, %s858
    %s892 = smul.f32 %s891, %s196
    %s893 = sadd.f32 %s890, %s892
    %s894 = smul.f32 %s857, %s857
    %s895 = smul.f32 %s894, %s208
    %s896 = sadd.f32 %s893, %s895
    %s897 = smul.f32 %s857, 2.0
    %s898 = smul.f32 %s897, %s858
    %s899 = smul.f32 %s898, %s220
    %s900 = sadd.f32 %s896, %s899
    %s901 = smul.f32 %s858, %s858
    %s902 = smul.f32 %s901, %s232
    %s903 = sadd.f32 %s900, %s902
    %s904 = smul.f32 %s870, %s870
    %s905 = ssub.f32 %s903, %s904
    %s906 = smax.f32 %s905, 0.0
    %s907 = sld [smem:[#allocation2 + $0x4b]]
    %s908 = sadd.f32 %s906, 1e-05
    %v909 = vstv %s908
    %v910 = vrsqrt.pop %v909
    %s911 = vtos %v910
    %s912 = smul.f32 %s907, %s911
    %s913 = sld [smem:[#allocation2 + $0x53]]
    %s914 = smul.f32 %s870, %s912
    %s915 = ssub.f32 %s913, %s914
    %s916 = smul.f32 %s859, %s243
    %s917 = sadd.f32 %s916, 0.0
    %s918 = smul.f32 %s860, %s254
    %s919 = sadd.f32 %s917, %s918
    %s920 = smul.f32 %s861, %s265
    %s921 = sadd.f32 %s919, %s920
    %s922 = smul.f32 %s862, %s276
    %s923 = sadd.f32 %s921, %s922
    %s924 = smul.f32 %s859, %s859
    %s925 = smul.f32 %s924, %s288
    %s926 = sadd.f32 %s925, 0.0
    %s927 = smul.f32 %s859, 2.0
    %s928 = smul.f32 %s927, %s860
    %s929 = smul.f32 %s928, %s300
    %s930 = sadd.f32 %s926, %s929
    %s931 = smul.f32 %s927, %s861
    %s932 = smul.f32 %s931, %s312
    %s933 = sadd.f32 %s930, %s932
    %s934 = smul.f32 %s927, %s862
    %s935 = smul.f32 %s934, %s324
    %s936 = sadd.f32 %s933, %s935
    %s937 = smul.f32 %s860, %s860
    %s938 = smul.f32 %s937, %s336
    %s939 = sadd.f32 %s936, %s938
    %s940 = smul.f32 %s860, 2.0
    %s941 = smul.f32 %s940, %s861
    %s942 = smul.f32 %s941, %s348
    %s943 = sadd.f32 %s939, %s942
    %s944 = smul.f32 %s940, %s862
    %s945 = smul.f32 %s944, %s360
    %s946 = sadd.f32 %s943, %s945
    %s947 = smul.f32 %s861, %s861
    %s948 = smul.f32 %s947, %s372
    %s949 = sadd.f32 %s946, %s948
    %s950 = smul.f32 %s861, 2.0
    %s951 = smul.f32 %s950, %s862
    %s952 = smul.f32 %s951, %s384
    %s953 = sadd.f32 %s949, %s952
    %s954 = smul.f32 %s862, %s862
    %s955 = smul.f32 %s954, %s396
    %s956 = sadd.f32 %s953, %s955
    %s957 = smul.f32 %s923, %s923
    %s958 = ssub.f32 %s956, %s957
    %s959 = smax.f32 %s958, 0.0
    %s960 = sld [smem:[#allocation2 + $0x5b]]
    %s961 = sadd.f32 %s959, 1e-05
    %v962 = vstv %s961
    %v963 = vrsqrt.pop %v962
    %s964 = vtos %v963
    %s965 = smul.f32 %s960, %s964
    %s966 = sld [smem:[#allocation2 + $0x63]]
    %s967 = smul.f32 %s923, %s965
    %s968 = ssub.f32 %s966, %s967
    %s969 = smul.f32 %s855, %s912
    %v970 = vstv %s969
    %v971 = vmul.f32 %v54, %v970
    %s972 = smul.f32 %s856, %s912
    %v973 = vstv %s972
    %v974 = vmul.f32 %v56, %v973
    %v975 = vadd.f32 %v971, %v974
    %s976 = smul.f32 %s857, %s912
    %v977 = vstv %s976
    %v978 = vmul.f32 %v58, %v977
    %v979 = vadd.f32 %v975, %v978
    %s980 = smul.f32 %s858, %s912
    %v981 = vstv %s980
    %v982 = vmul.f32 %v60, %v981
    %v983 = vadd.f32 %v979, %v982
    %s984 = smul.f32 %s859, %s965
    %v985 = vstv %s984
    %v986 = vmul.f32 %v61, %v985
    %v987 = vadd.f32 %v983, %v986
    %s988 = smul.f32 %s860, %s965
    %v989 = vstv %s988
    %v990 = vmul.f32 %v63, %v989
    %v991 = vadd.f32 %v987, %v990
    %s992 = smul.f32 %s861, %s965
    %v993 = vstv %s992
    %v994 = vmul.f32 %v65, %v993
    %v995 = vadd.f32 %v991, %v994
    %s996 = smul.f32 %s862, %s965
    %v997 = vstv %s996
    %v998 = vmul.f32 %v67, %v997
    %v999 = vadd.f32 %v995, %v998
    %s1000 = sadd.f32 %s915, %s968
    %v1001 = vstv %s1000
    %v1002 = vadd.f32 %v999, %v1001
    %v1003 = vmax.f32 %v1002, 0.0
    %s1004 = sld [smem:[#allocation2 + $0x43]]
    %v1005 = vstv %s1004
    %v1006 = vmul.f32 %v1003, %v1005
    %v1007 = vadd.f32 %v854, %v1006
    %s1008 = sld [smem:[#allocation2 + $0x4]]
    %s1009 = sld [smem:[#allocation2 + $0xc]]
    %s1010 = sld [smem:[#allocation2 + $0x14]]
    %s1011 = sld [smem:[#allocation2 + $0x1c]]
    %s1012 = sld [smem:[#allocation2 + $0x24]]
    %s1013 = sld [smem:[#allocation2 + $0x2c]]
    %s1014 = sld [smem:[#allocation2 + $0x34]]
    %s1015 = sld [smem:[#allocation2 + $0x3c]]
    %s1016 = smul.f32 %s1008, %s79
    %s1017 = sadd.f32 %s1016, 0.0
    %s1018 = smul.f32 %s1009, %s90
    %s1019 = sadd.f32 %s1017, %s1018
    %s1020 = smul.f32 %s1010, %s101
    %s1021 = sadd.f32 %s1019, %s1020
    %s1022 = smul.f32 %s1011, %s112
    %s1023 = sadd.f32 %s1021, %s1022
    %s1024 = smul.f32 %s1008, %s1008
    %s1025 = smul.f32 %s1024, %s124
    %s1026 = sadd.f32 %s1025, 0.0
    %s1027 = smul.f32 %s1008, 2.0
    %s1028 = smul.f32 %s1027, %s1009
    %s1029 = smul.f32 %s1028, %s136
    %s1030 = sadd.f32 %s1026, %s1029
    %s1031 = smul.f32 %s1027, %s1010
    %s1032 = smul.f32 %s1031, %s148
    %s1033 = sadd.f32 %s1030, %s1032
    %s1034 = smul.f32 %s1027, %s1011
    %s1035 = smul.f32 %s1034, %s160
    %s1036 = sadd.f32 %s1033, %s1035
    %s1037 = smul.f32 %s1009, %s1009
    %s1038 = smul.f32 %s1037, %s172
    %s1039 = sadd.f32 %s1036, %s1038
    %s1040 = smul.f32 %s1009, 2.0
    %s1041 = smul.f32 %s1040, %s1010
    %s1042 = smul.f32 %s1041, %s184
    %s1043 = sadd.f32 %s1039, %s1042
    %s1044 = smul.f32 %s1040, %s1011
    %s1045 = smul.f32 %s1044, %s196
    %s1046 = sadd.f32 %s1043, %s1045
    %s1047 = smul.f32 %s1010, %s1010
    %s1048 = smul.f32 %s1047, %s208
    %s1049 = sadd.f32 %s1046, %s1048
    %s1050 = smul.f32 %s1010, 2.0
    %s1051 = smul.f32 %s1050, %s1011
    %s1052 = smul.f32 %s1051, %s220
    %s1053 = sadd.f32 %s1049, %s1052
    %s1054 = smul.f32 %s1011, %s1011
    %s1055 = smul.f32 %s1054, %s232
    %s1056 = sadd.f32 %s1053, %s1055
    %s1057 = smul.f32 %s1023, %s1023
    %s1058 = ssub.f32 %s1056, %s1057
    %s1059 = smax.f32 %s1058, 0.0
    %s1060 = sld [smem:[#allocation2 + $0x4c]]
    %s1061 = sadd.f32 %s1059, 1e-05
    %v1062 = vstv %s1061
    %v1063 = vrsqrt.pop %v1062
    %s1064 = vtos %v1063
    %s1065 = smul.f32 %s1060, %s1064
    %s1066 = sld [smem:[#allocation2 + $0x54]]
    %s1067 = smul.f32 %s1023, %s1065
    %s1068 = ssub.f32 %s1066, %s1067
    %s1069 = smul.f32 %s1012, %s243
    %s1070 = sadd.f32 %s1069, 0.0
    %s1071 = smul.f32 %s1013, %s254
    %s1072 = sadd.f32 %s1070, %s1071
    %s1073 = smul.f32 %s1014, %s265
    %s1074 = sadd.f32 %s1072, %s1073
    %s1075 = smul.f32 %s1015, %s276
    %s1076 = sadd.f32 %s1074, %s1075
    %s1077 = smul.f32 %s1012, %s1012
    %s1078 = smul.f32 %s1077, %s288
    %s1079 = sadd.f32 %s1078, 0.0
    %s1080 = smul.f32 %s1012, 2.0
    %s1081 = smul.f32 %s1080, %s1013
    %s1082 = smul.f32 %s1081, %s300
    %s1083 = sadd.f32 %s1079, %s1082
    %s1084 = smul.f32 %s1080, %s1014
    %s1085 = smul.f32 %s1084, %s312
    %s1086 = sadd.f32 %s1083, %s1085
    %s1087 = smul.f32 %s1080, %s1015
    %s1088 = smul.f32 %s1087, %s324
    %s1089 = sadd.f32 %s1086, %s1088
    %s1090 = smul.f32 %s1013, %s1013
    %s1091 = smul.f32 %s1090, %s336
    %s1092 = sadd.f32 %s1089, %s1091
    %s1093 = smul.f32 %s1013, 2.0
    %s1094 = smul.f32 %s1093, %s1014
    %s1095 = smul.f32 %s1094, %s348
    %s1096 = sadd.f32 %s1092, %s1095
    %s1097 = smul.f32 %s1093, %s1015
    %s1098 = smul.f32 %s1097, %s360
    %s1099 = sadd.f32 %s1096, %s1098
    %s1100 = smul.f32 %s1014, %s1014
    %s1101 = smul.f32 %s1100, %s372
    %s1102 = sadd.f32 %s1099, %s1101
    %s1103 = smul.f32 %s1014, 2.0
    %s1104 = smul.f32 %s1103, %s1015
    %s1105 = smul.f32 %s1104, %s384
    %s1106 = sadd.f32 %s1102, %s1105
    %s1107 = smul.f32 %s1015, %s1015
    %s1108 = smul.f32 %s1107, %s396
    %s1109 = sadd.f32 %s1106, %s1108
    %s1110 = smul.f32 %s1076, %s1076
    %s1111 = ssub.f32 %s1109, %s1110
    %s1112 = smax.f32 %s1111, 0.0
    %s1113 = sld [smem:[#allocation2 + $0x5c]]
    %s1114 = sadd.f32 %s1112, 1e-05
    %v1115 = vstv %s1114
    %v1116 = vrsqrt.pop %v1115
    %s1117 = vtos %v1116
    %s1118 = smul.f32 %s1113, %s1117
    %s1119 = sld [smem:[#allocation2 + $0x64]]
    %s1120 = smul.f32 %s1076, %s1118
    %s1121 = ssub.f32 %s1119, %s1120
    %s1122 = smul.f32 %s1008, %s1065
    %v1123 = vstv %s1122
    %v1124 = vmul.f32 %v54, %v1123
    %s1125 = smul.f32 %s1009, %s1065
    %v1126 = vstv %s1125
    %v1127 = vmul.f32 %v56, %v1126
    %v1128 = vadd.f32 %v1124, %v1127
    %s1129 = smul.f32 %s1010, %s1065
    %v1130 = vstv %s1129
    %v1131 = vmul.f32 %v58, %v1130
    %v1132 = vadd.f32 %v1128, %v1131
    %s1133 = smul.f32 %s1011, %s1065
    %v1134 = vstv %s1133
    %v1135 = vmul.f32 %v60, %v1134
    %v1136 = vadd.f32 %v1132, %v1135
    %s1137 = smul.f32 %s1012, %s1118
    %v1138 = vstv %s1137
    %v1139 = vmul.f32 %v61, %v1138
    %v1140 = vadd.f32 %v1136, %v1139
    %s1141 = smul.f32 %s1013, %s1118
    %v1142 = vstv %s1141
    %v1143 = vmul.f32 %v63, %v1142
    %v1144 = vadd.f32 %v1140, %v1143
    %s1145 = smul.f32 %s1014, %s1118
    %v1146 = vstv %s1145
    %v1147 = vmul.f32 %v65, %v1146
    %v1148 = vadd.f32 %v1144, %v1147
    %s1149 = smul.f32 %s1015, %s1118
    %v1150 = vstv %s1149
    %v1151 = vmul.f32 %v67, %v1150
    %v1152 = vadd.f32 %v1148, %v1151
    %s1153 = sadd.f32 %s1068, %s1121
    %v1154 = vstv %s1153
    %v1155 = vadd.f32 %v1152, %v1154
    %v1156 = vmax.f32 %v1155, 0.0
    %s1157 = sld [smem:[#allocation2 + $0x44]]
    %v1158 = vstv %s1157
    %v1159 = vmul.f32 %v1156, %v1158
    %v1160 = vadd.f32 %v1007, %v1159
    %s1161 = sld [smem:[#allocation2 + $0x5]]
    %s1162 = sld [smem:[#allocation2 + $0xd]]
    %s1163 = sld [smem:[#allocation2 + $0x15]]
    %s1164 = sld [smem:[#allocation2 + $0x1d]]
    %s1165 = sld [smem:[#allocation2 + $0x25]]
    %s1166 = sld [smem:[#allocation2 + $0x2d]]
    %s1167 = sld [smem:[#allocation2 + $0x35]]
    %s1168 = sld [smem:[#allocation2 + $0x3d]]
    %s1169 = smul.f32 %s1161, %s79
    %s1170 = sadd.f32 %s1169, 0.0
    %s1171 = smul.f32 %s1162, %s90
    %s1172 = sadd.f32 %s1170, %s1171
    %s1173 = smul.f32 %s1163, %s101
    %s1174 = sadd.f32 %s1172, %s1173
    %s1175 = smul.f32 %s1164, %s112
    %s1176 = sadd.f32 %s1174, %s1175
    %s1177 = smul.f32 %s1161, %s1161
    %s1178 = smul.f32 %s1177, %s124
    %s1179 = sadd.f32 %s1178, 0.0
    %s1180 = smul.f32 %s1161, 2.0
    %s1181 = smul.f32 %s1180, %s1162
    %s1182 = smul.f32 %s1181, %s136
    %s1183 = sadd.f32 %s1179, %s1182
    %s1184 = smul.f32 %s1180, %s1163
    %s1185 = smul.f32 %s1184, %s148
    %s1186 = sadd.f32 %s1183, %s1185
    %s1187 = smul.f32 %s1180, %s1164
    %s1188 = smul.f32 %s1187, %s160
    %s1189 = sadd.f32 %s1186, %s1188
    %s1190 = smul.f32 %s1162, %s1162
    %s1191 = smul.f32 %s1190, %s172
    %s1192 = sadd.f32 %s1189, %s1191
    %s1193 = smul.f32 %s1162, 2.0
    %s1194 = smul.f32 %s1193, %s1163
    %s1195 = smul.f32 %s1194, %s184
    %s1196 = sadd.f32 %s1192, %s1195
    %s1197 = smul.f32 %s1193, %s1164
    %s1198 = smul.f32 %s1197, %s196
    %s1199 = sadd.f32 %s1196, %s1198
    %s1200 = smul.f32 %s1163, %s1163
    %s1201 = smul.f32 %s1200, %s208
    %s1202 = sadd.f32 %s1199, %s1201
    %s1203 = smul.f32 %s1163, 2.0
    %s1204 = smul.f32 %s1203, %s1164
    %s1205 = smul.f32 %s1204, %s220
    %s1206 = sadd.f32 %s1202, %s1205
    %s1207 = smul.f32 %s1164, %s1164
    %s1208 = smul.f32 %s1207, %s232
    %s1209 = sadd.f32 %s1206, %s1208
    %s1210 = smul.f32 %s1176, %s1176
    %s1211 = ssub.f32 %s1209, %s1210
    %s1212 = smax.f32 %s1211, 0.0
    %s1213 = sld [smem:[#allocation2 + $0x4d]]
    %s1214 = sadd.f32 %s1212, 1e-05
    %v1215 = vstv %s1214
    %v1216 = vrsqrt.pop %v1215
    %s1217 = vtos %v1216
    %s1218 = smul.f32 %s1213, %s1217
    %s1219 = sld [smem:[#allocation2 + $0x55]]
    %s1220 = smul.f32 %s1176, %s1218
    %s1221 = ssub.f32 %s1219, %s1220
    %s1222 = smul.f32 %s1165, %s243
    %s1223 = sadd.f32 %s1222, 0.0
    %s1224 = smul.f32 %s1166, %s254
    %s1225 = sadd.f32 %s1223, %s1224
    %s1226 = smul.f32 %s1167, %s265
    %s1227 = sadd.f32 %s1225, %s1226
    %s1228 = smul.f32 %s1168, %s276
    %s1229 = sadd.f32 %s1227, %s1228
    %s1230 = smul.f32 %s1165, %s1165
    %s1231 = smul.f32 %s1230, %s288
    %s1232 = sadd.f32 %s1231, 0.0
    %s1233 = smul.f32 %s1165, 2.0
    %s1234 = smul.f32 %s1233, %s1166
    %s1235 = smul.f32 %s1234, %s300
    %s1236 = sadd.f32 %s1232, %s1235
    %s1237 = smul.f32 %s1233, %s1167
    %s1238 = smul.f32 %s1237, %s312
    %s1239 = sadd.f32 %s1236, %s1238
    %s1240 = smul.f32 %s1233, %s1168
    %s1241 = smul.f32 %s1240, %s324
    %s1242 = sadd.f32 %s1239, %s1241
    %s1243 = smul.f32 %s1166, %s1166
    %s1244 = smul.f32 %s1243, %s336
    %s1245 = sadd.f32 %s1242, %s1244
    %s1246 = smul.f32 %s1166, 2.0
    %s1247 = smul.f32 %s1246, %s1167
    %s1248 = smul.f32 %s1247, %s348
    %s1249 = sadd.f32 %s1245, %s1248
    %s1250 = smul.f32 %s1246, %s1168
    %s1251 = smul.f32 %s1250, %s360
    %s1252 = sadd.f32 %s1249, %s1251
    %s1253 = smul.f32 %s1167, %s1167
    %s1254 = smul.f32 %s1253, %s372
    %s1255 = sadd.f32 %s1252, %s1254
    %s1256 = smul.f32 %s1167, 2.0
    %s1257 = smul.f32 %s1256, %s1168
    %s1258 = smul.f32 %s1257, %s384
    %s1259 = sadd.f32 %s1255, %s1258
    %s1260 = smul.f32 %s1168, %s1168
    %s1261 = smul.f32 %s1260, %s396
    %s1262 = sadd.f32 %s1259, %s1261
    %s1263 = smul.f32 %s1229, %s1229
    %s1264 = ssub.f32 %s1262, %s1263
    %s1265 = smax.f32 %s1264, 0.0
    %s1266 = sld [smem:[#allocation2 + $0x5d]]
    %s1267 = sadd.f32 %s1265, 1e-05
    %v1268 = vstv %s1267
    %v1269 = vrsqrt.pop %v1268
    %s1270 = vtos %v1269
    %s1271 = smul.f32 %s1266, %s1270
    %s1272 = sld [smem:[#allocation2 + $0x65]]
    %s1273 = smul.f32 %s1229, %s1271
    %s1274 = ssub.f32 %s1272, %s1273
    %s1275 = smul.f32 %s1161, %s1218
    %v1276 = vstv %s1275
    %v1277 = vmul.f32 %v54, %v1276
    %s1278 = smul.f32 %s1162, %s1218
    %v1279 = vstv %s1278
    %v1280 = vmul.f32 %v56, %v1279
    %v1281 = vadd.f32 %v1277, %v1280
    %s1282 = smul.f32 %s1163, %s1218
    %v1283 = vstv %s1282
    %v1284 = vmul.f32 %v58, %v1283
    %v1285 = vadd.f32 %v1281, %v1284
    %s1286 = smul.f32 %s1164, %s1218
    %v1287 = vstv %s1286
    %v1288 = vmul.f32 %v60, %v1287
    %v1289 = vadd.f32 %v1285, %v1288
    %s1290 = smul.f32 %s1165, %s1271
    %v1291 = vstv %s1290
    %v1292 = vmul.f32 %v61, %v1291
    %v1293 = vadd.f32 %v1289, %v1292
    %s1294 = smul.f32 %s1166, %s1271
    %v1295 = vstv %s1294
    %v1296 = vmul.f32 %v63, %v1295
    %v1297 = vadd.f32 %v1293, %v1296
    %s1298 = smul.f32 %s1167, %s1271
    %v1299 = vstv %s1298
    %v1300 = vmul.f32 %v65, %v1299
    %v1301 = vadd.f32 %v1297, %v1300
    %s1302 = smul.f32 %s1168, %s1271
    %v1303 = vstv %s1302
    %v1304 = vmul.f32 %v67, %v1303
    %v1305 = vadd.f32 %v1301, %v1304
    %s1306 = sadd.f32 %s1221, %s1274
    %v1307 = vstv %s1306
    %v1308 = vadd.f32 %v1305, %v1307
    %v1309 = vmax.f32 %v1308, 0.0
    %s1310 = sld [smem:[#allocation2 + $0x45]]
    %v1311 = vstv %s1310
    %v1312 = vmul.f32 %v1309, %v1311
    %v1313 = vadd.f32 %v1160, %v1312
    %s1314 = sld [smem:[#allocation2 + $0x6]]
    %s1315 = sld [smem:[#allocation2 + $0xe]]
    %s1316 = sld [smem:[#allocation2 + $0x16]]
    %s1317 = sld [smem:[#allocation2 + $0x1e]]
    %s1318 = sld [smem:[#allocation2 + $0x26]]
    %s1319 = sld [smem:[#allocation2 + $0x2e]]
    %s1320 = sld [smem:[#allocation2 + $0x36]]
    %s1321 = sld [smem:[#allocation2 + $0x3e]]
    %s1322 = smul.f32 %s1314, %s79
    %s1323 = sadd.f32 %s1322, 0.0
    %s1324 = smul.f32 %s1315, %s90
    %s1325 = sadd.f32 %s1323, %s1324
    %s1326 = smul.f32 %s1316, %s101
    %s1327 = sadd.f32 %s1325, %s1326
    %s1328 = smul.f32 %s1317, %s112
    %s1329 = sadd.f32 %s1327, %s1328
    %s1330 = smul.f32 %s1314, %s1314
    %s1331 = smul.f32 %s1330, %s124
    %s1332 = sadd.f32 %s1331, 0.0
    %s1333 = smul.f32 %s1314, 2.0
    %s1334 = smul.f32 %s1333, %s1315
    %s1335 = smul.f32 %s1334, %s136
    %s1336 = sadd.f32 %s1332, %s1335
    %s1337 = smul.f32 %s1333, %s1316
    %s1338 = smul.f32 %s1337, %s148
    %s1339 = sadd.f32 %s1336, %s1338
    %s1340 = smul.f32 %s1333, %s1317
    %s1341 = smul.f32 %s1340, %s160
    %s1342 = sadd.f32 %s1339, %s1341
    %s1343 = smul.f32 %s1315, %s1315
    %s1344 = smul.f32 %s1343, %s172
    %s1345 = sadd.f32 %s1342, %s1344
    %s1346 = smul.f32 %s1315, 2.0
    %s1347 = smul.f32 %s1346, %s1316
    %s1348 = smul.f32 %s1347, %s184
    %s1349 = sadd.f32 %s1345, %s1348
    %s1350 = smul.f32 %s1346, %s1317
    %s1351 = smul.f32 %s1350, %s196
    %s1352 = sadd.f32 %s1349, %s1351
    %s1353 = smul.f32 %s1316, %s1316
    %s1354 = smul.f32 %s1353, %s208
    %s1355 = sadd.f32 %s1352, %s1354
    %s1356 = smul.f32 %s1316, 2.0
    %s1357 = smul.f32 %s1356, %s1317
    %s1358 = smul.f32 %s1357, %s220
    %s1359 = sadd.f32 %s1355, %s1358
    %s1360 = smul.f32 %s1317, %s1317
    %s1361 = smul.f32 %s1360, %s232
    %s1362 = sadd.f32 %s1359, %s1361
    %s1363 = smul.f32 %s1329, %s1329
    %s1364 = ssub.f32 %s1362, %s1363
    %s1365 = smax.f32 %s1364, 0.0
    %s1366 = sld [smem:[#allocation2 + $0x4e]]
    %s1367 = sadd.f32 %s1365, 1e-05
    %v1368 = vstv %s1367
    %v1369 = vrsqrt.pop %v1368
    %s1370 = vtos %v1369
    %s1371 = smul.f32 %s1366, %s1370
    %s1372 = sld [smem:[#allocation2 + $0x56]]
    %s1373 = smul.f32 %s1329, %s1371
    %s1374 = ssub.f32 %s1372, %s1373
    %s1375 = smul.f32 %s1318, %s243
    %s1376 = sadd.f32 %s1375, 0.0
    %s1377 = smul.f32 %s1319, %s254
    %s1378 = sadd.f32 %s1376, %s1377
    %s1379 = smul.f32 %s1320, %s265
    %s1380 = sadd.f32 %s1378, %s1379
    %s1381 = smul.f32 %s1321, %s276
    %s1382 = sadd.f32 %s1380, %s1381
    %s1383 = smul.f32 %s1318, %s1318
    %s1384 = smul.f32 %s1383, %s288
    %s1385 = sadd.f32 %s1384, 0.0
    %s1386 = smul.f32 %s1318, 2.0
    %s1387 = smul.f32 %s1386, %s1319
    %s1388 = smul.f32 %s1387, %s300
    %s1389 = sadd.f32 %s1385, %s1388
    %s1390 = smul.f32 %s1386, %s1320
    %s1391 = smul.f32 %s1390, %s312
    %s1392 = sadd.f32 %s1389, %s1391
    %s1393 = smul.f32 %s1386, %s1321
    %s1394 = smul.f32 %s1393, %s324
    %s1395 = sadd.f32 %s1392, %s1394
    %s1396 = smul.f32 %s1319, %s1319
    %s1397 = smul.f32 %s1396, %s336
    %s1398 = sadd.f32 %s1395, %s1397
    %s1399 = smul.f32 %s1319, 2.0
    %s1400 = smul.f32 %s1399, %s1320
    %s1401 = smul.f32 %s1400, %s348
    %s1402 = sadd.f32 %s1398, %s1401
    %s1403 = smul.f32 %s1399, %s1321
    %s1404 = smul.f32 %s1403, %s360
    %s1405 = sadd.f32 %s1402, %s1404
    %s1406 = smul.f32 %s1320, %s1320
    %s1407 = smul.f32 %s1406, %s372
    %s1408 = sadd.f32 %s1405, %s1407
    %s1409 = smul.f32 %s1320, 2.0
    %s1410 = smul.f32 %s1409, %s1321
    %s1411 = smul.f32 %s1410, %s384
    %s1412 = sadd.f32 %s1408, %s1411
    %s1413 = smul.f32 %s1321, %s1321
    %s1414 = smul.f32 %s1413, %s396
    %s1415 = sadd.f32 %s1412, %s1414
    %s1416 = smul.f32 %s1382, %s1382
    %s1417 = ssub.f32 %s1415, %s1416
    %s1418 = smax.f32 %s1417, 0.0
    %s1419 = sld [smem:[#allocation2 + $0x5e]]
    %s1420 = sadd.f32 %s1418, 1e-05
    %v1421 = vstv %s1420
    %v1422 = vrsqrt.pop %v1421
    %s1423 = vtos %v1422
    %s1424 = smul.f32 %s1419, %s1423
    %s1425 = sld [smem:[#allocation2 + $0x66]]
    %s1426 = smul.f32 %s1382, %s1424
    %s1427 = ssub.f32 %s1425, %s1426
    %s1428 = smul.f32 %s1314, %s1371
    %v1429 = vstv %s1428
    %v1430 = vmul.f32 %v54, %v1429
    %s1431 = smul.f32 %s1315, %s1371
    %v1432 = vstv %s1431
    %v1433 = vmul.f32 %v56, %v1432
    %v1434 = vadd.f32 %v1430, %v1433
    %s1435 = smul.f32 %s1316, %s1371
    %v1436 = vstv %s1435
    %v1437 = vmul.f32 %v58, %v1436
    %v1438 = vadd.f32 %v1434, %v1437
    %s1439 = smul.f32 %s1317, %s1371
    %v1440 = vstv %s1439
    %v1441 = vmul.f32 %v60, %v1440
    %v1442 = vadd.f32 %v1438, %v1441
    %s1443 = smul.f32 %s1318, %s1424
    %v1444 = vstv %s1443
    %v1445 = vmul.f32 %v61, %v1444
    %v1446 = vadd.f32 %v1442, %v1445
    %s1447 = smul.f32 %s1319, %s1424
    %v1448 = vstv %s1447
    %v1449 = vmul.f32 %v63, %v1448
    %v1450 = vadd.f32 %v1446, %v1449
    %s1451 = smul.f32 %s1320, %s1424
    %v1452 = vstv %s1451
    %v1453 = vmul.f32 %v65, %v1452
    %v1454 = vadd.f32 %v1450, %v1453
    %s1455 = smul.f32 %s1321, %s1424
    %v1456 = vstv %s1455
    %v1457 = vmul.f32 %v67, %v1456
    %v1458 = vadd.f32 %v1454, %v1457
    %s1459 = sadd.f32 %s1374, %s1427
    %v1460 = vstv %s1459
    %v1461 = vadd.f32 %v1458, %v1460
    %v1462 = vmax.f32 %v1461, 0.0
    %s1463 = sld [smem:[#allocation2 + $0x46]]
    %v1464 = vstv %s1463
    %v1465 = vmul.f32 %v1462, %v1464
    %v1466 = vadd.f32 %v1313, %v1465
    %s1467 = sld [smem:[#allocation2 + $0x7]]
    %s1468 = sld [smem:[#allocation2 + $0xf]]
    %s1469 = sld [smem:[#allocation2 + $0x17]]
    %s1470 = sld [smem:[#allocation2 + $0x1f]]
    %s1471 = sld [smem:[#allocation2 + $0x27]]
    %s1472 = sld [smem:[#allocation2 + $0x2f]]
    %s1473 = sld [smem:[#allocation2 + $0x37]]
    %s1474 = sld [smem:[#allocation2 + $0x3f]]
    %s1475 = smul.f32 %s1467, %s79
    %s1476 = sadd.f32 %s1475, 0.0
    %s1477 = smul.f32 %s1468, %s90
    %s1478 = sadd.f32 %s1476, %s1477
    %s1479 = smul.f32 %s1469, %s101
    %s1480 = sadd.f32 %s1478, %s1479
    %s1481 = smul.f32 %s1470, %s112
    %s1482 = sadd.f32 %s1480, %s1481
    %s1483 = smul.f32 %s1467, %s1467
    %s1484 = smul.f32 %s1483, %s124
    %s1485 = sadd.f32 %s1484, 0.0
    %s1486 = smul.f32 %s1467, 2.0
    %s1487 = smul.f32 %s1486, %s1468
    %s1488 = smul.f32 %s1487, %s136
    %s1489 = sadd.f32 %s1485, %s1488
    %s1490 = smul.f32 %s1486, %s1469
    %s1491 = smul.f32 %s1490, %s148
    %s1492 = sadd.f32 %s1489, %s1491
    %s1493 = smul.f32 %s1486, %s1470
    %s1494 = smul.f32 %s1493, %s160
    %s1495 = sadd.f32 %s1492, %s1494
    %s1496 = smul.f32 %s1468, %s1468
    %s1497 = smul.f32 %s1496, %s172
    %s1498 = sadd.f32 %s1495, %s1497
    %s1499 = smul.f32 %s1468, 2.0
    %s1500 = smul.f32 %s1499, %s1469
    %s1501 = smul.f32 %s1500, %s184
    %s1502 = sadd.f32 %s1498, %s1501
    %s1503 = smul.f32 %s1499, %s1470
    %s1504 = smul.f32 %s1503, %s196
    %s1505 = sadd.f32 %s1502, %s1504
    %s1506 = smul.f32 %s1469, %s1469
    %s1507 = smul.f32 %s1506, %s208
    %s1508 = sadd.f32 %s1505, %s1507
    %s1509 = smul.f32 %s1469, 2.0
    %s1510 = smul.f32 %s1509, %s1470
    %s1511 = smul.f32 %s1510, %s220
    %s1512 = sadd.f32 %s1508, %s1511
    %s1513 = smul.f32 %s1470, %s1470
    %s1514 = smul.f32 %s1513, %s232
    %s1515 = sadd.f32 %s1512, %s1514
    %s1516 = smul.f32 %s1482, %s1482
    %s1517 = ssub.f32 %s1515, %s1516
    %s1518 = smax.f32 %s1517, 0.0
    %s1519 = sld [smem:[#allocation2 + $0x4f]]
    %s1520 = sadd.f32 %s1518, 1e-05
    %v1521 = vstv %s1520
    %v1522 = vrsqrt.pop %v1521
    %s1523 = vtos %v1522
    %s1524 = smul.f32 %s1519, %s1523
    %s1525 = sld [smem:[#allocation2 + $0x57]]
    %s1526 = smul.f32 %s1482, %s1524
    %s1527 = ssub.f32 %s1525, %s1526
    %s1528 = smul.f32 %s1471, %s243
    %s1529 = sadd.f32 %s1528, 0.0
    %s1530 = smul.f32 %s1472, %s254
    %s1531 = sadd.f32 %s1529, %s1530
    %s1532 = smul.f32 %s1473, %s265
    %s1533 = sadd.f32 %s1531, %s1532
    %s1534 = smul.f32 %s1474, %s276
    %s1535 = sadd.f32 %s1533, %s1534
    %s1536 = smul.f32 %s1471, %s1471
    %s1537 = smul.f32 %s1536, %s288
    %s1538 = sadd.f32 %s1537, 0.0
    %s1539 = smul.f32 %s1471, 2.0
    %s1540 = smul.f32 %s1539, %s1472
    %s1541 = smul.f32 %s1540, %s300
    %s1542 = sadd.f32 %s1538, %s1541
    %s1543 = smul.f32 %s1539, %s1473
    %s1544 = smul.f32 %s1543, %s312
    %s1545 = sadd.f32 %s1542, %s1544
    %s1546 = smul.f32 %s1539, %s1474
    %s1547 = smul.f32 %s1546, %s324
    %s1548 = sadd.f32 %s1545, %s1547
    %s1549 = smul.f32 %s1472, %s1472
    %s1550 = smul.f32 %s1549, %s336
    %s1551 = sadd.f32 %s1548, %s1550
    %s1552 = smul.f32 %s1472, 2.0
    %s1553 = smul.f32 %s1552, %s1473
    %s1554 = smul.f32 %s1553, %s348
    %s1555 = sadd.f32 %s1551, %s1554
    %s1556 = smul.f32 %s1552, %s1474
    %s1557 = smul.f32 %s1556, %s360
    %s1558 = sadd.f32 %s1555, %s1557
    %s1559 = smul.f32 %s1473, %s1473
    %s1560 = smul.f32 %s1559, %s372
    %s1561 = sadd.f32 %s1558, %s1560
    %s1562 = smul.f32 %s1473, 2.0
    %s1563 = smul.f32 %s1562, %s1474
    %s1564 = smul.f32 %s1563, %s384
    %s1565 = sadd.f32 %s1561, %s1564
    %s1566 = smul.f32 %s1474, %s1474
    %s1567 = smul.f32 %s1566, %s396
    %s1568 = sadd.f32 %s1565, %s1567
    %s1569 = smul.f32 %s1535, %s1535
    %s1570 = ssub.f32 %s1568, %s1569
    %s1571 = smax.f32 %s1570, 0.0
    %s1572 = sld [smem:[#allocation2 + $0x5f]]
    %s1573 = sadd.f32 %s1571, 1e-05
    %v1574 = vstv %s1573
    %v1575 = vrsqrt.pop %v1574
    %s1576 = vtos %v1575
    %s1577 = smul.f32 %s1572, %s1576
    %s1578 = sld [smem:[#allocation2 + $0x67]]
    %s1579 = smul.f32 %s1535, %s1577
    %s1580 = ssub.f32 %s1578, %s1579
    %s1581 = smul.f32 %s1467, %s1524
    %v1582 = vstv %s1581
    %v1583 = vmul.f32 %v54, %v1582
    %s1584 = smul.f32 %s1468, %s1524
    %v1585 = vstv %s1584
    %v1586 = vmul.f32 %v56, %v1585
    %v1587 = vadd.f32 %v1583, %v1586
    %s1588 = smul.f32 %s1469, %s1524
    %v1589 = vstv %s1588
    %v1590 = vmul.f32 %v58, %v1589
    %v1591 = vadd.f32 %v1587, %v1590
    %s1592 = smul.f32 %s1470, %s1524
    %v1593 = vstv %s1592
    %v1594 = vmul.f32 %v60, %v1593
    %v1595 = vadd.f32 %v1591, %v1594
    %s1596 = smul.f32 %s1471, %s1577
    %v1597 = vstv %s1596
    %v1598 = vmul.f32 %v61, %v1597
    %v1599 = vadd.f32 %v1595, %v1598
    %s1600 = smul.f32 %s1472, %s1577
    %v1601 = vstv %s1600
    %v1602 = vmul.f32 %v63, %v1601
    %v1603 = vadd.f32 %v1599, %v1602
    %s1604 = smul.f32 %s1473, %s1577
    %v1605 = vstv %s1604
    %v1606 = vmul.f32 %v65, %v1605
    %v1607 = vadd.f32 %v1603, %v1606
    %s1608 = smul.f32 %s1474, %s1577
    %v1609 = vstv %s1608
    %v1610 = vmul.f32 %v67, %v1609
    %v1611 = vadd.f32 %v1607, %v1610
    %s1612 = sadd.f32 %s1527, %s1580
    %v1613 = vstv %s1612
    %v1614 = vadd.f32 %v1611, %v1613
    %v1615 = vmax.f32 %v1614, 0.0
    %s1616 = sld [smem:[#allocation2 + $0x47]]
    %v1617 = vstv %s1616
    %v1618 = vmul.f32 %v1615, %v1617
    %v1619 = vadd.f32 %v1466, %v1618
    %v1620 = vsel %vm68, %v1619, 0.0
    %1621 = vadd.xlane.f32.xlu0 %v1620
    %v1622 = vpop.xlane.xlu0 %1621
    %v1623 = vrot.slane %v1622, 4
    %v1624 = vadd.f32 %v1622, %v1623
    %v1625 = vrot.slane %v1624, 2
    %v1626 = vadd.f32 %v1624, %v1625
    %v1627 = vrot.slane %v1626, 1
    %v1628 = vadd.f32 %v1626, %v1627
    %s1629 = vtos %v1628
    %s1630 = smul.f32 %s1629, 0.001953125
    %v1631 = vmul.f32 %v1619, %v1619
    %v1632 = vsel %vm68, %v1631, 0.0
    %1633 = vadd.xlane.f32.xlu0 %v1632
    %v1634 = vpop.xlane.xlu0 %1633
    %v1635 = vrot.slane %v1634, 4
    %v1636 = vadd.f32 %v1634, %v1635
    %v1637 = vrot.slane %v1636, 2
    %v1638 = vadd.f32 %v1636, %v1637
    %v1639 = vrot.slane %v1638, 1
    %v1640 = vadd.f32 %v1638, %v1639
    %s1641 = vtos %v1640
    %s1642 = smul.f32 %s1641, 0.001953125
    %s1643 = smul.f32 %s1630, %s1630
    %s1644 = ssub.f32 %s1642, %s1643
    %s1645 = smax.f32 %s1644, 0.0
    %s1646 = sld [smem:[#allocation2 + $0x68]]
    %s1647 = sadd.f32 %s1645, 1e-05
    %v1648 = vstv %s1647
    %v1649 = vrsqrt.pop %v1648
    %s1650 = vtos %v1649
    %s1651 = smul.f32 %s1646, %s1650
    %s1652 = sld [smem:[#allocation2 + $0x69]]
    %s1653 = smul.f32 %s1630, %s1651
    %s1654 = ssub.f32 %s1652, %s1653
    %v1655 = vstv %s1651
    %v1656 = vmul.f32 %v1619, %v1655
    %v1657 = vstv %s1654
    %v1658 = vadd.f32 %v1656, %v1657
    %v1659 = vxor.u32 %v1658, 2147483648
    %v1660 = vmul.f32 %v1659, 1.442695
    %v1661 = vpow.pop %v1660
    %v1662 = vadd.f32 %v1661, 1.0
    %v1663 = vrcp.pop %v1662
    %v1664 = vmul.f32 1.0, %v1663
    %v1665 = vmul.f32 %v61, %v1664
    %1666 = vst [vmem:[#allocation9] sm:$0xf] %v1665
    %v1667 = vmul.f32 %v63, %v1664
    %s1668 = scalar_lea.vmem [#allocation9], 4
    %1669 = vst [vmem:[%s1668] sm:$0xf] %v1667
    %v1670 = vmul.f32 %v65, %v1664
    %s1671 = scalar_lea.vmem [#allocation9], 8
    %1672 = vst [vmem:[%s1671] sm:$0xf] %v1670
    %v1673 = vmul.f32 %v67, %v1664
    %s1674 = scalar_lea.vmem [#allocation9], 12
    %1675 = vst [vmem:[%s1674] sm:$0xf] %v1673
    // Predicated region
    $region26: #{tpu_custom_call.1} parent=1 // pred_check
      _
    $region27: #{tpu_custom_call.1} parent=1 // pred_check_branch
      %1677 = sbr.rel (0) target = $region29
    $region28: #{tpu_custom_call.1} parent=1 // pred_region
      %s1679 = ssub.s32 256, 256
      %1680 = vsyncadd [#allocation4], %s1679
      %s1681 = sshll.u32 [#allocation9], 4
      %s1682 = int_to_ptr.vmem [resolvable:$true] %s1681
      %1687 = dma.vmem_to_hbm [thread:$0]  %s1682, 256, %s3, [#allocation4], 64, 64, 4
    $region29: #{tpu_custom_call.1} parent=1 // pred_fallthru
      _
    // Predicated region
    $region30: #{tpu_custom_call.1} parent=1 // pred_check
      _
    $region31: #{tpu_custom_call.1} parent=1 // pred_check_branch
      %1689 = sbr.rel (0) target = $region33
    $region32: #{tpu_custom_call.1} parent=1 // pred_region
      %1690 = dma.done [#allocation4], 256
    $region33: #{tpu_custom_call.1} parent=1 // pred_fallthru
      _
    %1691 = vsyncpa [#allocation3], 1
    %1692 = vsyncpa [#allocation8], 1
    %1693 = vsyncpa [#allocation4], 1
    %1694 = vsyncpa [#allocation5], 1

</llo_original>
